<compile_context>
chip_gen: v7x
topology: tpu7x:2x2x1
jax: 0.10.0
libtpu: 0.0.40
codegen_flags: <defaults>
</compile_context>

<pallas_src>
import functools

import jax
import jax.numpy as jnp
from jax.experimental import pallas as pl
from jax.experimental.pallas import tpu as pltpu


def _round_up(x, m):
    return (x + m - 1) // m * m


def _quantile_conv3d_kernel(x_ref, w_ref, b_ref, o_ref, p_ref, *, w_pad, plane):
    """One batch element of the fused 3-conv layer.

    x_ref: (1, Cp, Lflat)   bf16, flattened zero-padded (D+2,H+2,W+2) volume / channel
    w_ref: (C3, 27*Cp)      bf16 fused weights, col = ((kd*3+kh)*3+kw)*Cp + ci
    b_ref: (C3, 1)          f32 fused bias
    o_ref: (1, C3, NCOLS)   f32, lane-dense output slab (NCOLS multiple of 128)
    p_ref: (27*Cp, NCOLS)   bf16 im2col scratch
    """
    cp = x_ref.shape[1]
    n_cols = o_ref.shape[2]

    # im2col: 27 wide copies, one static lane slice per (kd, kh, kw) tap.  Every tap
    # covers ALL output depth slices at once (flat-volume indexing), so there is no
    # per-depth loop and no halo handling inside the kernel.
    for kd in range(3):
        for kh in range(3):
            for kw in range(3):
                tap = (kd * 3 + kh) * 3 + kw
                off = kd * plane + kh * w_pad + kw
                p_ref[tap * cp:(tap + 1) * cp, :] = x_ref[0, :, off:off + n_cols]

    # Single fused MXU matmul (default precision = single-pass bf16, f32 accumulate).
    acc = jax.lax.dot_general(
        w_ref[...], p_ref[...],
        (((1,), (0,)), ((), ())),
        preferred_element_type=jnp.float32)
    o_ref[0] = (acc + b_ref[...]).astype(o_ref.dtype)


def _quantile_regression_impl(x, w_lo, b_lo, w_pr, b_pr, w_hi, b_hi):
    n, c_in, d, h, w = x.shape
    c_out = w_lo.shape[0]
    c3 = 3 * c_out

    cp = _round_up(c_in, 8)                 # 8-aligned per-tap row blocks
    hp, wp = h + 2, w + 2
    plane = hp * wp
    n_cols = _round_up(d * plane, 128)      # lane-dense output columns
    max_off = 2 * plane + 2 * wp + 2        # largest tap lane offset
    l_flat = _round_up(max((d + 2) * plane, n_cols + max_off), 128)
    k = 27 * cp

    # ---- glue: pad channels + borders, flatten the padded volume into lanes -------
    xp = jnp.pad(x, ((0, 0), (0, cp - c_in), (1, 1), (1, 1), (1, 1)))
    xp = xp.reshape(n, cp, (d + 2) * plane)
    xp = jnp.pad(xp, ((0, 0), (0, 0), (0, l_flat - (d + 2) * plane)))
    xp = xp.astype(jnp.bfloat16)

    # ---- glue: fuse the three convs' weights into one (C3, 27*Cp) bf16 matrix -----
    def to_mat(wt):                         # (C_out, C_in, 3,3,3) -> (C_out, 27*Cp)
        wt = jnp.transpose(wt, (0, 2, 3, 4, 1))          # tap-major, ci minor
        wt = jnp.pad(wt, ((0, 0), (0, 0), (0, 0), (0, 0), (0, cp - c_in)))
        return wt.reshape(c_out, k)

    w_all = jnp.concatenate(
        [to_mat(w_lo), to_mat(w_pr), to_mat(w_hi)], axis=0).astype(jnp.bfloat16)
    b_all = jnp.concatenate([b_lo, b_pr, b_hi], axis=0).reshape(c3, 1)
    b_all = b_all.astype(jnp.float32)

    # ---- VMEM budget derived from the actual buffers (not hard-coded) -------------
    bytes_x = cp * l_flat * 2
    bytes_o = c3 * n_cols * 4
    bytes_p = k * n_cols * 2
    bytes_w = c3 * k * 2 + c3 * 4
    needed = 2 * (bytes_x + bytes_o + bytes_w) + bytes_p + (1 << 20)
    try:
        cap = getattr(pltpu.get_tpu_info(), "vmem_capacity_bytes", 64 << 20)
    except Exception:  # pragma: no cover - conservative fallback
        cap = 64 << 20
    vmem_limit = int(min(max(2 * needed, 4 << 20), int(0.45 * cap)))

    kernel = functools.partial(_quantile_conv3d_kernel, w_pad=wp, plane=plane)

    out = pl.pallas_call(
        kernel,
        out_shape=jax.ShapeDtypeStruct((n, c3, n_cols), jnp.float32),
        grid_spec=pltpu.PrefetchScalarGridSpec(
            num_scalar_prefetch=0,
            grid=(n,),
            in_specs=[
                pl.BlockSpec((1, cp, l_flat), lambda i: (i, 0, 0)),
                pl.BlockSpec((c3, k), lambda i: (0, 0)),
                pl.BlockSpec((c3, 1), lambda i: (0, 0)),
            ],
            out_specs=pl.BlockSpec((1, c3, n_cols), lambda i: (i, 0, 0)),
            scratch_shapes=[pltpu.VMEM((k, n_cols), jnp.bfloat16)],
        ),
        compiler_params=pltpu.CompilerParams(
            dimension_semantics=("parallel",),
            vmem_limit_bytes=vmem_limit,
        ),
    )(xp, w_all, b_all)

    # ---- glue: strip padded H/W positions, restore the PyTorch output layout ------
    out = out[:, :, :d * plane].reshape(n, c3, d, hp, wp)[:, :, :, :h, :w]
    return out.reshape(n, 3, c_out, d, h, w)       # (N, 3, C_out, D, H, W)


quantile_regression_layer = jax.jit(_quantile_regression_impl)


def _reference(x, wt, b):
    y = jax.lax.conv_general_dilated(
        x, wt, window_strides=(1, 1, 1),
        padding=((1, 1), (1, 1), (1, 1)),
        dimension_numbers=("NCDHW", "OIDHW", "NCDHW"),
        precision=jax.lax.Precision.HIGHEST)
    return y + b[None, :, None, None, None]


if __name__ == "__main__":
    # Small shapes consistent with the module (NCDHW input to three Conv3d layers).
    N, C_mid, C_out, D, H, W = 2, 4, 2, 8, 16, 16
    key = jax.random.PRNGKey(0)
    kx, k1, k2, k3, k4, k5, k6 = jax.random.split(key, 7)

    x = jax.random.normal(kx, (N, C_mid, D, H, W), dtype=jnp.float32)

    # PyTorch-style init: U(-1/sqrt(fan_in), 1/sqrt(fan_in)), fan_in = C_mid*27.
    bound = (C_mid * 27) ** -0.5
    wshape = (C_out, C_mid, 3, 3, 3)
    w_lo = jax.random.uniform(k1, wshape, jnp.float32, -bound, bound)
    b_lo = jax.random.uniform(k2, (C_out,), jnp.float32, -bound, bound)
    w_pr = jax.random.uniform(k3, wshape, jnp.float32, -bound, bound)
    b_pr = jax.random.uniform(k4, (C_out,), jnp.float32, -bound, bound)
    w_hi = jax.random.uniform(k5, wshape, jnp.float32, -bound, bound)
    b_hi = jax.random.uniform(k6, (C_out,), jnp.float32, -bound, bound)

    out = quantile_regression_layer(x, w_lo, b_lo, w_pr, b_pr, w_hi, b_hi)
    out = jax.block_until_ready(out)
    assert out.shape == (N, 3, C_out, D, H, W), out.shape

    # Check against XLA's 3D convolution (lower / prediction / upper stacked on dim 1).
    # bf16 MXU operands vs an f32 HIGHEST reference -> ~1e-2-level error is expected
    # and intended (same as DEFAULT-precision f32 matmul on TPU).
    ref = jnp.stack([_reference(x, w_lo, b_lo),
                     _reference(x, w_pr, b_pr),
                     _reference(x, w_hi, b_hi)], axis=1)
    max_err = float(jnp.max(jnp.abs(out - ref)))
    assert jnp.allclose(out, ref, atol=3e-2, rtol=3e-2), max_err

    print("KERNEL_OK")
</pallas_src>

<mosaic_0001>
module attributes {stable_mosaic.version = 11 : i64} {
  func.func @_quantile_conv3d_kernel(%arg0: i32, %arg1: memref<1x8x3456xbf16, #tpu.memory_space<vmem>>, %arg2: memref<6x216xbf16, #tpu.memory_space<vmem>>, %arg3: memref<6x1xf32, #tpu.memory_space<vmem>>, %arg4: memref<1x6x2688xf32, #tpu.memory_space<vmem>>, %arg5: memref<216x2688xbf16, #tpu.memory_space<vmem>>) attributes {dimension_semantics = [#tpu.dimension_semantics<parallel>], iteration_bounds = array<i64: 2>, scalar_prefetch = 0 : i64, scratch_operands = 1 : i64, tpu.core_type = #tpu.core_type<tc>, window_params = [{transform_indices = @transform_0, window_bounds = array<i64: 1, 8, 3456>}, {pipeline_mode = #tpu.pipeline_mode<synchronous>, transform_indices = @transform_1, window_bounds = array<i64: 6, 216>}, {pipeline_mode = #tpu.pipeline_mode<synchronous>, transform_indices = @transform_2, window_bounds = array<i64: 6, 1>}, {transform_indices = @transform_3, window_bounds = array<i64: 1, 6, 2688>}]} {
    %c0 = arith.constant 0 : index
    %c0_0 = arith.constant 0 : index
    %c0_1 = arith.constant 0 : index
    %0 = vector.load %arg1[%c0, %c0_0, %c0_1] : memref<1x8x3456xbf16, #tpu.memory_space<vmem>>, vector<1x8x2688xbf16>
    %1 = vector.shape_cast %0 : vector<1x8x2688xbf16> to vector<8x2688xbf16>
    %c0_2 = arith.constant 0 : index
    %c0_3 = arith.constant 0 : index
    %2 = vector.load %arg5[%c0_2, %c0_3] : memref<216x2688xbf16, #tpu.memory_space<vmem>>, vector<8x2688xbf16>
    tpu.vector_store %arg5[%c0_2, %c0_3], %1 {strides = array<i32>} : memref<216x2688xbf16, #tpu.memory_space<vmem>>, vector<8x2688xbf16>,
    %c0_4 = arith.constant 0 : index
    %c0_5 = arith.constant 0 : index
    %c1 = arith.constant 1 : index
    %3 = vector.load %arg1[%c0_4, %c0_5, %c1] : memref<1x8x3456xbf16, #tpu.memory_space<vmem>>, vector<1x8x2688xbf16>
    %4 = vector.shape_cast %3 : vector<1x8x2688xbf16> to vector<8x2688xbf16>
    %c8 = arith.constant 8 : index
    %c0_6 = arith.constant 0 : index
    %5 = vector.load %arg5[%c8, %c0_6] : memref<216x2688xbf16, #tpu.memory_space<vmem>>, vector<8x2688xbf16>
    tpu.vector_store %arg5[%c8, %c0_6], %4 {strides = array<i32>} : memref<216x2688xbf16, #tpu.memory_space<vmem>>, vector<8x2688xbf16>,
    %c0_7 = arith.constant 0 : index
    %c0_8 = arith.constant 0 : index
    %c2 = arith.constant 2 : index
    %6 = vector.load %arg1[%c0_7, %c0_8, %c2] : memref<1x8x3456xbf16, #tpu.memory_space<vmem>>, vector<1x8x2688xbf16>
    %7 = vector.shape_cast %6 : vector<1x8x2688xbf16> to vector<8x2688xbf16>
    %c16 = arith.constant 16 : index
    %c0_9 = arith.constant 0 : index
    %8 = vector.load %arg5[%c16, %c0_9] : memref<216x2688xbf16, #tpu.memory_space<vmem>>, vector<8x2688xbf16>
    tpu.vector_store %arg5[%c16, %c0_9], %7 {strides = array<i32>} : memref<216x2688xbf16, #tpu.memory_space<vmem>>, vector<8x2688xbf16>,
    %c0_10 = arith.constant 0 : index
    %c0_11 = arith.constant 0 : index
    %c18 = arith.constant 18 : index
    %9 = vector.load %arg1[%c0_10, %c0_11, %c18] : memref<1x8x3456xbf16, #tpu.memory_space<vmem>>, vector<1x8x2688xbf16>
    %10 = vector.shape_cast %9 : vector<1x8x2688xbf16> to vector<8x2688xbf16>
    %c24 = arith.constant 24 : index
    %c0_12 = arith.constant 0 : index
    %11 = vector.load %arg5[%c24, %c0_12] : memref<216x2688xbf16, #tpu.memory_space<vmem>>, vector<8x2688xbf16>
    tpu.vector_store %arg5[%c24, %c0_12], %10 {strides = array<i32>} : memref<216x2688xbf16, #tpu.memory_space<vmem>>, vector<8x2688xbf16>,
    %c0_13 = arith.constant 0 : index
    %c0_14 = arith.constant 0 : index
    %c19 = arith.constant 19 : index
    %12 = vector.load %arg1[%c0_13, %c0_14, %c19] : memref<1x8x3456xbf16, #tpu.memory_space<vmem>>, vector<1x8x2688xbf16>
    %13 = vector.shape_cast %12 : vector<1x8x2688xbf16> to vector<8x2688xbf16>
    %c32 = arith.constant 32 : index
    %c0_15 = arith.constant 0 : index
    %14 = vector.load %arg5[%c32, %c0_15] : memref<216x2688xbf16, #tpu.memory_space<vmem>>, vector<8x2688xbf16>
    tpu.vector_store %arg5[%c32, %c0_15], %13 {strides = array<i32>} : memref<216x2688xbf16, #tpu.memory_space<vmem>>, vector<8x2688xbf16>,
    %c0_16 = arith.constant 0 : index
    %c0_17 = arith.constant 0 : index
    %c20 = arith.constant 20 : index
    %15 = vector.load %arg1[%c0_16, %c0_17, %c20] : memref<1x8x3456xbf16, #tpu.memory_space<vmem>>, vector<1x8x2688xbf16>
    %16 = vector.shape_cast %15 : vector<1x8x2688xbf16> to vector<8x2688xbf16>
    %c40 = arith.constant 40 : index
    %c0_18 = arith.constant 0 : index
    %17 = vector.load %arg5[%c40, %c0_18] : memref<216x2688xbf16, #tpu.memory_space<vmem>>, vector<8x2688xbf16>
    tpu.vector_store %arg5[%c40, %c0_18], %16 {strides = array<i32>} : memref<216x2688xbf16, #tpu.memory_space<vmem>>, vector<8x2688xbf16>,
    %c0_19 = arith.constant 0 : index
    %c0_20 = arith.constant 0 : index
    %c36 = arith.constant 36 : index
    %18 = vector.load %arg1[%c0_19, %c0_20, %c36] : memref<1x8x3456xbf16, #tpu.memory_space<vmem>>, vector<1x8x2688xbf16>
    %19 = vector.shape_cast %18 : vector<1x8x2688xbf16> to vector<8x2688xbf16>
    %c48 = arith.constant 48 : index
    %c0_21 = arith.constant 0 : index
    %20 = vector.load %arg5[%c48, %c0_21] : memref<216x2688xbf16, #tpu.memory_space<vmem>>, vector<8x2688xbf16>
    tpu.vector_store %arg5[%c48, %c0_21], %19 {strides = array<i32>} : memref<216x2688xbf16, #tpu.memory_space<vmem>>, vector<8x2688xbf16>,
    %c0_22 = arith.constant 0 : index
    %c0_23 = arith.constant 0 : index
    %c37 = arith.constant 37 : index
    %21 = vector.load %arg1[%c0_22, %c0_23, %c37] : memref<1x8x3456xbf16, #tpu.memory_space<vmem>>, vector<1x8x2688xbf16>
    %22 = vector.shape_cast %21 : vector<1x8x2688xbf16> to vector<8x2688xbf16>
    %c56 = arith.constant 56 : index
    %c0_24 = arith.constant 0 : index
    %23 = vector.load %arg5[%c56, %c0_24] : memref<216x2688xbf16, #tpu.memory_space<vmem>>, vector<8x2688xbf16>
    tpu.vector_store %arg5[%c56, %c0_24], %22 {strides = array<i32>} : memref<216x2688xbf16, #tpu.memory_space<vmem>>, vector<8x2688xbf16>,
    %c0_25 = arith.constant 0 : index
    %c0_26 = arith.constant 0 : index
    %c38 = arith.constant 38 : index
    %24 = vector.load %arg1[%c0_25, %c0_26, %c38] : memref<1x8x3456xbf16, #tpu.memory_space<vmem>>, vector<1x8x2688xbf16>
    %25 = vector.shape_cast %24 : vector<1x8x2688xbf16> to vector<8x2688xbf16>
    %c64 = arith.constant 64 : index
    %c0_27 = arith.constant 0 : index
    %26 = vector.load %arg5[%c64, %c0_27] : memref<216x2688xbf16, #tpu.memory_space<vmem>>, vector<8x2688xbf16>
    tpu.vector_store %arg5[%c64, %c0_27], %25 {strides = array<i32>} : memref<216x2688xbf16, #tpu.memory_space<vmem>>, vector<8x2688xbf16>,
    %c0_28 = arith.constant 0 : index
    %c0_29 = arith.constant 0 : index
    %c324 = arith.constant 324 : index
    %27 = vector.load %arg1[%c0_28, %c0_29, %c324] : memref<1x8x3456xbf16, #tpu.memory_space<vmem>>, vector<1x8x2688xbf16>
    %28 = vector.shape_cast %27 : vector<1x8x2688xbf16> to vector<8x2688xbf16>
    %c72 = arith.constant 72 : index
    %c0_30 = arith.constant 0 : index
    %29 = vector.load %arg5[%c72, %c0_30] : memref<216x2688xbf16, #tpu.memory_space<vmem>>, vector<8x2688xbf16>
    tpu.vector_store %arg5[%c72, %c0_30], %28 {strides = array<i32>} : memref<216x2688xbf16, #tpu.memory_space<vmem>>, vector<8x2688xbf16>,
    %c0_31 = arith.constant 0 : index
    %c0_32 = arith.constant 0 : index
    %c325 = arith.constant 325 : index
    %30 = vector.load %arg1[%c0_31, %c0_32, %c325] : memref<1x8x3456xbf16, #tpu.memory_space<vmem>>, vector<1x8x2688xbf16>
    %31 = vector.shape_cast %30 : vector<1x8x2688xbf16> to vector<8x2688xbf16>
    %c80 = arith.constant 80 : index
    %c0_33 = arith.constant 0 : index
    %32 = vector.load %arg5[%c80, %c0_33] : memref<216x2688xbf16, #tpu.memory_space<vmem>>, vector<8x2688xbf16>
    tpu.vector_store %arg5[%c80, %c0_33], %31 {strides = array<i32>} : memref<216x2688xbf16, #tpu.memory_space<vmem>>, vector<8x2688xbf16>,
    %c0_34 = arith.constant 0 : index
    %c0_35 = arith.constant 0 : index
    %c326 = arith.constant 326 : index
    %33 = vector.load %arg1[%c0_34, %c0_35, %c326] : memref<1x8x3456xbf16, #tpu.memory_space<vmem>>, vector<1x8x2688xbf16>
    %34 = vector.shape_cast %33 : vector<1x8x2688xbf16> to vector<8x2688xbf16>
    %c88 = arith.constant 88 : index
    %c0_36 = arith.constant 0 : index
    %35 = vector.load %arg5[%c88, %c0_36] : memref<216x2688xbf16, #tpu.memory_space<vmem>>, vector<8x2688xbf16>
    tpu.vector_store %arg5[%c88, %c0_36], %34 {strides = array<i32>} : memref<216x2688xbf16, #tpu.memory_space<vmem>>, vector<8x2688xbf16>,
    %c0_37 = arith.constant 0 : index
    %c0_38 = arith.constant 0 : index
    %c342 = arith.constant 342 : index
    %36 = vector.load %arg1[%c0_37, %c0_38, %c342] : memref<1x8x3456xbf16, #tpu.memory_space<vmem>>, vector<1x8x2688xbf16>
    %37 = vector.shape_cast %36 : vector<1x8x2688xbf16> to vector<8x2688xbf16>
    %c96 = arith.constant 96 : index
    %c0_39 = arith.constant 0 : index
    %38 = vector.load %arg5[%c96, %c0_39] : memref<216x2688xbf16, #tpu.memory_space<vmem>>, vector<8x2688xbf16>
    tpu.vector_store %arg5[%c96, %c0_39], %37 {strides = array<i32>} : memref<216x2688xbf16, #tpu.memory_space<vmem>>, vector<8x2688xbf16>,
    %c0_40 = arith.constant 0 : index
    %c0_41 = arith.constant 0 : index
    %c343 = arith.constant 343 : index
    %39 = vector.load %arg1[%c0_40, %c0_41, %c343] : memref<1x8x3456xbf16, #tpu.memory_space<vmem>>, vector<1x8x2688xbf16>
    %40 = vector.shape_cast %39 : vector<1x8x2688xbf16> to vector<8x2688xbf16>
    %c104 = arith.constant 104 : index
    %c0_42 = arith.constant 0 : index
    %41 = vector.load %arg5[%c104, %c0_42] : memref<216x2688xbf16, #tpu.memory_space<vmem>>, vector<8x2688xbf16>
    tpu.vector_store %arg5[%c104, %c0_42], %40 {strides = array<i32>} : memref<216x2688xbf16, #tpu.memory_space<vmem>>, vector<8x2688xbf16>,
    %c0_43 = arith.constant 0 : index
    %c0_44 = arith.constant 0 : index
    %c344 = arith.constant 344 : index
    %42 = vector.load %arg1[%c0_43, %c0_44, %c344] : memref<1x8x3456xbf16, #tpu.memory_space<vmem>>, vector<1x8x2688xbf16>
    %43 = vector.shape_cast %42 : vector<1x8x2688xbf16> to vector<8x2688xbf16>
    %c112 = arith.constant 112 : index
    %c0_45 = arith.constant 0 : index
    %44 = vector.load %arg5[%c112, %c0_45] : memref<216x2688xbf16, #tpu.memory_space<vmem>>, vector<8x2688xbf16>
    tpu.vector_store %arg5[%c112, %c0_45], %43 {strides = array<i32>} : memref<216x2688xbf16, #tpu.memory_space<vmem>>, vector<8x2688xbf16>,
    %c0_46 = arith.constant 0 : index
    %c0_47 = arith.constant 0 : index
    %c360 = arith.constant 360 : index
    %45 = vector.load %arg1[%c0_46, %c0_47, %c360] : memref<1x8x3456xbf16, #tpu.memory_space<vmem>>, vector<1x8x2688xbf16>
    %46 = vector.shape_cast %45 : vector<1x8x2688xbf16> to vector<8x2688xbf16>
    %c120 = arith.constant 120 : index
    %c0_48 = arith.constant 0 : index
    %47 = vector.load %arg5[%c120, %c0_48] : memref<216x2688xbf16, #tpu.memory_space<vmem>>, vector<8x2688xbf16>
    tpu.vector_store %arg5[%c120, %c0_48], %46 {strides = array<i32>} : memref<216x2688xbf16, #tpu.memory_space<vmem>>, vector<8x2688xbf16>,
    %c0_49 = arith.constant 0 : index
    %c0_50 = arith.constant 0 : index
    %c361 = arith.constant 361 : index
    %48 = vector.load %arg1[%c0_49, %c0_50, %c361] : memref<1x8x3456xbf16, #tpu.memory_space<vmem>>, vector<1x8x2688xbf16>
    %49 = vector.shape_cast %48 : vector<1x8x2688xbf16> to vector<8x2688xbf16>
    %c128 = arith.constant 128 : index
    %c0_51 = arith.constant 0 : index
    %50 = vector.load %arg5[%c128, %c0_51] : memref<216x2688xbf16, #tpu.memory_space<vmem>>, vector<8x2688xbf16>
    tpu.vector_store %arg5[%c128, %c0_51], %49 {strides = array<i32>} : memref<216x2688xbf16, #tpu.memory_space<vmem>>, vector<8x2688xbf16>,
    %c0_52 = arith.constant 0 : index
    %c0_53 = arith.constant 0 : index
    %c362 = arith.constant 362 : index
    %51 = vector.load %arg1[%c0_52, %c0_53, %c362] : memref<1x8x3456xbf16, #tpu.memory_space<vmem>>, vector<1x8x2688xbf16>
    %52 = vector.shape_cast %51 : vector<1x8x2688xbf16> to vector<8x2688xbf16>
    %c136 = arith.constant 136 : index
    %c0_54 = arith.constant 0 : index
    %53 = vector.load %arg5[%c136, %c0_54] : memref<216x2688xbf16, #tpu.memory_space<vmem>>, vector<8x2688xbf16>
    tpu.vector_store %arg5[%c136, %c0_54], %52 {strides = array<i32>} : memref<216x2688xbf16, #tpu.memory_space<vmem>>, vector<8x2688xbf16>,
    %c0_55 = arith.constant 0 : index
    %c0_56 = arith.constant 0 : index
    %c648 = arith.constant 648 : index
    %54 = vector.load %arg1[%c0_55, %c0_56, %c648] : memref<1x8x3456xbf16, #tpu.memory_space<vmem>>, vector<1x8x2688xbf16>
    %55 = vector.shape_cast %54 : vector<1x8x2688xbf16> to vector<8x2688xbf16>
    %c144 = arith.constant 144 : index
    %c0_57 = arith.constant 0 : index
    %56 = vector.load %arg5[%c144, %c0_57] : memref<216x2688xbf16, #tpu.memory_space<vmem>>, vector<8x2688xbf16>
    tpu.vector_store %arg5[%c144, %c0_57], %55 {strides = array<i32>} : memref<216x2688xbf16, #tpu.memory_space<vmem>>, vector<8x2688xbf16>,
    %c0_58 = arith.constant 0 : index
    %c0_59 = arith.constant 0 : index
    %c649 = arith.constant 649 : index
    %57 = vector.load %arg1[%c0_58, %c0_59, %c649] : memref<1x8x3456xbf16, #tpu.memory_space<vmem>>, vector<1x8x2688xbf16>
    %58 = vector.shape_cast %57 : vector<1x8x2688xbf16> to vector<8x2688xbf16>
    %c152 = arith.constant 152 : index
    %c0_60 = arith.constant 0 : index
    %59 = vector.load %arg5[%c152, %c0_60] : memref<216x2688xbf16, #tpu.memory_space<vmem>>, vector<8x2688xbf16>
    tpu.vector_store %arg5[%c152, %c0_60], %58 {strides = array<i32>} : memref<216x2688xbf16, #tpu.memory_space<vmem>>, vector<8x2688xbf16>,
    %c0_61 = arith.constant 0 : index
    %c0_62 = arith.constant 0 : index
    %c650 = arith.constant 650 : index
    %60 = vector.load %arg1[%c0_61, %c0_62, %c650] : memref<1x8x3456xbf16, #tpu.memory_space<vmem>>, vector<1x8x2688xbf16>
    %61 = vector.shape_cast %60 : vector<1x8x2688xbf16> to vector<8x2688xbf16>
    %c160 = arith.constant 160 : index
    %c0_63 = arith.constant 0 : index
    %62 = vector.load %arg5[%c160, %c0_63] : memref<216x2688xbf16, #tpu.memory_space<vmem>>, vector<8x2688xbf16>
    tpu.vector_store %arg5[%c160, %c0_63], %61 {strides = array<i32>} : memref<216x2688xbf16, #tpu.memory_space<vmem>>, vector<8x2688xbf16>,
    %c0_64 = arith.constant 0 : index
    %c0_65 = arith.constant 0 : index
    %c666 = arith.constant 666 : index
    %63 = vector.load %arg1[%c0_64, %c0_65, %c666] : memref<1x8x3456xbf16, #tpu.memory_space<vmem>>, vector<1x8x2688xbf16>
    %64 = vector.shape_cast %63 : vector<1x8x2688xbf16> to vector<8x2688xbf16>
    %c168 = arith.constant 168 : index
    %c0_66 = arith.constant 0 : index
    %65 = vector.load %arg5[%c168, %c0_66] : memref<216x2688xbf16, #tpu.memory_space<vmem>>, vector<8x2688xbf16>
    tpu.vector_store %arg5[%c168, %c0_66], %64 {strides = array<i32>} : memref<216x2688xbf16, #tpu.memory_space<vmem>>, vector<8x2688xbf16>,
    %c0_67 = arith.constant 0 : index
    %c0_68 = arith.constant 0 : index
    %c667 = arith.constant 667 : index
    %66 = vector.load %arg1[%c0_67, %c0_68, %c667] : memref<1x8x3456xbf16, #tpu.memory_space<vmem>>, vector<1x8x2688xbf16>
    %67 = vector.shape_cast %66 : vector<1x8x2688xbf16> to vector<8x2688xbf16>
    %c176 = arith.constant 176 : index
    %c0_69 = arith.constant 0 : index
    %68 = vector.load %arg5[%c176, %c0_69] : memref<216x2688xbf16, #tpu.memory_space<vmem>>, vector<8x2688xbf16>
    tpu.vector_store %arg5[%c176, %c0_69], %67 {strides = array<i32>} : memref<216x2688xbf16, #tpu.memory_space<vmem>>, vector<8x2688xbf16>,
    %c0_70 = arith.constant 0 : index
    %c0_71 = arith.constant 0 : index
    %c668 = arith.constant 668 : index
    %69 = vector.load %arg1[%c0_70, %c0_71, %c668] : memref<1x8x3456xbf16, #tpu.memory_space<vmem>>, vector<1x8x2688xbf16>
    %70 = vector.shape_cast %69 : vector<1x8x2688xbf16> to vector<8x2688xbf16>
    %c184 = arith.constant 184 : index
    %c0_72 = arith.constant 0 : index
    %71 = vector.load %arg5[%c184, %c0_72] : memref<216x2688xbf16, #tpu.memory_space<vmem>>, vector<8x2688xbf16>
    tpu.vector_store %arg5[%c184, %c0_72], %70 {strides = array<i32>} : memref<216x2688xbf16, #tpu.memory_space<vmem>>, vector<8x2688xbf16>,
    %c0_73 = arith.constant 0 : index
    %c0_74 = arith.constant 0 : index
    %c684 = arith.constant 684 : index
    %72 = vector.load %arg1[%c0_73, %c0_74, %c684] : memref<1x8x3456xbf16, #tpu.memory_space<vmem>>, vector<1x8x2688xbf16>
    %73 = vector.shape_cast %72 : vector<1x8x2688xbf16> to vector<8x2688xbf16>
    %c192 = arith.constant 192 : index
    %c0_75 = arith.constant 0 : index
    %74 = vector.load %arg5[%c192, %c0_75] : memref<216x2688xbf16, #tpu.memory_space<vmem>>, vector<8x2688xbf16>
    tpu.vector_store %arg5[%c192, %c0_75], %73 {strides = array<i32>} : memref<216x2688xbf16, #tpu.memory_space<vmem>>, vector<8x2688xbf16>,
    %c0_76 = arith.constant 0 : index
    %c0_77 = arith.constant 0 : index
    %c685 = arith.constant 685 : index
    %75 = vector.load %arg1[%c0_76, %c0_77, %c685] : memref<1x8x3456xbf16, #tpu.memory_space<vmem>>, vector<1x8x2688xbf16>
    %76 = vector.shape_cast %75 : vector<1x8x2688xbf16> to vector<8x2688xbf16>
    %c200 = arith.constant 200 : index
    %c0_78 = arith.constant 0 : index
    %77 = vector.load %arg5[%c200, %c0_78] : memref<216x2688xbf16, #tpu.memory_space<vmem>>, vector<8x2688xbf16>
    tpu.vector_store %arg5[%c200, %c0_78], %76 {strides = array<i32>} : memref<216x2688xbf16, #tpu.memory_space<vmem>>, vector<8x2688xbf16>,
    %c0_79 = arith.constant 0 : index
    %c0_80 = arith.constant 0 : index
    %c686 = arith.constant 686 : index
    %78 = vector.load %arg1[%c0_79, %c0_80, %c686] : memref<1x8x3456xbf16, #tpu.memory_space<vmem>>, vector<1x8x2688xbf16>
    %79 = vector.shape_cast %78 : vector<1x8x2688xbf16> to vector<8x2688xbf16>
    %c208 = arith.constant 208 : index
    %c0_81 = arith.constant 0 : index
    %80 = vector.load %arg5[%c208, %c0_81] : memref<216x2688xbf16, #tpu.memory_space<vmem>>, vector<8x2688xbf16>
    tpu.vector_store %arg5[%c208, %c0_81], %79 {strides = array<i32>} : memref<216x2688xbf16, #tpu.memory_space<vmem>>, vector<8x2688xbf16>,
    %c0_82 = arith.constant 0 : index
    %c0_83 = arith.constant 0 : index
    %81 = vector.load %arg2[%c0_82, %c0_83] : memref<6x216xbf16, #tpu.memory_space<vmem>>, vector<6x216xbf16>
    %c0_84 = arith.constant 0 : index
    %c0_85 = arith.constant 0 : index
    %82 = vector.load %arg5[%c0_84, %c0_85] : memref<216x2688xbf16, #tpu.memory_space<vmem>>, vector<216x2688xbf16>
    %cst = arith.constant dense<0.000000e+00> : vector<6x2688xf32>
    %83 = tpu.matmul %81, %82, %cst {dimension_numbers = #tpu.dot_dimension_numbers<[1], [0], [0], [1], [0, 0, 1, 1], [], []>} : vector<6x216xbf16>, vector<216x2688xbf16>, vector<6x2688xf32> -> vector<6x2688xf32>
    %c0_86 = arith.constant 0 : index
    %c0_87 = arith.constant 0 : index
    %84 = vector.load %arg3[%c0_86, %c0_87] : memref<6x1xf32, #tpu.memory_space<vmem>>, vector<6x1xf32>
    %85 = vector.broadcast %84 : vector<6x1xf32> to vector<6x2688xf32>
    %86 = arith.addf %83, %85 : vector<6x2688xf32>
    %c0_88 = arith.constant 0 : index
    %c0_89 = arith.constant 0 : index
    %c0_90 = arith.constant 0 : index
    %87 = vector.load %arg4[%c0_88, %c0_89, %c0_90] : memref<1x6x2688xf32, #tpu.memory_space<vmem>>, vector<1x6x2688xf32>
    %88 = vector.shape_cast %87 : vector<1x6x2688xf32> to vector<6x2688xf32>
    %89 = vector.shape_cast %86 : vector<6x2688xf32> to vector<1x6x2688xf32>
    tpu.vector_store %arg4[%c0_88, %c0_89, %c0_90], %89 {strides = array<i32>} : memref<1x6x2688xf32, #tpu.memory_space<vmem>>, vector<1x6x2688xf32>,
    return
  }
  func.func @transform_0(%arg0: i32) -> (i32, i32, i32) {
    %c0_i32 = arith.constant 0 : i32
    %c0_i32_0 = arith.constant 0 : i32
    %c0_i32_1 = arith.constant 0 : i32
    return %arg0, %c0_i32, %c0_i32_0 : i32, i32, i32
  }
  func.func @transform_1(%arg0: i32) -> (i32, i32) {
    %c0_i32 = arith.constant 0 : i32
    %c0_i32_0 = arith.constant 0 : i32
    %c0_i32_1 = arith.constant 0 : i32
    return %c0_i32, %c0_i32_0 : i32, i32
  }
  func.func @transform_2(%arg0: i32) -> (i32, i32) {
    %c0_i32 = arith.constant 0 : i32
    %c0_i32_0 = arith.constant 0 : i32
    %c0_i32_1 = arith.constant 0 : i32
    return %c0_i32, %c0_i32_0 : i32, i32
  }
  func.func @transform_3(%arg0: i32) -> (i32, i32, i32) {
    %c0_i32 = arith.constant 0 : i32
    %c0_i32_0 = arith.constant 0 : i32
    %c0_i32_1 = arith.constant 0 : i32
    return %arg0, %c0_i32, %c0_i32_0 : i32, i32, i32
  }
}

</mosaic_0001>

<llo_original>
// kernel: _quantile_regression_impl.1
$region0: #{_quantile_regression_impl.1}
  #allocation0 [shape = 'u32[]', space=smem, size = 0x4, offset = 0x4, fixed_abs, tag = 'smem constant byte address 0x4 - core index']
  #allocation1 [shape = 'u32[144,128]{1,0:T(1,128)}', space=vmem, size = 0x12000, scoped, tag = 'internal scratch']
  #allocation2 [shape = 'bf16[216,2688]{1,0:T(8,128)(2,1)}', space=vmem, size = 0x11b800, scoped, tag = 'scratch operand']
  %s0 = inlined_call_operand.vmem [shape: bf16[2,8,3456], index: 0, kind: input, shape index: {}]
  %s1 = inlined_call_operand.vmem [shape: bf16[6,216], index: 1, kind: input, shape index: {}]
  %s2 = inlined_call_operand.vmem [shape: f32[6,1], index: 2, kind: input, shape index: {}]
  %s3 = inlined_call_operand.vmem [shape: f32[2,6,2688], index: 3, kind: output, shape index: {}]
  %s4 = sld [smem:[#allocation0]]
  $region45: #{_quantile_regression_impl.1} parent=0
    _
  %s6 = ssub.s32 1, %s4
  %s7 = scalar_select 0, %s6, %s4
  loop: start=0, step=1, limit=4
  $region2: #{_quantile_regression_impl.1} parent=0 // loop_pre_header
    _
  $region3: #{_quantile_regression_impl.1} parent=0 // loop_header
    %s9 = sphi 0, %s13
    %p10 = scmp.ge.s32.totalorder %s9, 4
    %s19 = sphi 0, %s21
    %s22 = sphi 0, %s19
    %s23 = sphi 0, %s22
    %s39 = sphi 0, %s23
    %s43 = sphi 0, %s43
    %s45 = sphi 0, %s43
    %s46 = sphi 0, %s45
    %s60 = sphi 0, %s46
    %s64 = sphi 0, %s64
    %s66 = sphi 0, %s64
    %s67 = sphi 0, %s66
    %s81 = sphi 0, %s67
    %s87 = sphi 0, %s89
    %s90 = sphi 0, %s87
    %s91 = sphi 0, %s90
    %s107 = sphi 0, %s91
  $region4: #{_quantile_regression_impl.1} parent=0 // loop_header_branch
    %12 = sbr.rel (%p10) target = $region8
  $region5: #{_quantile_regression_impl.1} parent=0 // loop_body
    %s14 = ssub.s32 %s9, 1
    %s15 = ssub.s32 %s9, 2
    %s16 = sadd.s32 %s9, 1
    %s17 = ssub.s32 %s9, %s16
    %p18 = scmp.eq.s32.totalorder %s17, 0
    %s20 = sadd.s32 %s19, 1
    %s21 = scalar_select %p18, %s19, %s20
    %p24 = pneg %p18
    %p25 = scmp.eq.s32.totalorder %s9, 1
    %p26 = por %p24, %p25
    %p27 = scmp.ne.s32.totalorder %s19, %s22
    %p28 = scmp.eq.s32.totalorder %s9, 0
    %p29 = por %p27, %p28
    %p30 = scmp.ne.s32.totalorder %s19, %s22
    %p31 = scmp.eq.s32.totalorder %s14, 1
    %p32 = por %p30, %p31
    %p33 = scmp.ne.s32.totalorder %s22, %s23
    %p34 = scmp.eq.s32.totalorder %s14, 0
    %p35 = por %p33, %p34
    %p36 = scmp.ne.s32.totalorder %s22, %s23
    %p37 = scmp.eq.s32.totalorder %s15, 1
    %p38 = por %p36, %p37
    %p40 = scmp.ne.s32.totalorder %s23, %s39
    %p41 = scmp.eq.s32.totalorder %s15, 0
    %p42 = por %p40, %p41
    %s44 = sadd.s32 %s43, 1
    %p47 = scmp.eq.s32.totalorder %s9, 1
    %p48 = scmp.ne.s32.totalorder %s43, %s45
    %p49 = scmp.eq.s32.totalorder %s9, 0
    %p50 = por %p48, %p49
    %p51 = scmp.ne.s32.totalorder %s43, %s45
    %p52 = scmp.eq.s32.totalorder %s14, 1
    %p53 = por %p51, %p52
    %p54 = scmp.ne.s32.totalorder %s45, %s46
    %p55 = scmp.eq.s32.totalorder %s14, 0
    %p56 = por %p54, %p55
    %p57 = scmp.ne.s32.totalorder %s45, %s46
    %p58 = scmp.eq.s32.totalorder %s15, 1
    %p59 = por %p57, %p58
    %p61 = scmp.ne.s32.totalorder %s46, %s60
    %p62 = scmp.eq.s32.totalorder %s15, 0
    %p63 = por %p61, %p62
    %s65 = sadd.s32 %s64, 1
    %p68 = scmp.eq.s32.totalorder %s9, 1
    %p69 = scmp.ne.s32.totalorder %s64, %s66
    %p70 = scmp.eq.s32.totalorder %s9, 0
    %p71 = por %p69, %p70
    %p72 = scmp.ne.s32.totalorder %s64, %s66
    %p73 = scmp.eq.s32.totalorder %s14, 1
    %p74 = por %p72, %p73
    %p75 = scmp.ne.s32.totalorder %s66, %s67
    %p76 = scmp.eq.s32.totalorder %s14, 0
    %p77 = por %p75, %p76
    %p78 = scmp.ne.s32.totalorder %s66, %s67
    %p79 = scmp.eq.s32.totalorder %s15, 1
    %p80 = por %p78, %p79
    %p82 = scmp.ne.s32.totalorder %s67, %s81
    %p83 = scmp.eq.s32.totalorder %s15, 0
    %p84 = por %p82, %p83
    %s85 = ssub.s32 %s9, %s16
    %p86 = scmp.eq.s32.totalorder %s85, 0
    %s88 = sadd.s32 %s87, 1
    %s89 = scalar_select %p86, %s87, %s88
    %p92 = pneg %p86
    %p93 = scmp.eq.s32.totalorder %s9, 1
    %p94 = por %p92, %p93
    %p95 = scmp.ne.s32.totalorder %s87, %s90
    %p96 = scmp.eq.s32.totalorder %s9, 0
    %p97 = por %p95, %p96
    %p98 = scmp.ne.s32.totalorder %s87, %s90
    %p99 = scmp.eq.s32.totalorder %s14, 1
    %p100 = por %p98, %p99
    %p101 = scmp.ne.s32.totalorder %s90, %s91
    %p102 = scmp.eq.s32.totalorder %s14, 0
    %p103 = por %p101, %p102
    %p104 = scmp.ne.s32.totalorder %s90, %s91
    %p105 = scmp.eq.s32.totalorder %s15, 1
    %p106 = por %p104, %p105
    %p108 = scmp.ne.s32.totalorder %s91, %s107
    %p109 = scmp.eq.s32.totalorder %s15, 0
    %p110 = por %p108, %p109
    %p111 = scmp.le.s32.totalorder 1, %s9
    %p112 = scmp.lt.s32.totalorder %s9, 3
    %p113 = pnand %p111, %p112
    %p114 = pneg %p113
    // Predicated region
    $region9: #{_quantile_regression_impl.1} parent=5 // pred_check
      _
    $region10: #{_quantile_regression_impl.1} parent=5 // pred_check_branch
      %116 = sbr.rel (%p113) target = $region12
    $region11: #{_quantile_regression_impl.1} parent=5 // pred_region
      %s117 = ssub.s32 %s9, 1
      // Predicated region
      $region13: #{_quantile_regression_impl.1} parent=11 // pred_check
        %p118 = pneg %p56
      $region14: #{_quantile_regression_impl.1} parent=11 // pred_check_branch
        %120 = sbr.rel (%p118) target = $region16
      $region15: #{_quantile_regression_impl.1} parent=11 // pred_region
        _
      $region16: #{_quantile_regression_impl.1} parent=11 // pred_fallthru
        _
      // Predicated region
      $region17: #{_quantile_regression_impl.1} parent=11 // pred_check
        %p121 = pneg %p77
      $region18: #{_quantile_regression_impl.1} parent=11 // pred_check_branch
        %123 = sbr.rel (%p121) target = $region20
      $region19: #{_quantile_regression_impl.1} parent=11 // pred_region
        _
      $region20: #{_quantile_regression_impl.1} parent=11 // pred_fallthru
        _
    $region12: #{_quantile_regression_impl.1} parent=5 // pred_fallthru
      _
    %p124 = scmp.lt.s32.totalorder %s9, 2
    // Predicated region
    $region21: #{_quantile_regression_impl.1} parent=5 // pred_check
      %p125 = pneg %p124
    $region22: #{_quantile_regression_impl.1} parent=5 // pred_check_branch
      %127 = sbr.rel (%p125) target = $region24
    $region23: #{_quantile_regression_impl.1} parent=5 // pred_region
      // Predicated region
      $region25: #{_quantile_regression_impl.1} parent=23 // pred_check
        %p128 = pneg %p29
      $region26: #{_quantile_regression_impl.1} parent=23 // pred_check_branch
        %130 = sbr.rel (%p128) target = $region28
      $region27: #{_quantile_regression_impl.1} parent=23 // pred_region
        %p131 = scmp.lt.s32.totalorder %s9, 1
        %s132 = scalar_select %p131, %s9, 1
        %s133 = smul.addr %s132, 27
        %s134 = smul.addr %s133, 4
        %s135 = scalar_lea.vmem %s0, %s134
      $region28: #{_quantile_regression_impl.1} parent=23 // pred_fallthru
        _
    $region24: #{_quantile_regression_impl.1} parent=5 // pred_fallthru
      _
    %p136 = scmp.le.s32.totalorder 1, %s9
    %p137 = scmp.lt.s32.totalorder %s9, 3
    %p138 = pnand %p136, %p137
    %p139 = pneg %p138
    // Predicated region
    $region29: #{_quantile_regression_impl.1} parent=5 // pred_check
      _
    $region30: #{_quantile_regression_impl.1} parent=5 // pred_check_branch
      %141 = sbr.rel (%p138) target = $region32
    $region31: #{_quantile_regression_impl.1} parent=5 // pred_region
      %s142 = ssub.s32 %s9, 1
      %p143 = scmp.lt.s32.totalorder %s14, 1
      %s144 = scalar_select %p143, %s14, 1
      %s145 = smul.addr %s144, 27
      %s146 = smul.addr %s145, 4
      %s147 = scalar_lea.vmem %s0, %s146
      %p148 = pneg %p35
      %p149 = pneg %p32
      %p150 = pneg %p56
      %p151 = pneg %p53
      %p152 = pneg %p77
      %p153 = pneg %p74
      %p154 = pneg %p103
      %p155 = pneg %p100
      %p156 = scmp.lt.s32.totalorder %s14, 1
      %s157 = scalar_select %p156, %s14, 1
      %s158 = smul.addr %s157, 21
      %s159 = smul.addr %s158, 8
      %s160 = scalar_lea.vmem %s3, %s159
      %p161 = scmp.lt.s32.totalorder %s14, 1
      %s162 = scalar_select %p161, %s14, 1
      %s163 = smul.addr %s162, 27
      %s164 = smul.addr %s163, 4
      %s165 = scalar_lea.vmem %s0, %s164
      %p166 = scmp.lt.s32.totalorder %s14, 1
      %s167 = scalar_select %p166, %s14, 1
      %s168 = smul.addr %s167, 21
      %s169 = smul.addr %s168, 8
      %s170 = scalar_lea.vmem %s3, %s169
      %v172 = vld [vmem:[%s165] sm:$0xff]
      %v173 = vld [vmem:[%s165 + $0x8] sm:$0xff]
      %v174 = vld [vmem:[%s165 + $0x10] sm:$0xff]
      %v175 = vld [vmem:[%s165 + $0x18] sm:$0xff]
      %v176 = vld [vmem:[%s165 + $0x20] sm:$0xff]
      %v177 = vld [vmem:[%s165 + $0x28] sm:$0xff]
      %v178 = vld [vmem:[%s165 + $0x30] sm:$0xff]
      %v179 = vld [vmem:[%s165 + $0x38] sm:$0xff]
      %v180 = vld [vmem:[%s165 + $0x40] sm:$0xff]
      %v181 = vld [vmem:[%s165 + $0x48] sm:$0xff]
      %v182 = vld [vmem:[%s165 + $0x50] sm:$0xf]
      %183 = vst [vmem:[#allocation2] sm:$0xff] %v172
      %184 = vst [vmem:[#allocation2 + $0x8] sm:$0xff] %v173
      %185 = vst [vmem:[#allocation2 + $0x10] sm:$0xff] %v174
      %186 = vst [vmem:[#allocation2 + $0x18] sm:$0xff] %v175
      %187 = vst [vmem:[#allocation2 + $0x20] sm:$0xff] %v176
      %188 = vst [vmem:[#allocation2 + $0x28] sm:$0xff] %v177
      %189 = vst [vmem:[#allocation2 + $0x30] sm:$0xff] %v178
      %190 = vst [vmem:[#allocation2 + $0x38] sm:$0xff] %v179
      %191 = vst [vmem:[#allocation2 + $0x40] sm:$0xff] %v180
      %192 = vst [vmem:[#allocation2 + $0x48] sm:$0xff] %v181
      %193 = vst [vmem:[#allocation2 + $0x50] sm:$0xf] %v182
      %v194 = vld [vmem:[%s165] sm:$0xff]
      %v195 = vld [vmem:[%s165 + $0x8] sm:$0xff]
      %v196 = vld [vmem:[%s165 + $0x10] sm:$0xff]
      %v197 = vld [vmem:[%s165 + $0x18] sm:$0xff]
      %v198 = vld [vmem:[%s165 + $0x20] sm:$0xff]
      %v199 = vld [vmem:[%s165 + $0x28] sm:$0xff]
      %v200 = vld [vmem:[%s165 + $0x30] sm:$0xff]
      %v201 = vld [vmem:[%s165 + $0x38] sm:$0xff]
      %v202 = vld [vmem:[%s165 + $0x40] sm:$0xff]
      %v203 = vld [vmem:[%s165 + $0x48] sm:$0xff]
      %v204 = vld [vmem:[%s165 + $0x50] sm:$0xff]
      %216 = vrot.lane.b32.xlu0 %v194, 127
      %v217 = vpop.permute.xlu0 %216
      %218 = vrot.lane.b32.xlu0 %v195, 127
      %v219 = vpop.permute.xlu0 %218
      %220 = vrot.lane.b32.xlu0 %v196, 127
      %v221 = vpop.permute.xlu0 %220
      %222 = vrot.lane.b32.xlu0 %v197, 127
      %v223 = vpop.permute.xlu0 %222
      %224 = vrot.lane.b32.xlu0 %v198, 127
      %v225 = vpop.permute.xlu0 %224
      %226 = vrot.lane.b32.xlu0 %v199, 127
      %v227 = vpop.permute.xlu0 %226
      %228 = vrot.lane.b32.xlu0 %v200, 127
      %v229 = vpop.permute.xlu0 %228
      %230 = vrot.lane.b32.xlu0 %v201, 127
      %v231 = vpop.permute.xlu0 %230
      %232 = vrot.lane.b32.xlu0 %v202, 127
      %v233 = vpop.permute.xlu0 %232
      %234 = vrot.lane.b32.xlu0 %v203, 127
      %v235 = vpop.permute.xlu0 %234
      %236 = vrot.lane.b32.xlu0 %v204, 127
      %v237 = vpop.permute.xlu0 %236
      %v238 = vrot.slane %v217, 4
      %v239 = vrot.slane %v219, 4
      %v240 = vrot.slane %v221, 4
      %v241 = vrot.slane %v223, 4
      %v242 = vrot.slane %v225, 4
      %v243 = vrot.slane %v227, 4
      %v244 = vrot.slane %v229, 4
      %v245 = vrot.slane %v231, 4
      %v246 = vrot.slane %v233, 4
      %v247 = vrot.slane %v235, 4
      %v248 = vrot.slane %v237, 4
      %vm249 = vcmask 1043456
      %v250 = vsel %vm249, %v238, %v239
      %vm251 = vcmask 1039360
      %v252 = vsel %vm251, %v217, %v250
      %v253 = vsel %vm249, %v239, %v240
      %v254 = vsel %vm251, %v219, %v253
      %v255 = vsel %vm249, %v240, %v241
      %v256 = vsel %vm251, %v221, %v255
      %v257 = vsel %vm249, %v241, %v242
      %v258 = vsel %vm251, %v223, %v257
      %v259 = vsel %vm249, %v242, %v243
      %v260 = vsel %vm251, %v225, %v259
      %v261 = vsel %vm249, %v243, %v244
      %v262 = vsel %vm251, %v227, %v261
      %v263 = vsel %vm249, %v244, %v245
      %v264 = vsel %vm251, %v229, %v263
      %v265 = vsel %vm249, %v245, %v246
      %v266 = vsel %vm251, %v231, %v265
      %v267 = vsel %vm249, %v246, %v247
      %v268 = vsel %vm251, %v233, %v267
      %v269 = vsel %vm249, %v247, %v248
      %v270 = vsel %vm251, %v235, %v269
      %v271 = vsel %vm251, %v237, %v248
      %283 = vst [vmem:[#allocation2 + $0x54] sm:$0xff] %v252
      %284 = vst [vmem:[#allocation2 + $0x5c] sm:$0xff] %v254
      %285 = vst [vmem:[#allocation2 + $0x64] sm:$0xff] %v256
      %286 = vst [vmem:[#allocation2 + $0x6c] sm:$0xff] %v258
      %287 = vst [vmem:[#allocation2 + $0x74] sm:$0xff] %v260
      %288 = vst [vmem:[#allocation2 + $0x7c] sm:$0xff] %v262
      %289 = vst [vmem:[#allocation2 + $0x84] sm:$0xff] %v264
      %290 = vst [vmem:[#allocation2 + $0x8c] sm:$0xff] %v266
      %291 = vst [vmem:[#allocation2 + $0x94] sm:$0xff] %v268
      %292 = vst [vmem:[#allocation2 + $0x9c] sm:$0xff] %v270
      %293 = vst [vmem:[#allocation2 + $0xa4] sm:$0xf] %v271
      %v294 = vld [vmem:[%s165] sm:$0xff]
      %v295 = vld [vmem:[%s165 + $0x8] sm:$0xff]
      %v296 = vld [vmem:[%s165 + $0x10] sm:$0xff]
      %v297 = vld [vmem:[%s165 + $0x18] sm:$0xff]
      %v298 = vld [vmem:[%s165 + $0x20] sm:$0xff]
      %v299 = vld [vmem:[%s165 + $0x28] sm:$0xff]
      %v300 = vld [vmem:[%s165 + $0x30] sm:$0xff]
      %v301 = vld [vmem:[%s165 + $0x38] sm:$0xff]
      %v302 = vld [vmem:[%s165 + $0x40] sm:$0xff]
      %v303 = vld [vmem:[%s165 + $0x48] sm:$0xff]
      %v304 = vld [vmem:[%s165 + $0x50] sm:$0xff]
      %316 = vrot.lane.b32.xlu0 %v294, 126
      %v317 = vpop.permute.xlu0 %316
      %318 = vrot.lane.b32.xlu0 %v295, 126
      %v319 = vpop.permute.xlu0 %318
      %320 = vrot.lane.b32.xlu0 %v296, 126
      %v321 = vpop.permute.xlu0 %320
      %322 = vrot.lane.b32.xlu0 %v297, 126
      %v323 = vpop.permute.xlu0 %322
      %324 = vrot.lane.b32.xlu0 %v298, 126
      %v325 = vpop.permute.xlu0 %324
      %326 = vrot.lane.b32.xlu0 %v299, 126
      %v327 = vpop.permute.xlu0 %326
      %328 = vrot.lane.b32.xlu0 %v300, 126
      %v329 = vpop.permute.xlu0 %328
      %330 = vrot.lane.b32.xlu0 %v301, 126
      %v331 = vpop.permute.xlu0 %330
      %332 = vrot.lane.b32.xlu0 %v302, 126
      %v333 = vpop.permute.xlu0 %332
      %334 = vrot.lane.b32.xlu0 %v303, 126
      %v335 = vpop.permute.xlu0 %334
      %336 = vrot.lane.b32.xlu0 %v304, 126
      %v337 = vpop.permute.xlu0 %336
      %v338 = vrot.slane %v317, 4
      %v339 = vrot.slane %v319, 4
      %v340 = vrot.slane %v321, 4
      %v341 = vrot.slane %v323, 4
      %v342 = vrot.slane %v325, 4
      %v343 = vrot.slane %v327, 4
      %v344 = vrot.slane %v329, 4
      %v345 = vrot.slane %v331, 4
      %v346 = vrot.slane %v333, 4
      %v347 = vrot.slane %v335, 4
      %v348 = vrot.slane %v337, 4
      %v349 = vsel %vm249, %v338, %v339
      %vm350 = vcmask 1031168
      %v351 = vsel %vm350, %v317, %v349
      %v352 = vsel %vm249, %v339, %v340
      %v353 = vsel %vm350, %v319, %v352
      %v354 = vsel %vm249, %v340, %v341
      %v355 = vsel %vm350, %v321, %v354
      %v356 = vsel %vm249, %v341, %v342
      %v357 = vsel %vm350, %v323, %v356
      %v358 = vsel %vm249, %v342, %v343
      %v359 = vsel %vm350, %v325, %v358
      %v360 = vsel %vm249, %v343, %v344
      %v361 = vsel %vm350, %v327, %v360
      %v362 = vsel %vm249, %v344, %v345
      %v363 = vsel %vm350, %v329, %v362
      %v364 = vsel %vm249, %v345, %v346
      %v365 = vsel %vm350, %v331, %v364
      %v366 = vsel %vm249, %v346, %v347
      %v367 = vsel %vm350, %v333, %v366
      %v368 = vsel %vm249, %v347, %v348
      %v369 = vsel %vm350, %v335, %v368
      %v370 = vsel %vm350, %v337, %v348
      %382 = vst [vmem:[#allocation2 + $0xa8] sm:$0xff] %v351
      %383 = vst [vmem:[#allocation2 + $0xb0] sm:$0xff] %v353
      %384 = vst [vmem:[#allocation2 + $0xb8] sm:$0xff] %v355
      %385 = vst [vmem:[#allocation2 + $0xc0] sm:$0xff] %v357
      %386 = vst [vmem:[#allocation2 + $0xc8] sm:$0xff] %v359
      %387 = vst [vmem:[#allocation2 + $0xd0] sm:$0xff] %v361
      %388 = vst [vmem:[#allocation2 + $0xd8] sm:$0xff] %v363
      %389 = vst [vmem:[#allocation2 + $0xe0] sm:$0xff] %v365
      %390 = vst [vmem:[#allocation2 + $0xe8] sm:$0xff] %v367
      %391 = vst [vmem:[#allocation2 + $0xf0] sm:$0xff] %v369
      %392 = vst [vmem:[#allocation2 + $0xf8] sm:$0xf] %v370
      %v393 = vld [vmem:[%s165] sm:$0xff]
      %v394 = vld [vmem:[%s165 + $0x8] sm:$0xff]
      %v395 = vld [vmem:[%s165 + $0x10] sm:$0xff]
      %v396 = vld [vmem:[%s165 + $0x18] sm:$0xff]
      %v397 = vld [vmem:[%s165 + $0x20] sm:$0xff]
      %v398 = vld [vmem:[%s165 + $0x28] sm:$0xff]
      %v399 = vld [vmem:[%s165 + $0x30] sm:$0xff]
      %v400 = vld [vmem:[%s165 + $0x38] sm:$0xff]
      %v401 = vld [vmem:[%s165 + $0x40] sm:$0xff]
      %v402 = vld [vmem:[%s165 + $0x48] sm:$0xff]
      %v403 = vld [vmem:[%s165 + $0x50] sm:$0xff]
      %415 = vrot.lane.b32.xlu0 %v393, 110
      %v416 = vpop.permute.xlu0 %415
      %417 = vrot.lane.b32.xlu0 %v394, 110
      %v418 = vpop.permute.xlu0 %417
      %419 = vrot.lane.b32.xlu0 %v395, 110
      %v420 = vpop.permute.xlu0 %419
      %421 = vrot.lane.b32.xlu0 %v396, 110
      %v422 = vpop.permute.xlu0 %421
      %423 = vrot.lane.b32.xlu0 %v397, 110
      %v424 = vpop.permute.xlu0 %423
      %425 = vrot.lane.b32.xlu0 %v398, 110
      %v426 = vpop.permute.xlu0 %425
      %427 = vrot.lane.b32.xlu0 %v399, 110
      %v428 = vpop.permute.xlu0 %427
      %429 = vrot.lane.b32.xlu0 %v400, 110
      %v430 = vpop.permute.xlu0 %429
      %431 = vrot.lane.b32.xlu0 %v401, 110
      %v432 = vpop.permute.xlu0 %431
      %433 = vrot.lane.b32.xlu0 %v402, 110
      %v434 = vpop.permute.xlu0 %433
      %435 = vrot.lane.b32.xlu0 %v403, 110
      %v436 = vpop.permute.xlu0 %435
      %v437 = vrot.slane %v416, 4
      %v438 = vrot.slane %v418, 4
      %v439 = vrot.slane %v420, 4
      %v440 = vrot.slane %v422, 4
      %v441 = vrot.slane %v424, 4
      %v442 = vrot.slane %v426, 4
      %v443 = vrot.slane %v428, 4
      %v444 = vrot.slane %v430, 4
      %v445 = vrot.slane %v432, 4
      %v446 = vrot.slane %v434, 4
      %v447 = vrot.slane %v436, 4
      %v448 = vsel %vm249, %v437, %v438
      %vm449 = vcmask 900096
      %v450 = vsel %vm449, %v416, %v448
      %v451 = vsel %vm249, %v438, %v439
      %v452 = vsel %vm449, %v418, %v451
      %v453 = vsel %vm249, %v439, %v440
      %v454 = vsel %vm449, %v420, %v453
      %v455 = vsel %vm249, %v440, %v441
      %v456 = vsel %vm449, %v422, %v455
      %v457 = vsel %vm249, %v441, %v442
      %v458 = vsel %vm449, %v424, %v457
      %v459 = vsel %vm249, %v442, %v443
      %v460 = vsel %vm449, %v426, %v459
      %v461 = vsel %vm249, %v443, %v444
      %v462 = vsel %vm449, %v428, %v461
      %v463 = vsel %vm249, %v444, %v445
      %v464 = vsel %vm449, %v430, %v463
      %v465 = vsel %vm249, %v445, %v446
      %v466 = vsel %vm449, %v432, %v465
      %v467 = vsel %vm249, %v446, %v447
      %v468 = vsel %vm449, %v434, %v467
      %v469 = vsel %vm449, %v436, %v447
      %481 = vst [vmem:[#allocation2 + $0xfc] sm:$0xff] %v450
      %482 = vst [vmem:[#allocation2 + $0x104] sm:$0xff] %v452
      %483 = vst [vmem:[#allocation2 + $0x10c] sm:$0xff] %v454
      %484 = vst [vmem:[#allocation2 + $0x114] sm:$0xff] %v456
      %485 = vst [vmem:[#allocation2 + $0x11c] sm:$0xff] %v458
      %486 = vst [vmem:[#allocation2 + $0x124] sm:$0xff] %v460
      %487 = vst [vmem:[#allocation2 + $0x12c] sm:$0xff] %v462
      %488 = vst [vmem:[#allocation2 + $0x134] sm:$0xff] %v464
      %489 = vst [vmem:[#allocation2 + $0x13c] sm:$0xff] %v466
      %490 = vst [vmem:[#allocation2 + $0x144] sm:$0xff] %v468
      %491 = vst [vmem:[#allocation2 + $0x14c] sm:$0xf] %v469
      %v492 = vld [vmem:[%s165] sm:$0xff]
      %v493 = vld [vmem:[%s165 + $0x8] sm:$0xff]
      %v494 = vld [vmem:[%s165 + $0x10] sm:$0xff]
      %v495 = vld [vmem:[%s165 + $0x18] sm:$0xff]
      %v496 = vld [vmem:[%s165 + $0x20] sm:$0xff]
      %v497 = vld [vmem:[%s165 + $0x28] sm:$0xff]
      %v498 = vld [vmem:[%s165 + $0x30] sm:$0xff]
      %v499 = vld [vmem:[%s165 + $0x38] sm:$0xff]
      %v500 = vld [vmem:[%s165 + $0x40] sm:$0xff]
      %v501 = vld [vmem:[%s165 + $0x48] sm:$0xff]
      %v502 = vld [vmem:[%s165 + $0x50] sm:$0xff]
      %514 = vrot.lane.b32.xlu0 %v492, 109
      %v515 = vpop.permute.xlu0 %514
      %516 = vrot.lane.b32.xlu0 %v493, 109
      %v517 = vpop.permute.xlu0 %516
      %518 = vrot.lane.b32.xlu0 %v494, 109
      %v519 = vpop.permute.xlu0 %518
      %520 = vrot.lane.b32.xlu0 %v495, 109
      %v521 = vpop.permute.xlu0 %520
      %522 = vrot.lane.b32.xlu0 %v496, 109
      %v523 = vpop.permute.xlu0 %522
      %524 = vrot.lane.b32.xlu0 %v497, 109
      %v525 = vpop.permute.xlu0 %524
      %526 = vrot.lane.b32.xlu0 %v498, 109
      %v527 = vpop.permute.xlu0 %526
      %528 = vrot.lane.b32.xlu0 %v499, 109
      %v529 = vpop.permute.xlu0 %528
      %530 = vrot.lane.b32.xlu0 %v500, 109
      %v531 = vpop.permute.xlu0 %530
      %532 = vrot.lane.b32.xlu0 %v501, 109
      %v533 = vpop.permute.xlu0 %532
      %534 = vrot.lane.b32.xlu0 %v502, 109
      %v535 = vpop.permute.xlu0 %534
      %v536 = vrot.slane %v515, 4
      %v537 = vrot.slane %v517, 4
      %v538 = vrot.slane %v519, 4
      %v539 = vrot.slane %v521, 4
      %v540 = vrot.slane %v523, 4
      %v541 = vrot.slane %v525, 4
      %v542 = vrot.slane %v527, 4
      %v543 = vrot.slane %v529, 4
      %v544 = vrot.slane %v531, 4
      %v545 = vrot.slane %v533, 4
      %v546 = vrot.slane %v535, 4
      %v547 = vsel %vm249, %v536, %v537
      %vm548 = vcmask 891904
      %v549 = vsel %vm548, %v515, %v547
      %v550 = vsel %vm249, %v537, %v538
      %v551 = vsel %vm548, %v517, %v550
      %v552 = vsel %vm249, %v538, %v539
      %v553 = vsel %vm548, %v519, %v552
      %v554 = vsel %vm249, %v539, %v540
      %v555 = vsel %vm548, %v521, %v554
      %v556 = vsel %vm249, %v540, %v541
      %v557 = vsel %vm548, %v523, %v556
      %v558 = vsel %vm249, %v541, %v542
      %v559 = vsel %vm548, %v525, %v558
      %v560 = vsel %vm249, %v542, %v543
      %v561 = vsel %vm548, %v527, %v560
      %v562 = vsel %vm249, %v543, %v544
      %v563 = vsel %vm548, %v529, %v562
      %v564 = vsel %vm249, %v544, %v545
      %v565 = vsel %vm548, %v531, %v564
      %v566 = vsel %vm249, %v545, %v546
      %v567 = vsel %vm548, %v533, %v566
      %v568 = vsel %vm548, %v535, %v546
      %580 = vst [vmem:[#allocation2 + $0x150] sm:$0xff] %v549
      %581 = vst [vmem:[#allocation2 + $0x158] sm:$0xff] %v551
      %582 = vst [vmem:[#allocation2 + $0x160] sm:$0xff] %v553
      %583 = vst [vmem:[#allocation2 + $0x168] sm:$0xff] %v555
      %584 = vst [vmem:[#allocation2 + $0x170] sm:$0xff] %v557
      %585 = vst [vmem:[#allocation2 + $0x178] sm:$0xff] %v559
      %586 = vst [vmem:[#allocation2 + $0x180] sm:$0xff] %v561
      %587 = vst [vmem:[#allocation2 + $0x188] sm:$0xff] %v563
      %588 = vst [vmem:[#allocation2 + $0x190] sm:$0xff] %v565
      %589 = vst [vmem:[#allocation2 + $0x198] sm:$0xff] %v567
      %590 = vst [vmem:[#allocation2 + $0x1a0] sm:$0xf] %v568
      %v591 = vld [vmem:[%s165] sm:$0xff]
      %v592 = vld [vmem:[%s165 + $0x8] sm:$0xff]
      %v593 = vld [vmem:[%s165 + $0x10] sm:$0xff]
      %v594 = vld [vmem:[%s165 + $0x18] sm:$0xff]
      %v595 = vld [vmem:[%s165 + $0x20] sm:$0xff]
      %v596 = vld [vmem:[%s165 + $0x28] sm:$0xff]
      %v597 = vld [vmem:[%s165 + $0x30] sm:$0xff]
      %v598 = vld [vmem:[%s165 + $0x38] sm:$0xff]
      %v599 = vld [vmem:[%s165 + $0x40] sm:$0xff]
      %v600 = vld [vmem:[%s165 + $0x48] sm:$0xff]
      %v601 = vld [vmem:[%s165 + $0x50] sm:$0xff]
      %613 = vrot.lane.b32.xlu0 %v591, 108
      %v614 = vpop.permute.xlu0 %613
      %615 = vrot.lane.b32.xlu0 %v592, 108
      %v616 = vpop.permute.xlu0 %615
      %617 = vrot.lane.b32.xlu0 %v593, 108
      %v618 = vpop.permute.xlu0 %617
      %619 = vrot.lane.b32.xlu0 %v594, 108
      %v620 = vpop.permute.xlu0 %619
      %621 = vrot.lane.b32.xlu0 %v595, 108
      %v622 = vpop.permute.xlu0 %621
      %623 = vrot.lane.b32.xlu0 %v596, 108
      %v624 = vpop.permute.xlu0 %623
      %625 = vrot.lane.b32.xlu0 %v597, 108
      %v626 = vpop.permute.xlu0 %625
      %627 = vrot.lane.b32.xlu0 %v598, 108
      %v628 = vpop.permute.xlu0 %627
      %629 = vrot.lane.b32.xlu0 %v599, 108
      %v630 = vpop.permute.xlu0 %629
      %631 = vrot.lane.b32.xlu0 %v600, 108
      %v632 = vpop.permute.xlu0 %631
      %633 = vrot.lane.b32.xlu0 %v601, 108
      %v634 = vpop.permute.xlu0 %633
      %v635 = vrot.slane %v614, 4
      %v636 = vrot.slane %v616, 4
      %v637 = vrot.slane %v618, 4
      %v638 = vrot.slane %v620, 4
      %v639 = vrot.slane %v622, 4
      %v640 = vrot.slane %v624, 4
      %v641 = vrot.slane %v626, 4
      %v642 = vrot.slane %v628, 4
      %v643 = vrot.slane %v630, 4
      %v644 = vrot.slane %v632, 4
      %v645 = vrot.slane %v634, 4
      %v646 = vsel %vm249, %v635, %v636
      %vm647 = vcmask 883712
      %v648 = vsel %vm647, %v614, %v646
      %v649 = vsel %vm249, %v636, %v637
      %v650 = vsel %vm647, %v616, %v649
      %v651 = vsel %vm249, %v637, %v638
      %v652 = vsel %vm647, %v618, %v651
      %v653 = vsel %vm249, %v638, %v639
      %v654 = vsel %vm647, %v620, %v653
      %v655 = vsel %vm249, %v639, %v640
      %v656 = vsel %vm647, %v622, %v655
      %v657 = vsel %vm249, %v640, %v641
      %v658 = vsel %vm647, %v624, %v657
      %v659 = vsel %vm249, %v641, %v642
      %v660 = vsel %vm647, %v626, %v659
      %v661 = vsel %vm249, %v642, %v643
      %v662 = vsel %vm647, %v628, %v661
      %v663 = vsel %vm249, %v643, %v644
      %v664 = vsel %vm647, %v630, %v663
      %v665 = vsel %vm249, %v644, %v645
      %v666 = vsel %vm647, %v632, %v665
      %v667 = vsel %vm647, %v634, %v645
      %679 = vst [vmem:[#allocation2 + $0x1a4] sm:$0xff] %v648
      %680 = vst [vmem:[#allocation2 + $0x1ac] sm:$0xff] %v650
      %681 = vst [vmem:[#allocation2 + $0x1b4] sm:$0xff] %v652
      %682 = vst [vmem:[#allocation2 + $0x1bc] sm:$0xff] %v654
      %683 = vst [vmem:[#allocation2 + $0x1c4] sm:$0xff] %v656
      %684 = vst [vmem:[#allocation2 + $0x1cc] sm:$0xff] %v658
      %685 = vst [vmem:[#allocation2 + $0x1d4] sm:$0xff] %v660
      %686 = vst [vmem:[#allocation2 + $0x1dc] sm:$0xff] %v662
      %687 = vst [vmem:[#allocation2 + $0x1e4] sm:$0xff] %v664
      %688 = vst [vmem:[#allocation2 + $0x1ec] sm:$0xff] %v666
      %689 = vst [vmem:[#allocation2 + $0x1f4] sm:$0xf] %v667
      %v690 = vld [vmem:[%s165] sm:$0xff]
      %v691 = vld [vmem:[%s165 + $0x8] sm:$0xff]
      %v692 = vld [vmem:[%s165 + $0x10] sm:$0xff]
      %v693 = vld [vmem:[%s165 + $0x18] sm:$0xff]
      %v694 = vld [vmem:[%s165 + $0x20] sm:$0xff]
      %v695 = vld [vmem:[%s165 + $0x28] sm:$0xff]
      %v696 = vld [vmem:[%s165 + $0x30] sm:$0xff]
      %v697 = vld [vmem:[%s165 + $0x38] sm:$0xff]
      %v698 = vld [vmem:[%s165 + $0x40] sm:$0xff]
      %v699 = vld [vmem:[%s165 + $0x48] sm:$0xff]
      %v700 = vld [vmem:[%s165 + $0x50] sm:$0xff]
      %712 = vrot.lane.b32.xlu0 %v690, 92
      %v713 = vpop.permute.xlu0 %712
      %714 = vrot.lane.b32.xlu0 %v691, 92
      %v715 = vpop.permute.xlu0 %714
      %716 = vrot.lane.b32.xlu0 %v692, 92
      %v717 = vpop.permute.xlu0 %716
      %718 = vrot.lane.b32.xlu0 %v693, 92
      %v719 = vpop.permute.xlu0 %718
      %720 = vrot.lane.b32.xlu0 %v694, 92
      %v721 = vpop.permute.xlu0 %720
      %722 = vrot.lane.b32.xlu0 %v695, 92
      %v723 = vpop.permute.xlu0 %722
      %724 = vrot.lane.b32.xlu0 %v696, 92
      %v725 = vpop.permute.xlu0 %724
      %726 = vrot.lane.b32.xlu0 %v697, 92
      %v727 = vpop.permute.xlu0 %726
      %728 = vrot.lane.b32.xlu0 %v698, 92
      %v729 = vpop.permute.xlu0 %728
      %730 = vrot.lane.b32.xlu0 %v699, 92
      %v731 = vpop.permute.xlu0 %730
      %732 = vrot.lane.b32.xlu0 %v700, 92
      %v733 = vpop.permute.xlu0 %732
      %v734 = vrot.slane %v713, 4
      %v735 = vrot.slane %v715, 4
      %v736 = vrot.slane %v717, 4
      %v737 = vrot.slane %v719, 4
      %v738 = vrot.slane %v721, 4
      %v739 = vrot.slane %v723, 4
      %v740 = vrot.slane %v725, 4
      %v741 = vrot.slane %v727, 4
      %v742 = vrot.slane %v729, 4
      %v743 = vrot.slane %v731, 4
      %v744 = vrot.slane %v733, 4
      %v745 = vsel %vm249, %v734, %v735
      %vm746 = vcmask 752640
      %v747 = vsel %vm746, %v713, %v745
      %v748 = vsel %vm249, %v735, %v736
      %v749 = vsel %vm746, %v715, %v748
      %v750 = vsel %vm249, %v736, %v737
      %v751 = vsel %vm746, %v717, %v750
      %v752 = vsel %vm249, %v737, %v738
      %v753 = vsel %vm746, %v719, %v752
      %v754 = vsel %vm249, %v738, %v739
      %v755 = vsel %vm746, %v721, %v754
      %v756 = vsel %vm249, %v739, %v740
      %v757 = vsel %vm746, %v723, %v756
      %v758 = vsel %vm249, %v740, %v741
      %v759 = vsel %vm746, %v725, %v758
      %v760 = vsel %vm249, %v741, %v742
      %v761 = vsel %vm746, %v727, %v760
      %v762 = vsel %vm249, %v742, %v743
      %v763 = vsel %vm746, %v729, %v762
      %v764 = vsel %vm249, %v743, %v744
      %v765 = vsel %vm746, %v731, %v764
      %v766 = vsel %vm746, %v733, %v744
      %778 = vst [vmem:[#allocation2 + $0x1f8] sm:$0xff] %v747
      %779 = vst [vmem:[#allocation2 + $0x200] sm:$0xff] %v749
      %780 = vst [vmem:[#allocation2 + $0x208] sm:$0xff] %v751
      %781 = vst [vmem:[#allocation2 + $0x210] sm:$0xff] %v753
      %782 = vst [vmem:[#allocation2 + $0x218] sm:$0xff] %v755
      %783 = vst [vmem:[#allocation2 + $0x220] sm:$0xff] %v757
      %784 = vst [vmem:[#allocation2 + $0x228] sm:$0xff] %v759
      %785 = vst [vmem:[#allocation2 + $0x230] sm:$0xff] %v761
      %786 = vst [vmem:[#allocation2 + $0x238] sm:$0xff] %v763
      %787 = vst [vmem:[#allocation2 + $0x240] sm:$0xff] %v765
      %788 = vst [vmem:[#allocation2 + $0x248] sm:$0xf] %v766
      %v789 = vld [vmem:[%s165] sm:$0xff]
      %v790 = vld [vmem:[%s165 + $0x8] sm:$0xff]
      %v791 = vld [vmem:[%s165 + $0x10] sm:$0xff]
      %v792 = vld [vmem:[%s165 + $0x18] sm:$0xff]
      %v793 = vld [vmem:[%s165 + $0x20] sm:$0xff]
      %v794 = vld [vmem:[%s165 + $0x28] sm:$0xff]
      %v795 = vld [vmem:[%s165 + $0x30] sm:$0xff]
      %v796 = vld [vmem:[%s165 + $0x38] sm:$0xff]
      %v797 = vld [vmem:[%s165 + $0x40] sm:$0xff]
      %v798 = vld [vmem:[%s165 + $0x48] sm:$0xff]
      %v799 = vld [vmem:[%s165 + $0x50] sm:$0xff]
      %811 = vrot.lane.b32.xlu0 %v789, 91
      %v812 = vpop.permute.xlu0 %811
      %813 = vrot.lane.b32.xlu0 %v790, 91
      %v814 = vpop.permute.xlu0 %813
      %815 = vrot.lane.b32.xlu0 %v791, 91
      %v816 = vpop.permute.xlu0 %815
      %817 = vrot.lane.b32.xlu0 %v792, 91
      %v818 = vpop.permute.xlu0 %817
      %819 = vrot.lane.b32.xlu0 %v793, 91
      %v820 = vpop.permute.xlu0 %819
      %821 = vrot.lane.b32.xlu0 %v794, 91
      %v822 = vpop.permute.xlu0 %821
      %823 = vrot.lane.b32.xlu0 %v795, 91
      %v824 = vpop.permute.xlu0 %823
      %825 = vrot.lane.b32.xlu0 %v796, 91
      %v826 = vpop.permute.xlu0 %825
      %827 = vrot.lane.b32.xlu0 %v797, 91
      %v828 = vpop.permute.xlu0 %827
      %829 = vrot.lane.b32.xlu0 %v798, 91
      %v830 = vpop.permute.xlu0 %829
      %831 = vrot.lane.b32.xlu0 %v799, 91
      %v832 = vpop.permute.xlu0 %831
      %v833 = vrot.slane %v812, 4
      %v834 = vrot.slane %v814, 4
      %v835 = vrot.slane %v816, 4
      %v836 = vrot.slane %v818, 4
      %v837 = vrot.slane %v820, 4
      %v838 = vrot.slane %v822, 4
      %v839 = vrot.slane %v824, 4
      %v840 = vrot.slane %v826, 4
      %v841 = vrot.slane %v828, 4
      %v842 = vrot.slane %v830, 4
      %v843 = vrot.slane %v832, 4
      %v844 = vsel %vm249, %v833, %v834
      %vm845 = vcmask 744448
      %v846 = vsel %vm845, %v812, %v844
      %v847 = vsel %vm249, %v834, %v835
      %v848 = vsel %vm845, %v814, %v847
      %v849 = vsel %vm249, %v835, %v836
      %v850 = vsel %vm845, %v816, %v849
      %v851 = vsel %vm249, %v836, %v837
      %v852 = vsel %vm845, %v818, %v851
      %v853 = vsel %vm249, %v837, %v838
      %v854 = vsel %vm845, %v820, %v853
      %v855 = vsel %vm249, %v838, %v839
      %v856 = vsel %vm845, %v822, %v855
      %v857 = vsel %vm249, %v839, %v840
      %v858 = vsel %vm845, %v824, %v857
      %v859 = vsel %vm249, %v840, %v841
      %v860 = vsel %vm845, %v826, %v859
      %v861 = vsel %vm249, %v841, %v842
      %v862 = vsel %vm845, %v828, %v861
      %v863 = vsel %vm249, %v842, %v843
      %v864 = vsel %vm845, %v830, %v863
      %v865 = vsel %vm845, %v832, %v843
      %877 = vst [vmem:[#allocation2 + $0x24c] sm:$0xff] %v846
      %878 = vst [vmem:[#allocation2 + $0x254] sm:$0xff] %v848
      %879 = vst [vmem:[#allocation2 + $0x25c] sm:$0xff] %v850
      %880 = vst [vmem:[#allocation2 + $0x264] sm:$0xff] %v852
      %881 = vst [vmem:[#allocation2 + $0x26c] sm:$0xff] %v854
      %882 = vst [vmem:[#allocation2 + $0x274] sm:$0xff] %v856
      %883 = vst [vmem:[#allocation2 + $0x27c] sm:$0xff] %v858
      %884 = vst [vmem:[#allocation2 + $0x284] sm:$0xff] %v860
      %885 = vst [vmem:[#allocation2 + $0x28c] sm:$0xff] %v862
      %886 = vst [vmem:[#allocation2 + $0x294] sm:$0xff] %v864
      %887 = vst [vmem:[#allocation2 + $0x29c] sm:$0xf] %v865
      %v888 = vld [vmem:[%s165] sm:$0xff]
      %v889 = vld [vmem:[%s165 + $0x8] sm:$0xff]
      %v890 = vld [vmem:[%s165 + $0x10] sm:$0xff]
      %v891 = vld [vmem:[%s165 + $0x18] sm:$0xff]
      %v892 = vld [vmem:[%s165 + $0x20] sm:$0xff]
      %v893 = vld [vmem:[%s165 + $0x28] sm:$0xff]
      %v894 = vld [vmem:[%s165 + $0x30] sm:$0xff]
      %v895 = vld [vmem:[%s165 + $0x38] sm:$0xff]
      %v896 = vld [vmem:[%s165 + $0x40] sm:$0xff]
      %v897 = vld [vmem:[%s165 + $0x48] sm:$0xff]
      %v898 = vld [vmem:[%s165 + $0x50] sm:$0xff]
      %910 = vrot.lane.b32.xlu0 %v888, 90
      %v911 = vpop.permute.xlu0 %910
      %912 = vrot.lane.b32.xlu0 %v889, 90
      %v913 = vpop.permute.xlu0 %912
      %914 = vrot.lane.b32.xlu0 %v890, 90
      %v915 = vpop.permute.xlu0 %914
      %916 = vrot.lane.b32.xlu0 %v891, 90
      %v917 = vpop.permute.xlu0 %916
      %918 = vrot.lane.b32.xlu0 %v892, 90
      %v919 = vpop.permute.xlu0 %918
      %920 = vrot.lane.b32.xlu0 %v893, 90
      %v921 = vpop.permute.xlu0 %920
      %922 = vrot.lane.b32.xlu0 %v894, 90
      %v923 = vpop.permute.xlu0 %922
      %924 = vrot.lane.b32.xlu0 %v895, 90
      %v925 = vpop.permute.xlu0 %924
      %926 = vrot.lane.b32.xlu0 %v896, 90
      %v927 = vpop.permute.xlu0 %926
      %928 = vrot.lane.b32.xlu0 %v897, 90
      %v929 = vpop.permute.xlu0 %928
      %930 = vrot.lane.b32.xlu0 %v898, 90
      %v931 = vpop.permute.xlu0 %930
      %v932 = vrot.slane %v911, 4
      %v933 = vrot.slane %v913, 4
      %v934 = vrot.slane %v915, 4
      %v935 = vrot.slane %v917, 4
      %v936 = vrot.slane %v919, 4
      %v937 = vrot.slane %v921, 4
      %v938 = vrot.slane %v923, 4
      %v939 = vrot.slane %v925, 4
      %v940 = vrot.slane %v927, 4
      %v941 = vrot.slane %v929, 4
      %v942 = vrot.slane %v931, 4
      %v943 = vsel %vm249, %v932, %v933
      %vm944 = vcmask 736256
      %v945 = vsel %vm944, %v911, %v943
      %v946 = vsel %vm249, %v933, %v934
      %v947 = vsel %vm944, %v913, %v946
      %v948 = vsel %vm249, %v934, %v935
      %v949 = vsel %vm944, %v915, %v948
      %v950 = vsel %vm249, %v935, %v936
      %v951 = vsel %vm944, %v917, %v950
      %v952 = vsel %vm249, %v936, %v937
      %v953 = vsel %vm944, %v919, %v952
      %v954 = vsel %vm249, %v937, %v938
      %v955 = vsel %vm944, %v921, %v954
      %v956 = vsel %vm249, %v938, %v939
      %v957 = vsel %vm944, %v923, %v956
      %v958 = vsel %vm249, %v939, %v940
      %v959 = vsel %vm944, %v925, %v958
      %v960 = vsel %vm249, %v940, %v941
      %v961 = vsel %vm944, %v927, %v960
      %v962 = vsel %vm249, %v941, %v942
      %v963 = vsel %vm944, %v929, %v962
      %v964 = vsel %vm944, %v931, %v942
      %976 = vst [vmem:[#allocation2 + $0x2a0] sm:$0xff] %v945
      %977 = vst [vmem:[#allocation2 + $0x2a8] sm:$0xff] %v947
      %978 = vst [vmem:[#allocation2 + $0x2b0] sm:$0xff] %v949
      %979 = vst [vmem:[#allocation2 + $0x2b8] sm:$0xff] %v951
      %980 = vst [vmem:[#allocation2 + $0x2c0] sm:$0xff] %v953
      %981 = vst [vmem:[#allocation2 + $0x2c8] sm:$0xff] %v955
      %982 = vst [vmem:[#allocation2 + $0x2d0] sm:$0xff] %v957
      %983 = vst [vmem:[#allocation2 + $0x2d8] sm:$0xff] %v959
      %984 = vst [vmem:[#allocation2 + $0x2e0] sm:$0xff] %v961
      %985 = vst [vmem:[#allocation2 + $0x2e8] sm:$0xff] %v963
      %986 = vst [vmem:[#allocation2 + $0x2f0] sm:$0xf] %v964
      %v987 = vld [vmem:[%s165 + $0x8] sm:$0xff]
      %v988 = vld [vmem:[%s165 + $0x10] sm:$0xff]
      %v989 = vld [vmem:[%s165 + $0x18] sm:$0xff]
      %v990 = vld [vmem:[%s165 + $0x20] sm:$0xff]
      %v991 = vld [vmem:[%s165 + $0x28] sm:$0xff]
      %v992 = vld [vmem:[%s165 + $0x30] sm:$0xff]
      %v993 = vld [vmem:[%s165 + $0x38] sm:$0xff]
      %v994 = vld [vmem:[%s165 + $0x40] sm:$0xff]
      %v995 = vld [vmem:[%s165 + $0x48] sm:$0xff]
      %v996 = vld [vmem:[%s165 + $0x50] sm:$0xff]
      %v997 = vld [vmem:[%s165 + $0x58] sm:$0xff]
      %1009 = vrot.lane.b32.xlu0 %v987, 60
      %v1010 = vpop.permute.xlu0 %1009
      %1011 = vrot.lane.b32.xlu0 %v988, 60
      %v1012 = vpop.permute.xlu0 %1011
      %1013 = vrot.lane.b32.xlu0 %v989, 60
      %v1014 = vpop.permute.xlu0 %1013
      %1015 = vrot.lane.b32.xlu0 %v990, 60
      %v1016 = vpop.permute.xlu0 %1015
      %1017 = vrot.lane.b32.xlu0 %v991, 60
      %v1018 = vpop.permute.xlu0 %1017
      %1019 = vrot.lane.b32.xlu0 %v992, 60
      %v1020 = vpop.permute.xlu0 %1019
      %1021 = vrot.lane.b32.xlu0 %v993, 60
      %v1022 = vpop.permute.xlu0 %1021
      %1023 = vrot.lane.b32.xlu0 %v994, 60
      %v1024 = vpop.permute.xlu0 %1023
      %1025 = vrot.lane.b32.xlu0 %v995, 60
      %v1026 = vpop.permute.xlu0 %1025
      %1027 = vrot.lane.b32.xlu0 %v996, 60
      %v1028 = vpop.permute.xlu0 %1027
      %1029 = vrot.lane.b32.xlu0 %v997, 60
      %v1030 = vpop.permute.xlu0 %1029
      %v1031 = vrot.slane %v1010, 4
      %v1032 = vrot.slane %v1012, 4
      %v1033 = vrot.slane %v1014, 4
      %v1034 = vrot.slane %v1016, 4
      %v1035 = vrot.slane %v1018, 4
      %v1036 = vrot.slane %v1020, 4
      %v1037 = vrot.slane %v1022, 4
      %v1038 = vrot.slane %v1024, 4
      %v1039 = vrot.slane %v1026, 4
      %v1040 = vrot.slane %v1028, 4
      %v1041 = vrot.slane %v1030, 4
      %v1042 = vsel %vm249, %v1031, %v1032
      %vm1043 = vcmask 490496
      %v1044 = vsel %vm1043, %v1010, %v1042
      %v1045 = vsel %vm249, %v1032, %v1033
      %v1046 = vsel %vm1043, %v1012, %v1045
      %v1047 = vsel %vm249, %v1033, %v1034
      %v1048 = vsel %vm1043, %v1014, %v1047
      %v1049 = vsel %vm249, %v1034, %v1035
      %v1050 = vsel %vm1043, %v1016, %v1049
      %v1051 = vsel %vm249, %v1035, %v1036
      %v1052 = vsel %vm1043, %v1018, %v1051
      %v1053 = vsel %vm249, %v1036, %v1037
      %v1054 = vsel %vm1043, %v1020, %v1053
      %v1055 = vsel %vm249, %v1037, %v1038
      %v1056 = vsel %vm1043, %v1022, %v1055
      %v1057 = vsel %vm249, %v1038, %v1039
      %v1058 = vsel %vm1043, %v1024, %v1057
      %v1059 = vsel %vm249, %v1039, %v1040
      %v1060 = vsel %vm1043, %v1026, %v1059
      %v1061 = vsel %vm249, %v1040, %v1041
      %v1062 = vsel %vm1043, %v1028, %v1061
      %v1063 = vsel %vm1043, %v1030, %v1041
      %1075 = vst [vmem:[#allocation2 + $0x2f4] sm:$0xff] %v1044
      %1076 = vst [vmem:[#allocation2 + $0x2fc] sm:$0xff] %v1046
      %1077 = vst [vmem:[#allocation2 + $0x304] sm:$0xff] %v1048
      %1078 = vst [vmem:[#allocation2 + $0x30c] sm:$0xff] %v1050
      %1079 = vst [vmem:[#allocation2 + $0x314] sm:$0xff] %v1052
      %1080 = vst [vmem:[#allocation2 + $0x31c] sm:$0xff] %v1054
      %1081 = vst [vmem:[#allocation2 + $0x324] sm:$0xff] %v1056
      %1082 = vst [vmem:[#allocation2 + $0x32c] sm:$0xff] %v1058
      %1083 = vst [vmem:[#allocation2 + $0x334] sm:$0xff] %v1060
      %1084 = vst [vmem:[#allocation2 + $0x33c] sm:$0xff] %v1062
      %1085 = vst [vmem:[#allocation2 + $0x344] sm:$0xf] %v1063
      %v1086 = vld [vmem:[%s165 + $0x8] sm:$0xff]
      %v1087 = vld [vmem:[%s165 + $0x10] sm:$0xff]
      %v1088 = vld [vmem:[%s165 + $0x18] sm:$0xff]
      %v1089 = vld [vmem:[%s165 + $0x20] sm:$0xff]
      %v1090 = vld [vmem:[%s165 + $0x28] sm:$0xff]
      %v1091 = vld [vmem:[%s165 + $0x30] sm:$0xff]
      %v1092 = vld [vmem:[%s165 + $0x38] sm:$0xff]
      %v1093 = vld [vmem:[%s165 + $0x40] sm:$0xff]
      %v1094 = vld [vmem:[%s165 + $0x48] sm:$0xff]
      %v1095 = vld [vmem:[%s165 + $0x50] sm:$0xff]
      %v1096 = vld [vmem:[%s165 + $0x58] sm:$0xff]
      %1108 = vrot.lane.b32.xlu0 %v1086, 59
      %v1109 = vpop.permute.xlu0 %1108
      %1110 = vrot.lane.b32.xlu0 %v1087, 59
      %v1111 = vpop.permute.xlu0 %1110
      %1112 = vrot.lane.b32.xlu0 %v1088, 59
      %v1113 = vpop.permute.xlu0 %1112
      %1114 = vrot.lane.b32.xlu0 %v1089, 59
      %v1115 = vpop.permute.xlu0 %1114
      %1116 = vrot.lane.b32.xlu0 %v1090, 59
      %v1117 = vpop.permute.xlu0 %1116
      %1118 = vrot.lane.b32.xlu0 %v1091, 59
      %v1119 = vpop.permute.xlu0 %1118
      %1120 = vrot.lane.b32.xlu0 %v1092, 59
      %v1121 = vpop.permute.xlu0 %1120
      %1122 = vrot.lane.b32.xlu0 %v1093, 59
      %v1123 = vpop.permute.xlu0 %1122
      %1124 = vrot.lane.b32.xlu0 %v1094, 59
      %v1125 = vpop.permute.xlu0 %1124
      %1126 = vrot.lane.b32.xlu0 %v1095, 59
      %v1127 = vpop.permute.xlu0 %1126
      %1128 = vrot.lane.b32.xlu0 %v1096, 59
      %v1129 = vpop.permute.xlu0 %1128
      %v1130 = vrot.slane %v1109, 4
      %v1131 = vrot.slane %v1111, 4
      %v1132 = vrot.slane %v1113, 4
      %v1133 = vrot.slane %v1115, 4
      %v1134 = vrot.slane %v1117, 4
      %v1135 = vrot.slane %v1119, 4
      %v1136 = vrot.slane %v1121, 4
      %v1137 = vrot.slane %v1123, 4
      %v1138 = vrot.slane %v1125, 4
      %v1139 = vrot.slane %v1127, 4
      %v1140 = vrot.slane %v1129, 4
      %v1141 = vsel %vm249, %v1130, %v1131
      %vm1142 = vcmask 482304
      %v1143 = vsel %vm1142, %v1109, %v1141
      %v1144 = vsel %vm249, %v1131, %v1132
      %v1145 = vsel %vm1142, %v1111, %v1144
      %v1146 = vsel %vm249, %v1132, %v1133
      %v1147 = vsel %vm1142, %v1113, %v1146
      %v1148 = vsel %vm249, %v1133, %v1134
      %v1149 = vsel %vm1142, %v1115, %v1148
      %v1150 = vsel %vm249, %v1134, %v1135
      %v1151 = vsel %vm1142, %v1117, %v1150
      %v1152 = vsel %vm249, %v1135, %v1136
      %v1153 = vsel %vm1142, %v1119, %v1152
      %v1154 = vsel %vm249, %v1136, %v1137
      %v1155 = vsel %vm1142, %v1121, %v1154
      %v1156 = vsel %vm249, %v1137, %v1138
      %v1157 = vsel %vm1142, %v1123, %v1156
      %v1158 = vsel %vm249, %v1138, %v1139
      %v1159 = vsel %vm1142, %v1125, %v1158
      %v1160 = vsel %vm249, %v1139, %v1140
      %v1161 = vsel %vm1142, %v1127, %v1160
      %v1162 = vsel %vm1142, %v1129, %v1140
      %1174 = vst [vmem:[#allocation2 + $0x348] sm:$0xff] %v1143
      %1175 = vst [vmem:[#allocation2 + $0x350] sm:$0xff] %v1145
      %1176 = vst [vmem:[#allocation2 + $0x358] sm:$0xff] %v1147
      %1177 = vst [vmem:[#allocation2 + $0x360] sm:$0xff] %v1149
      %1178 = vst [vmem:[#allocation2 + $0x368] sm:$0xff] %v1151
      %1179 = vst [vmem:[#allocation2 + $0x370] sm:$0xff] %v1153
      %1180 = vst [vmem:[#allocation2 + $0x378] sm:$0xff] %v1155
      %1181 = vst [vmem:[#allocation2 + $0x380] sm:$0xff] %v1157
      %1182 = vst [vmem:[#allocation2 + $0x388] sm:$0xff] %v1159
      %1183 = vst [vmem:[#allocation2 + $0x390] sm:$0xff] %v1161
      %1184 = vst [vmem:[#allocation2 + $0x398] sm:$0xf] %v1162
      %v1185 = vld [vmem:[%s165 + $0x8] sm:$0xff]
      %v1186 = vld [vmem:[%s165 + $0x10] sm:$0xff]
      %v1187 = vld [vmem:[%s165 + $0x18] sm:$0xff]
      %v1188 = vld [vmem:[%s165 + $0x20] sm:$0xff]
      %v1189 = vld [vmem:[%s165 + $0x28] sm:$0xff]
      %v1190 = vld [vmem:[%s165 + $0x30] sm:$0xff]
      %v1191 = vld [vmem:[%s165 + $0x38] sm:$0xff]
      %v1192 = vld [vmem:[%s165 + $0x40] sm:$0xff]
      %v1193 = vld [vmem:[%s165 + $0x48] sm:$0xff]
      %v1194 = vld [vmem:[%s165 + $0x50] sm:$0xff]
      %v1195 = vld [vmem:[%s165 + $0x58] sm:$0xff]
      %1207 = vrot.lane.b32.xlu0 %v1185, 58
      %v1208 = vpop.permute.xlu0 %1207
      %1209 = vrot.lane.b32.xlu0 %v1186, 58
      %v1210 = vpop.permute.xlu0 %1209
      %1211 = vrot.lane.b32.xlu0 %v1187, 58
      %v1212 = vpop.permute.xlu0 %1211
      %1213 = vrot.lane.b32.xlu0 %v1188, 58
      %v1214 = vpop.permute.xlu0 %1213
      %1215 = vrot.lane.b32.xlu0 %v1189, 58
      %v1216 = vpop.permute.xlu0 %1215
      %1217 = vrot.lane.b32.xlu0 %v1190, 58
      %v1218 = vpop.permute.xlu0 %1217
      %1219 = vrot.lane.b32.xlu0 %v1191, 58
      %v1220 = vpop.permute.xlu0 %1219
      %1221 = vrot.lane.b32.xlu0 %v1192, 58
      %v1222 = vpop.permute.xlu0 %1221
      %1223 = vrot.lane.b32.xlu0 %v1193, 58
      %v1224 = vpop.permute.xlu0 %1223
      %1225 = vrot.lane.b32.xlu0 %v1194, 58
      %v1226 = vpop.permute.xlu0 %1225
      %1227 = vrot.lane.b32.xlu0 %v1195, 58
      %v1228 = vpop.permute.xlu0 %1227
      %v1229 = vrot.slane %v1208, 4
      %v1230 = vrot.slane %v1210, 4
      %v1231 = vrot.slane %v1212, 4
      %v1232 = vrot.slane %v1214, 4
      %v1233 = vrot.slane %v1216, 4
      %v1234 = vrot.slane %v1218, 4
      %v1235 = vrot.slane %v1220, 4
      %v1236 = vrot.slane %v1222, 4
      %v1237 = vrot.slane %v1224, 4
      %v1238 = vrot.slane %v1226, 4
      %v1239 = vrot.slane %v1228, 4
      %v1240 = vsel %vm249, %v1229, %v1230
      %vm1241 = vcmask 474112
      %v1242 = vsel %vm1241, %v1208, %v1240
      %v1243 = vsel %vm249, %v1230, %v1231
      %v1244 = vsel %vm1241, %v1210, %v1243
      %v1245 = vsel %vm249, %v1231, %v1232
      %v1246 = vsel %vm1241, %v1212, %v1245
      %v1247 = vsel %vm249, %v1232, %v1233
      %v1248 = vsel %vm1241, %v1214, %v1247
      %v1249 = vsel %vm249, %v1233, %v1234
      %v1250 = vsel %vm1241, %v1216, %v1249
      %v1251 = vsel %vm249, %v1234, %v1235
      %v1252 = vsel %vm1241, %v1218, %v1251
      %v1253 = vsel %vm249, %v1235, %v1236
      %v1254 = vsel %vm1241, %v1220, %v1253
      %v1255 = vsel %vm249, %v1236, %v1237
      %v1256 = vsel %vm1241, %v1222, %v1255
      %v1257 = vsel %vm249, %v1237, %v1238
      %v1258 = vsel %vm1241, %v1224, %v1257
      %v1259 = vsel %vm249, %v1238, %v1239
      %v1260 = vsel %vm1241, %v1226, %v1259
      %v1261 = vsel %vm1241, %v1228, %v1239
      %1273 = vst [vmem:[#allocation2 + $0x39c] sm:$0xff] %v1242
      %1274 = vst [vmem:[#allocation2 + $0x3a4] sm:$0xff] %v1244
      %1275 = vst [vmem:[#allocation2 + $0x3ac] sm:$0xff] %v1246
      %1276 = vst [vmem:[#allocation2 + $0x3b4] sm:$0xff] %v1248
      %1277 = vst [vmem:[#allocation2 + $0x3bc] sm:$0xff] %v1250
      %1278 = vst [vmem:[#allocation2 + $0x3c4] sm:$0xff] %v1252
      %1279 = vst [vmem:[#allocation2 + $0x3cc] sm:$0xff] %v1254
      %1280 = vst [vmem:[#allocation2 + $0x3d4] sm:$0xff] %v1256
      %1281 = vst [vmem:[#allocation2 + $0x3dc] sm:$0xff] %v1258
      %1282 = vst [vmem:[#allocation2 + $0x3e4] sm:$0xff] %v1260
      %1283 = vst [vmem:[#allocation2 + $0x3ec] sm:$0xf] %v1261
      %v1284 = vld [vmem:[%s165 + $0x8] sm:$0xff]
      %v1285 = vld [vmem:[%s165 + $0x10] sm:$0xff]
      %v1286 = vld [vmem:[%s165 + $0x18] sm:$0xff]
      %v1287 = vld [vmem:[%s165 + $0x20] sm:$0xff]
      %v1288 = vld [vmem:[%s165 + $0x28] sm:$0xff]
      %v1289 = vld [vmem:[%s165 + $0x30] sm:$0xff]
      %v1290 = vld [vmem:[%s165 + $0x38] sm:$0xff]
      %v1291 = vld [vmem:[%s165 + $0x40] sm:$0xff]
      %v1292 = vld [vmem:[%s165 + $0x48] sm:$0xff]
      %v1293 = vld [vmem:[%s165 + $0x50] sm:$0xff]
      %v1294 = vld [vmem:[%s165 + $0x58] sm:$0xff]
      %1306 = vrot.lane.b32.xlu0 %v1284, 42
      %v1307 = vpop.permute.xlu0 %1306
      %1308 = vrot.lane.b32.xlu0 %v1285, 42
      %v1309 = vpop.permute.xlu0 %1308
      %1310 = vrot.lane.b32.xlu0 %v1286, 42
      %v1311 = vpop.permute.xlu0 %1310
      %1312 = vrot.lane.b32.xlu0 %v1287, 42
      %v1313 = vpop.permute.xlu0 %1312
      %1314 = vrot.lane.b32.xlu0 %v1288, 42
      %v1315 = vpop.permute.xlu0 %1314
      %1316 = vrot.lane.b32.xlu0 %v1289, 42
      %v1317 = vpop.permute.xlu0 %1316
      %1318 = vrot.lane.b32.xlu0 %v1290, 42
      %v1319 = vpop.permute.xlu0 %1318
      %1320 = vrot.lane.b32.xlu0 %v1291, 42
      %v1321 = vpop.permute.xlu0 %1320
      %1322 = vrot.lane.b32.xlu0 %v1292, 42
      %v1323 = vpop.permute.xlu0 %1322
      %1324 = vrot.lane.b32.xlu0 %v1293, 42
      %v1325 = vpop.permute.xlu0 %1324
      %1326 = vrot.lane.b32.xlu0 %v1294, 42
      %v1327 = vpop.permute.xlu0 %1326
      %v1328 = vrot.slane %v1307, 4
      %v1329 = vrot.slane %v1309, 4
      %v1330 = vrot.slane %v1311, 4
      %v1331 = vrot.slane %v1313, 4
      %v1332 = vrot.slane %v1315, 4
      %v1333 = vrot.slane %v1317, 4
      %v1334 = vrot.slane %v1319, 4
      %v1335 = vrot.slane %v1321, 4
      %v1336 = vrot.slane %v1323, 4
      %v1337 = vrot.slane %v1325, 4
      %v1338 = vrot.slane %v1327, 4
      %v1339 = vsel %vm249, %v1328, %v1329
      %vm1340 = vcmask 343040
      %v1341 = vsel %vm1340, %v1307, %v1339
      %v1342 = vsel %vm249, %v1329, %v1330
      %v1343 = vsel %vm1340, %v1309, %v1342
      %v1344 = vsel %vm249, %v1330, %v1331
      %v1345 = vsel %vm1340, %v1311, %v1344
      %v1346 = vsel %vm249, %v1331, %v1332
      %v1347 = vsel %vm1340, %v1313, %v1346
      %v1348 = vsel %vm249, %v1332, %v1333
      %v1349 = vsel %vm1340, %v1315, %v1348
      %v1350 = vsel %vm249, %v1333, %v1334
      %v1351 = vsel %vm1340, %v1317, %v1350
      %v1352 = vsel %vm249, %v1334, %v1335
      %v1353 = vsel %vm1340, %v1319, %v1352
      %v1354 = vsel %vm249, %v1335, %v1336
      %v1355 = vsel %vm1340, %v1321, %v1354
      %v1356 = vsel %vm249, %v1336, %v1337
      %v1357 = vsel %vm1340, %v1323, %v1356
      %v1358 = vsel %vm249, %v1337, %v1338
      %v1359 = vsel %vm1340, %v1325, %v1358
      %v1360 = vsel %vm1340, %v1327, %v1338
      %1372 = vst [vmem:[#allocation2 + $0x3f0] sm:$0xff] %v1341
      %1373 = vst [vmem:[#allocation2 + $0x3f8] sm:$0xff] %v1343
      %1374 = vst [vmem:[#allocation2 + $0x400] sm:$0xff] %v1345
      %1375 = vst [vmem:[#allocation2 + $0x408] sm:$0xff] %v1347
      %1376 = vst [vmem:[#allocation2 + $0x410] sm:$0xff] %v1349
      %1377 = vst [vmem:[#allocation2 + $0x418] sm:$0xff] %v1351
      %1378 = vst [vmem:[#allocation2 + $0x420] sm:$0xff] %v1353
      %1379 = vst [vmem:[#allocation2 + $0x428] sm:$0xff] %v1355
      %1380 = vst [vmem:[#allocation2 + $0x430] sm:$0xff] %v1357
      %1381 = vst [vmem:[#allocation2 + $0x438] sm:$0xff] %v1359
      %1382 = vst [vmem:[#allocation2 + $0x440] sm:$0xf] %v1360
      %v1383 = vld [vmem:[%s165 + $0x8] sm:$0xff]
      %v1384 = vld [vmem:[%s165 + $0x10] sm:$0xff]
      %v1385 = vld [vmem:[%s165 + $0x18] sm:$0xff]
      %v1386 = vld [vmem:[%s165 + $0x20] sm:$0xff]
      %v1387 = vld [vmem:[%s165 + $0x28] sm:$0xff]
      %v1388 = vld [vmem:[%s165 + $0x30] sm:$0xff]
      %v1389 = vld [vmem:[%s165 + $0x38] sm:$0xff]
      %v1390 = vld [vmem:[%s165 + $0x40] sm:$0xff]
      %v1391 = vld [vmem:[%s165 + $0x48] sm:$0xff]
      %v1392 = vld [vmem:[%s165 + $0x50] sm:$0xff]
      %v1393 = vld [vmem:[%s165 + $0x58] sm:$0xff]
      %1405 = vrot.lane.b32.xlu0 %v1383, 41
      %v1406 = vpop.permute.xlu0 %1405
      %1407 = vrot.lane.b32.xlu0 %v1384, 41
      %v1408 = vpop.permute.xlu0 %1407
      %1409 = vrot.lane.b32.xlu0 %v1385, 41
      %v1410 = vpop.permute.xlu0 %1409
      %1411 = vrot.lane.b32.xlu0 %v1386, 41
      %v1412 = vpop.permute.xlu0 %1411
      %1413 = vrot.lane.b32.xlu0 %v1387, 41
      %v1414 = vpop.permute.xlu0 %1413
      %1415 = vrot.lane.b32.xlu0 %v1388, 41
      %v1416 = vpop.permute.xlu0 %1415
      %1417 = vrot.lane.b32.xlu0 %v1389, 41
      %v1418 = vpop.permute.xlu0 %1417
      %1419 = vrot.lane.b32.xlu0 %v1390, 41
      %v1420 = vpop.permute.xlu0 %1419
      %1421 = vrot.lane.b32.xlu0 %v1391, 41
      %v1422 = vpop.permute.xlu0 %1421
      %1423 = vrot.lane.b32.xlu0 %v1392, 41
      %v1424 = vpop.permute.xlu0 %1423
      %1425 = vrot.lane.b32.xlu0 %v1393, 41
      %v1426 = vpop.permute.xlu0 %1425
      %v1427 = vrot.slane %v1406, 4
      %v1428 = vrot.slane %v1408, 4
      %v1429 = vrot.slane %v1410, 4
      %v1430 = vrot.slane %v1412, 4
      %v1431 = vrot.slane %v1414, 4
      %v1432 = vrot.slane %v1416, 4
      %v1433 = vrot.slane %v1418, 4
      %v1434 = vrot.slane %v1420, 4
      %v1435 = vrot.slane %v1422, 4
      %v1436 = vrot.slane %v1424, 4
      %v1437 = vrot.slane %v1426, 4
      %v1438 = vsel %vm249, %v1427, %v1428
      %vm1439 = vcmask 334848
      %v1440 = vsel %vm1439, %v1406, %v1438
      %v1441 = vsel %vm249, %v1428, %v1429
      %v1442 = vsel %vm1439, %v1408, %v1441
      %v1443 = vsel %vm249, %v1429, %v1430
      %v1444 = vsel %vm1439, %v1410, %v1443
      %v1445 = vsel %vm249, %v1430, %v1431
      %v1446 = vsel %vm1439, %v1412, %v1445
      %v1447 = vsel %vm249, %v1431, %v1432
      %v1448 = vsel %vm1439, %v1414, %v1447
      %v1449 = vsel %vm249, %v1432, %v1433
      %v1450 = vsel %vm1439, %v1416, %v1449
      %v1451 = vsel %vm249, %v1433, %v1434
      %v1452 = vsel %vm1439, %v1418, %v1451
      %v1453 = vsel %vm249, %v1434, %v1435
      %v1454 = vsel %vm1439, %v1420, %v1453
      %v1455 = vsel %vm249, %v1435, %v1436
      %v1456 = vsel %vm1439, %v1422, %v1455
      %v1457 = vsel %vm249, %v1436, %v1437
      %v1458 = vsel %vm1439, %v1424, %v1457
      %v1459 = vsel %vm1439, %v1426, %v1437
      %1471 = vst [vmem:[#allocation2 + $0x444] sm:$0xff] %v1440
      %1472 = vst [vmem:[#allocation2 + $0x44c] sm:$0xff] %v1442
      %1473 = vst [vmem:[#allocation2 + $0x454] sm:$0xff] %v1444
      %1474 = vst [vmem:[#allocation2 + $0x45c] sm:$0xff] %v1446
      %1475 = vst [vmem:[#allocation2 + $0x464] sm:$0xff] %v1448
      %1476 = vst [vmem:[#allocation2 + $0x46c] sm:$0xff] %v1450
      %1477 = vst [vmem:[#allocation2 + $0x474] sm:$0xff] %v1452
      %1478 = vst [vmem:[#allocation2 + $0x47c] sm:$0xff] %v1454
      %1479 = vst [vmem:[#allocation2 + $0x484] sm:$0xff] %v1456
      %1480 = vst [vmem:[#allocation2 + $0x48c] sm:$0xff] %v1458
      %1481 = vst [vmem:[#allocation2 + $0x494] sm:$0xf] %v1459
      %v1482 = vld [vmem:[%s165 + $0x8] sm:$0xff]
      %v1483 = vld [vmem:[%s165 + $0x10] sm:$0xff]
      %v1484 = vld [vmem:[%s165 + $0x18] sm:$0xff]
      %v1485 = vld [vmem:[%s165 + $0x20] sm:$0xff]
      %v1486 = vld [vmem:[%s165 + $0x28] sm:$0xff]
      %v1487 = vld [vmem:[%s165 + $0x30] sm:$0xff]
      %v1488 = vld [vmem:[%s165 + $0x38] sm:$0xff]
      %v1489 = vld [vmem:[%s165 + $0x40] sm:$0xff]
      %v1490 = vld [vmem:[%s165 + $0x48] sm:$0xff]
      %v1491 = vld [vmem:[%s165 + $0x50] sm:$0xff]
      %v1492 = vld [vmem:[%s165 + $0x58] sm:$0xff]
      %1504 = vrot.lane.b32.xlu0 %v1482, 40
      %v1505 = vpop.permute.xlu0 %1504
      %1506 = vrot.lane.b32.xlu0 %v1483, 40
      %v1507 = vpop.permute.xlu0 %1506
      %1508 = vrot.lane.b32.xlu0 %v1484, 40
      %v1509 = vpop.permute.xlu0 %1508
      %1510 = vrot.lane.b32.xlu0 %v1485, 40
      %v1511 = vpop.permute.xlu0 %1510
      %1512 = vrot.lane.b32.xlu0 %v1486, 40
      %v1513 = vpop.permute.xlu0 %1512
      %1514 = vrot.lane.b32.xlu0 %v1487, 40
      %v1515 = vpop.permute.xlu0 %1514
      %1516 = vrot.lane.b32.xlu0 %v1488, 40
      %v1517 = vpop.permute.xlu0 %1516
      %1518 = vrot.lane.b32.xlu0 %v1489, 40
      %v1519 = vpop.permute.xlu0 %1518
      %1520 = vrot.lane.b32.xlu0 %v1490, 40
      %v1521 = vpop.permute.xlu0 %1520
      %1522 = vrot.lane.b32.xlu0 %v1491, 40
      %v1523 = vpop.permute.xlu0 %1522
      %1524 = vrot.lane.b32.xlu0 %v1492, 40
      %v1525 = vpop.permute.xlu0 %1524
      %v1526 = vrot.slane %v1505, 4
      %v1527 = vrot.slane %v1507, 4
      %v1528 = vrot.slane %v1509, 4
      %v1529 = vrot.slane %v1511, 4
      %v1530 = vrot.slane %v1513, 4
      %v1531 = vrot.slane %v1515, 4
      %v1532 = vrot.slane %v1517, 4
      %v1533 = vrot.slane %v1519, 4
      %v1534 = vrot.slane %v1521, 4
      %v1535 = vrot.slane %v1523, 4
      %v1536 = vrot.slane %v1525, 4
      %v1537 = vsel %vm249, %v1526, %v1527
      %vm1538 = vcmask 326656
      %v1539 = vsel %vm1538, %v1505, %v1537
      %v1540 = vsel %vm249, %v1527, %v1528
      %v1541 = vsel %vm1538, %v1507, %v1540
      %v1542 = vsel %vm249, %v1528, %v1529
      %v1543 = vsel %vm1538, %v1509, %v1542
      %v1544 = vsel %vm249, %v1529, %v1530
      %v1545 = vsel %vm1538, %v1511, %v1544
      %v1546 = vsel %vm249, %v1530, %v1531
      %v1547 = vsel %vm1538, %v1513, %v1546
      %v1548 = vsel %vm249, %v1531, %v1532
      %v1549 = vsel %vm1538, %v1515, %v1548
      %v1550 = vsel %vm249, %v1532, %v1533
      %v1551 = vsel %vm1538, %v1517, %v1550
      %v1552 = vsel %vm249, %v1533, %v1534
      %v1553 = vsel %vm1538, %v1519, %v1552
      %v1554 = vsel %vm249, %v1534, %v1535
      %v1555 = vsel %vm1538, %v1521, %v1554
      %v1556 = vsel %vm249, %v1535, %v1536
      %v1557 = vsel %vm1538, %v1523, %v1556
      %v1558 = vsel %vm1538, %v1525, %v1536
      %1570 = vst [vmem:[#allocation2 + $0x498] sm:$0xff] %v1539
      %1571 = vst [vmem:[#allocation2 + $0x4a0] sm:$0xff] %v1541
      %1572 = vst [vmem:[#allocation2 + $0x4a8] sm:$0xff] %v1543
      %1573 = vst [vmem:[#allocation2 + $0x4b0] sm:$0xff] %v1545
      %1574 = vst [vmem:[#allocation2 + $0x4b8] sm:$0xff] %v1547
      %1575 = vst [vmem:[#allocation2 + $0x4c0] sm:$0xff] %v1549
      %1576 = vst [vmem:[#allocation2 + $0x4c8] sm:$0xff] %v1551
      %1577 = vst [vmem:[#allocation2 + $0x4d0] sm:$0xff] %v1553
      %1578 = vst [vmem:[#allocation2 + $0x4d8] sm:$0xff] %v1555
      %1579 = vst [vmem:[#allocation2 + $0x4e0] sm:$0xff] %v1557
      %1580 = vst [vmem:[#allocation2 + $0x4e8] sm:$0xf] %v1558
      %v1581 = vld [vmem:[%s165 + $0x8] sm:$0xff]
      %v1582 = vld [vmem:[%s165 + $0x10] sm:$0xff]
      %v1583 = vld [vmem:[%s165 + $0x18] sm:$0xff]
      %v1584 = vld [vmem:[%s165 + $0x20] sm:$0xff]
      %v1585 = vld [vmem:[%s165 + $0x28] sm:$0xff]
      %v1586 = vld [vmem:[%s165 + $0x30] sm:$0xff]
      %v1587 = vld [vmem:[%s165 + $0x38] sm:$0xff]
      %v1588 = vld [vmem:[%s165 + $0x40] sm:$0xff]
      %v1589 = vld [vmem:[%s165 + $0x48] sm:$0xff]
      %v1590 = vld [vmem:[%s165 + $0x50] sm:$0xff]
      %v1591 = vld [vmem:[%s165 + $0x58] sm:$0xff]
      %1603 = vrot.lane.b32.xlu0 %v1581, 24
      %v1604 = vpop.permute.xlu0 %1603
      %1605 = vrot.lane.b32.xlu0 %v1582, 24
      %v1606 = vpop.permute.xlu0 %1605
      %1607 = vrot.lane.b32.xlu0 %v1583, 24
      %v1608 = vpop.permute.xlu0 %1607
      %1609 = vrot.lane.b32.xlu0 %v1584, 24
      %v1610 = vpop.permute.xlu0 %1609
      %1611 = vrot.lane.b32.xlu0 %v1585, 24
      %v1612 = vpop.permute.xlu0 %1611
      %1613 = vrot.lane.b32.xlu0 %v1586, 24
      %v1614 = vpop.permute.xlu0 %1613
      %1615 = vrot.lane.b32.xlu0 %v1587, 24
      %v1616 = vpop.permute.xlu0 %1615
      %1617 = vrot.lane.b32.xlu0 %v1588, 24
      %v1618 = vpop.permute.xlu0 %1617
      %1619 = vrot.lane.b32.xlu0 %v1589, 24
      %v1620 = vpop.permute.xlu0 %1619
      %1621 = vrot.lane.b32.xlu0 %v1590, 24
      %v1622 = vpop.permute.xlu0 %1621
      %1623 = vrot.lane.b32.xlu0 %v1591, 24
      %v1624 = vpop.permute.xlu0 %1623
      %v1625 = vrot.slane %v1604, 4
      %v1626 = vrot.slane %v1606, 4
      %v1627 = vrot.slane %v1608, 4
      %v1628 = vrot.slane %v1610, 4
      %v1629 = vrot.slane %v1612, 4
      %v1630 = vrot.slane %v1614, 4
      %v1631 = vrot.slane %v1616, 4
      %v1632 = vrot.slane %v1618, 4
      %v1633 = vrot.slane %v1620, 4
      %v1634 = vrot.slane %v1622, 4
      %v1635 = vrot.slane %v1624, 4
      %v1636 = vsel %vm249, %v1625, %v1626
      %vm1637 = vcmask 195584
      %v1638 = vsel %vm1637, %v1604, %v1636
      %v1639 = vsel %vm249, %v1626, %v1627
      %v1640 = vsel %vm1637, %v1606, %v1639
      %v1641 = vsel %vm249, %v1627, %v1628
      %v1642 = vsel %vm1637, %v1608, %v1641
      %v1643 = vsel %vm249, %v1628, %v1629
      %v1644 = vsel %vm1637, %v1610, %v1643
      %v1645 = vsel %vm249, %v1629, %v1630
      %v1646 = vsel %vm1637, %v1612, %v1645
      %v1647 = vsel %vm249, %v1630, %v1631
      %v1648 = vsel %vm1637, %v1614, %v1647
      %v1649 = vsel %vm249, %v1631, %v1632
      %v1650 = vsel %vm1637, %v1616, %v1649
      %v1651 = vsel %vm249, %v1632, %v1633
      %v1652 = vsel %vm1637, %v1618, %v1651
      %v1653 = vsel %vm249, %v1633, %v1634
      %v1654 = vsel %vm1637, %v1620, %v1653
      %v1655 = vsel %vm249, %v1634, %v1635
      %v1656 = vsel %vm1637, %v1622, %v1655
      %v1657 = vsel %vm1637, %v1624, %v1635
      %1669 = vst [vmem:[#allocation2 + $0x4ec] sm:$0xff] %v1638
      %1670 = vst [vmem:[#allocation2 + $0x4f4] sm:$0xff] %v1640
      %1671 = vst [vmem:[#allocation2 + $0x4fc] sm:$0xff] %v1642
      %1672 = vst [vmem:[#allocation2 + $0x504] sm:$0xff] %v1644
      %1673 = vst [vmem:[#allocation2 + $0x50c] sm:$0xff] %v1646
      %1674 = vst [vmem:[#allocation2 + $0x514] sm:$0xff] %v1648
      %1675 = vst [vmem:[#allocation2 + $0x51c] sm:$0xff] %v1650
      %1676 = vst [vmem:[#allocation2 + $0x524] sm:$0xff] %v1652
      %1677 = vst [vmem:[#allocation2 + $0x52c] sm:$0xff] %v1654
      %1678 = vst [vmem:[#allocation2 + $0x534] sm:$0xff] %v1656
      %1679 = vst [vmem:[#allocation2 + $0x53c] sm:$0xf] %v1657
      %v1680 = vld [vmem:[%s165 + $0x8] sm:$0xff]
      %v1681 = vld [vmem:[%s165 + $0x10] sm:$0xff]
      %v1682 = vld [vmem:[%s165 + $0x18] sm:$0xff]
      %v1683 = vld [vmem:[%s165 + $0x20] sm:$0xff]
      %v1684 = vld [vmem:[%s165 + $0x28] sm:$0xff]
      %v1685 = vld [vmem:[%s165 + $0x30] sm:$0xff]
      %v1686 = vld [vmem:[%s165 + $0x38] sm:$0xff]
      %v1687 = vld [vmem:[%s165 + $0x40] sm:$0xff]
      %v1688 = vld [vmem:[%s165 + $0x48] sm:$0xff]
      %v1689 = vld [vmem:[%s165 + $0x50] sm:$0xff]
      %v1690 = vld [vmem:[%s165 + $0x58] sm:$0xff]
      %1702 = vrot.lane.b32.xlu0 %v1680, 23
      %v1703 = vpop.permute.xlu0 %1702
      %1704 = vrot.lane.b32.xlu0 %v1681, 23
      %v1705 = vpop.permute.xlu0 %1704
      %1706 = vrot.lane.b32.xlu0 %v1682, 23
      %v1707 = vpop.permute.xlu0 %1706
      %1708 = vrot.lane.b32.xlu0 %v1683, 23
      %v1709 = vpop.permute.xlu0 %1708
      %1710 = vrot.lane.b32.xlu0 %v1684, 23
      %v1711 = vpop.permute.xlu0 %1710
      %1712 = vrot.lane.b32.xlu0 %v1685, 23
      %v1713 = vpop.permute.xlu0 %1712
      %1714 = vrot.lane.b32.xlu0 %v1686, 23
      %v1715 = vpop.permute.xlu0 %1714
      %1716 = vrot.lane.b32.xlu0 %v1687, 23
      %v1717 = vpop.permute.xlu0 %1716
      %1718 = vrot.lane.b32.xlu0 %v1688, 23
      %v1719 = vpop.permute.xlu0 %1718
      %1720 = vrot.lane.b32.xlu0 %v1689, 23
      %v1721 = vpop.permute.xlu0 %1720
      %1722 = vrot.lane.b32.xlu0 %v1690, 23
      %v1723 = vpop.permute.xlu0 %1722
      %v1724 = vrot.slane %v1703, 4
      %v1725 = vrot.slane %v1705, 4
      %v1726 = vrot.slane %v1707, 4
      %v1727 = vrot.slane %v1709, 4
      %v1728 = vrot.slane %v1711, 4
      %v1729 = vrot.slane %v1713, 4
      %v1730 = vrot.slane %v1715, 4
      %v1731 = vrot.slane %v1717, 4
      %v1732 = vrot.slane %v1719, 4
      %v1733 = vrot.slane %v1721, 4
      %v1734 = vrot.slane %v1723, 4
      %v1735 = vsel %vm249, %v1724, %v1725
      %vm1736 = vcmask 187392
      %v1737 = vsel %vm1736, %v1703, %v1735
      %v1738 = vsel %vm249, %v1725, %v1726
      %v1739 = vsel %vm1736, %v1705, %v1738
      %v1740 = vsel %vm249, %v1726, %v1727
      %v1741 = vsel %vm1736, %v1707, %v1740
      %v1742 = vsel %vm249, %v1727, %v1728
      %v1743 = vsel %vm1736, %v1709, %v1742
      %v1744 = vsel %vm249, %v1728, %v1729
      %v1745 = vsel %vm1736, %v1711, %v1744
      %v1746 = vsel %vm249, %v1729, %v1730
      %v1747 = vsel %vm1736, %v1713, %v1746
      %v1748 = vsel %vm249, %v1730, %v1731
      %v1749 = vsel %vm1736, %v1715, %v1748
      %v1750 = vsel %vm249, %v1731, %v1732
      %v1751 = vsel %vm1736, %v1717, %v1750
      %v1752 = vsel %vm249, %v1732, %v1733
      %v1753 = vsel %vm1736, %v1719, %v1752
      %v1754 = vsel %vm249, %v1733, %v1734
      %v1755 = vsel %vm1736, %v1721, %v1754
      %v1756 = vsel %vm1736, %v1723, %v1734
      %1768 = vst [vmem:[#allocation2 + $0x540] sm:$0xff] %v1737
      %1769 = vst [vmem:[#allocation2 + $0x548] sm:$0xff] %v1739
      %1770 = vst [vmem:[#allocation2 + $0x550] sm:$0xff] %v1741
      %1771 = vst [vmem:[#allocation2 + $0x558] sm:$0xff] %v1743
      %1772 = vst [vmem:[#allocation2 + $0x560] sm:$0xff] %v1745
      %1773 = vst [vmem:[#allocation2 + $0x568] sm:$0xff] %v1747
      %1774 = vst [vmem:[#allocation2 + $0x570] sm:$0xff] %v1749
      %1775 = vst [vmem:[#allocation2 + $0x578] sm:$0xff] %v1751
      %1776 = vst [vmem:[#allocation2 + $0x580] sm:$0xff] %v1753
      %1777 = vst [vmem:[#allocation2 + $0x588] sm:$0xff] %v1755
      %1778 = vst [vmem:[#allocation2 + $0x590] sm:$0xf] %v1756
      %v1779 = vld [vmem:[%s165 + $0x8] sm:$0xff]
      %v1780 = vld [vmem:[%s165 + $0x10] sm:$0xff]
      %v1781 = vld [vmem:[%s165 + $0x18] sm:$0xff]
      %v1782 = vld [vmem:[%s165 + $0x20] sm:$0xff]
      %v1783 = vld [vmem:[%s165 + $0x28] sm:$0xff]
      %v1784 = vld [vmem:[%s165 + $0x30] sm:$0xff]
      %v1785 = vld [vmem:[%s165 + $0x38] sm:$0xff]
      %v1786 = vld [vmem:[%s165 + $0x40] sm:$0xff]
      %v1787 = vld [vmem:[%s165 + $0x48] sm:$0xff]
      %v1788 = vld [vmem:[%s165 + $0x50] sm:$0xff]
      %v1789 = vld [vmem:[%s165 + $0x58] sm:$0xff]
      %1801 = vrot.lane.b32.xlu0 %v1779, 22
      %v1802 = vpop.permute.xlu0 %1801
      %1803 = vrot.lane.b32.xlu0 %v1780, 22
      %v1804 = vpop.permute.xlu0 %1803
      %1805 = vrot.lane.b32.xlu0 %v1781, 22
      %v1806 = vpop.permute.xlu0 %1805
      %1807 = vrot.lane.b32.xlu0 %v1782, 22
      %v1808 = vpop.permute.xlu0 %1807
      %1809 = vrot.lane.b32.xlu0 %v1783, 22
      %v1810 = vpop.permute.xlu0 %1809
      %1811 = vrot.lane.b32.xlu0 %v1784, 22
      %v1812 = vpop.permute.xlu0 %1811
      %1813 = vrot.lane.b32.xlu0 %v1785, 22
      %v1814 = vpop.permute.xlu0 %1813
      %1815 = vrot.lane.b32.xlu0 %v1786, 22
      %v1816 = vpop.permute.xlu0 %1815
      %1817 = vrot.lane.b32.xlu0 %v1787, 22
      %v1818 = vpop.permute.xlu0 %1817
      %1819 = vrot.lane.b32.xlu0 %v1788, 22
      %v1820 = vpop.permute.xlu0 %1819
      %1821 = vrot.lane.b32.xlu0 %v1789, 22
      %v1822 = vpop.permute.xlu0 %1821
      %v1823 = vrot.slane %v1802, 4
      %v1824 = vrot.slane %v1804, 4
      %v1825 = vrot.slane %v1806, 4
      %v1826 = vrot.slane %v1808, 4
      %v1827 = vrot.slane %v1810, 4
      %v1828 = vrot.slane %v1812, 4
      %v1829 = vrot.slane %v1814, 4
      %v1830 = vrot.slane %v1816, 4
      %v1831 = vrot.slane %v1818, 4
      %v1832 = vrot.slane %v1820, 4
      %v1833 = vrot.slane %v1822, 4
      %v1834 = vsel %vm249, %v1823, %v1824
      %vm1835 = vcmask 179200
      %v1836 = vsel %vm1835, %v1802, %v1834
      %v1837 = vsel %vm249, %v1824, %v1825
      %v1838 = vsel %vm1835, %v1804, %v1837
      %v1839 = vsel %vm249, %v1825, %v1826
      %v1840 = vsel %vm1835, %v1806, %v1839
      %v1841 = vsel %vm249, %v1826, %v1827
      %v1842 = vsel %vm1835, %v1808, %v1841
      %v1843 = vsel %vm249, %v1827, %v1828
      %v1844 = vsel %vm1835, %v1810, %v1843
      %v1845 = vsel %vm249, %v1828, %v1829
      %v1846 = vsel %vm1835, %v1812, %v1845
      %v1847 = vsel %vm249, %v1829, %v1830
      %v1848 = vsel %vm1835, %v1814, %v1847
      %v1849 = vsel %vm249, %v1830, %v1831
      %v1850 = vsel %vm1835, %v1816, %v1849
      %v1851 = vsel %vm249, %v1831, %v1832
      %v1852 = vsel %vm1835, %v1818, %v1851
      %v1853 = vsel %vm249, %v1832, %v1833
      %v1854 = vsel %vm1835, %v1820, %v1853
      %v1855 = vsel %vm1835, %v1822, %v1833
      %1867 = vst [vmem:[#allocation2 + $0x594] sm:$0xff] %v1836
      %1868 = vst [vmem:[#allocation2 + $0x59c] sm:$0xff] %v1838
      %1869 = vst [vmem:[#allocation2 + $0x5a4] sm:$0xff] %v1840
      %1870 = vst [vmem:[#allocation2 + $0x5ac] sm:$0xff] %v1842
      %1871 = vst [vmem:[#allocation2 + $0x5b4] sm:$0xff] %v1844
      %1872 = vst [vmem:[#allocation2 + $0x5bc] sm:$0xff] %v1846
      %1873 = vst [vmem:[#allocation2 + $0x5c4] sm:$0xff] %v1848
      %1874 = vst [vmem:[#allocation2 + $0x5cc] sm:$0xff] %v1850
      %1875 = vst [vmem:[#allocation2 + $0x5d4] sm:$0xff] %v1852
      %1876 = vst [vmem:[#allocation2 + $0x5dc] sm:$0xff] %v1854
      %1877 = vst [vmem:[#allocation2 + $0x5e4] sm:$0xf] %v1855
      %v1878 = vld [vmem:[%s165 + $0x14] sm:$0xff]
      %v1879 = vld [vmem:[%s165 + $0x1c] sm:$0xff]
      %v1880 = vld [vmem:[%s165 + $0x24] sm:$0xff]
      %v1881 = vld [vmem:[%s165 + $0x2c] sm:$0xff]
      %v1882 = vld [vmem:[%s165 + $0x34] sm:$0xff]
      %v1883 = vld [vmem:[%s165 + $0x3c] sm:$0xff]
      %v1884 = vld [vmem:[%s165 + $0x44] sm:$0xff]
      %v1885 = vld [vmem:[%s165 + $0x4c] sm:$0xff]
      %v1886 = vld [vmem:[%s165 + $0x54] sm:$0xff]
      %v1887 = vld [vmem:[%s165 + $0x5c] sm:$0xff]
      %v1888 = vld [vmem:[%s165 + $0x64] sm:$0xff]
      %1900 = vrot.lane.b32.xlu0 %v1878, 120
      %v1901 = vpop.permute.xlu0 %1900
      %1902 = vrot.lane.b32.xlu0 %v1879, 120
      %v1903 = vpop.permute.xlu0 %1902
      %1904 = vrot.lane.b32.xlu0 %v1880, 120
      %v1905 = vpop.permute.xlu0 %1904
      %1906 = vrot.lane.b32.xlu0 %v1881, 120
      %v1907 = vpop.permute.xlu0 %1906
      %1908 = vrot.lane.b32.xlu0 %v1882, 120
      %v1909 = vpop.permute.xlu0 %1908
      %1910 = vrot.lane.b32.xlu0 %v1883, 120
      %v1911 = vpop.permute.xlu0 %1910
      %1912 = vrot.lane.b32.xlu0 %v1884, 120
      %v1913 = vpop.permute.xlu0 %1912
      %1914 = vrot.lane.b32.xlu0 %v1885, 120
      %v1915 = vpop.permute.xlu0 %1914
      %1916 = vrot.lane.b32.xlu0 %v1886, 120
      %v1917 = vpop.permute.xlu0 %1916
      %1918 = vrot.lane.b32.xlu0 %v1887, 120
      %v1919 = vpop.permute.xlu0 %1918
      %1920 = vrot.lane.b32.xlu0 %v1888, 120
      %v1921 = vpop.permute.xlu0 %1920
      %v1922 = vrot.slane %v1901, 4
      %v1923 = vrot.slane %v1903, 4
      %v1924 = vrot.slane %v1905, 4
      %v1925 = vrot.slane %v1907, 4
      %v1926 = vrot.slane %v1909, 4
      %v1927 = vrot.slane %v1911, 4
      %v1928 = vrot.slane %v1913, 4
      %v1929 = vrot.slane %v1915, 4
      %v1930 = vrot.slane %v1917, 4
      %v1931 = vrot.slane %v1919, 4
      %v1932 = vrot.slane %v1921, 4
      %v1933 = vsel %vm249, %v1922, %v1923
      %vm1934 = vcmask 982016
      %v1935 = vsel %vm1934, %v1901, %v1933
      %v1936 = vsel %vm249, %v1923, %v1924
      %v1937 = vsel %vm1934, %v1903, %v1936
      %v1938 = vsel %vm249, %v1924, %v1925
      %v1939 = vsel %vm1934, %v1905, %v1938
      %v1940 = vsel %vm249, %v1925, %v1926
      %v1941 = vsel %vm1934, %v1907, %v1940
      %v1942 = vsel %vm249, %v1926, %v1927
      %v1943 = vsel %vm1934, %v1909, %v1942
      %v1944 = vsel %vm249, %v1927, %v1928
      %v1945 = vsel %vm1934, %v1911, %v1944
      %v1946 = vsel %vm249, %v1928, %v1929
      %v1947 = vsel %vm1934, %v1913, %v1946
      %v1948 = vsel %vm249, %v1929, %v1930
      %v1949 = vsel %vm1934, %v1915, %v1948
      %v1950 = vsel %vm249, %v1930, %v1931
      %v1951 = vsel %vm1934, %v1917, %v1950
      %v1952 = vsel %vm249, %v1931, %v1932
      %v1953 = vsel %vm1934, %v1919, %v1952
      %v1954 = vsel %vm1934, %v1921, %v1932
      %1966 = vst [vmem:[#allocation2 + $0x5e8] sm:$0xff] %v1935
      %1967 = vst [vmem:[#allocation2 + $0x5f0] sm:$0xff] %v1937
      %1968 = vst [vmem:[#allocation2 + $0x5f8] sm:$0xff] %v1939
      %1969 = vst [vmem:[#allocation2 + $0x600] sm:$0xff] %v1941
      %1970 = vst [vmem:[#allocation2 + $0x608] sm:$0xff] %v1943
      %1971 = vst [vmem:[#allocation2 + $0x610] sm:$0xff] %v1945
      %1972 = vst [vmem:[#allocation2 + $0x618] sm:$0xff] %v1947
      %1973 = vst [vmem:[#allocation2 + $0x620] sm:$0xff] %v1949
      %1974 = vst [vmem:[#allocation2 + $0x628] sm:$0xff] %v1951
      %1975 = vst [vmem:[#allocation2 + $0x630] sm:$0xff] %v1953
      %1976 = vst [vmem:[#allocation2 + $0x638] sm:$0xf] %v1954
      %v1977 = vld [vmem:[%s165 + $0x14] sm:$0xff]
      %v1978 = vld [vmem:[%s165 + $0x1c] sm:$0xff]
      %v1979 = vld [vmem:[%s165 + $0x24] sm:$0xff]
      %v1980 = vld [vmem:[%s165 + $0x2c] sm:$0xff]
      %v1981 = vld [vmem:[%s165 + $0x34] sm:$0xff]
      %v1982 = vld [vmem:[%s165 + $0x3c] sm:$0xff]
      %v1983 = vld [vmem:[%s165 + $0x44] sm:$0xff]
      %v1984 = vld [vmem:[%s165 + $0x4c] sm:$0xff]
      %v1985 = vld [vmem:[%s165 + $0x54] sm:$0xff]
      %v1986 = vld [vmem:[%s165 + $0x5c] sm:$0xff]
      %v1987 = vld [vmem:[%s165 + $0x64] sm:$0xff]
      %1999 = vrot.lane.b32.xlu0 %v1977, 119
      %v2000 = vpop.permute.xlu0 %1999
      %2001 = vrot.lane.b32.xlu0 %v1978, 119
      %v2002 = vpop.permute.xlu0 %2001
      %2003 = vrot.lane.b32.xlu0 %v1979, 119
      %v2004 = vpop.permute.xlu0 %2003
      %2005 = vrot.lane.b32.xlu0 %v1980, 119
      %v2006 = vpop.permute.xlu0 %2005
      %2007 = vrot.lane.b32.xlu0 %v1981, 119
      %v2008 = vpop.permute.xlu0 %2007
      %2009 = vrot.lane.b32.xlu0 %v1982, 119
      %v2010 = vpop.permute.xlu0 %2009
      %2011 = vrot.lane.b32.xlu0 %v1983, 119
      %v2012 = vpop.permute.xlu0 %2011
      %2013 = vrot.lane.b32.xlu0 %v1984, 119
      %v2014 = vpop.permute.xlu0 %2013
      %2015 = vrot.lane.b32.xlu0 %v1985, 119
      %v2016 = vpop.permute.xlu0 %2015
      %2017 = vrot.lane.b32.xlu0 %v1986, 119
      %v2018 = vpop.permute.xlu0 %2017
      %2019 = vrot.lane.b32.xlu0 %v1987, 119
      %v2020 = vpop.permute.xlu0 %2019
      %v2021 = vrot.slane %v2000, 4
      %v2022 = vrot.slane %v2002, 4
      %v2023 = vrot.slane %v2004, 4
      %v2024 = vrot.slane %v2006, 4
      %v2025 = vrot.slane %v2008, 4
      %v2026 = vrot.slane %v2010, 4
      %v2027 = vrot.slane %v2012, 4
      %v2028 = vrot.slane %v2014, 4
      %v2029 = vrot.slane %v2016, 4
      %v2030 = vrot.slane %v2018, 4
      %v2031 = vrot.slane %v2020, 4
      %v2032 = vsel %vm249, %v2021, %v2022
      %vm2033 = vcmask 973824
      %v2034 = vsel %vm2033, %v2000, %v2032
      %v2035 = vsel %vm249, %v2022, %v2023
      %v2036 = vsel %vm2033, %v2002, %v2035
      %v2037 = vsel %vm249, %v2023, %v2024
      %v2038 = vsel %vm2033, %v2004, %v2037
      %v2039 = vsel %vm249, %v2024, %v2025
      %v2040 = vsel %vm2033, %v2006, %v2039
      %v2041 = vsel %vm249, %v2025, %v2026
      %v2042 = vsel %vm2033, %v2008, %v2041
      %v2043 = vsel %vm249, %v2026, %v2027
      %v2044 = vsel %vm2033, %v2010, %v2043
      %v2045 = vsel %vm249, %v2027, %v2028
      %v2046 = vsel %vm2033, %v2012, %v2045
      %v2047 = vsel %vm249, %v2028, %v2029
      %v2048 = vsel %vm2033, %v2014, %v2047
      %v2049 = vsel %vm249, %v2029, %v2030
      %v2050 = vsel %vm2033, %v2016, %v2049
      %v2051 = vsel %vm249, %v2030, %v2031
      %v2052 = vsel %vm2033, %v2018, %v2051
      %v2053 = vsel %vm2033, %v2020, %v2031
      %2065 = vst [vmem:[#allocation2 + $0x63c] sm:$0xff] %v2034
      %2066 = vst [vmem:[#allocation2 + $0x644] sm:$0xff] %v2036
      %2067 = vst [vmem:[#allocation2 + $0x64c] sm:$0xff] %v2038
      %2068 = vst [vmem:[#allocation2 + $0x654] sm:$0xff] %v2040
      %2069 = vst [vmem:[#allocation2 + $0x65c] sm:$0xff] %v2042
      %2070 = vst [vmem:[#allocation2 + $0x664] sm:$0xff] %v2044
      %2071 = vst [vmem:[#allocation2 + $0x66c] sm:$0xff] %v2046
      %2072 = vst [vmem:[#allocation2 + $0x674] sm:$0xff] %v2048
      %2073 = vst [vmem:[#allocation2 + $0x67c] sm:$0xff] %v2050
      %2074 = vst [vmem:[#allocation2 + $0x684] sm:$0xff] %v2052
      %2075 = vst [vmem:[#allocation2 + $0x68c] sm:$0xf] %v2053
      %v2076 = vld [vmem:[%s165 + $0x14] sm:$0xff]
      %v2077 = vld [vmem:[%s165 + $0x1c] sm:$0xff]
      %v2078 = vld [vmem:[%s165 + $0x24] sm:$0xff]
      %v2079 = vld [vmem:[%s165 + $0x2c] sm:$0xff]
      %v2080 = vld [vmem:[%s165 + $0x34] sm:$0xff]
      %v2081 = vld [vmem:[%s165 + $0x3c] sm:$0xff]
      %v2082 = vld [vmem:[%s165 + $0x44] sm:$0xff]
      %v2083 = vld [vmem:[%s165 + $0x4c] sm:$0xff]
      %v2084 = vld [vmem:[%s165 + $0x54] sm:$0xff]
      %v2085 = vld [vmem:[%s165 + $0x5c] sm:$0xff]
      %v2086 = vld [vmem:[%s165 + $0x64] sm:$0xff]
      %2098 = vrot.lane.b32.xlu0 %v2076, 118
      %v2099 = vpop.permute.xlu0 %2098
      %2100 = vrot.lane.b32.xlu0 %v2077, 118
      %v2101 = vpop.permute.xlu0 %2100
      %2102 = vrot.lane.b32.xlu0 %v2078, 118
      %v2103 = vpop.permute.xlu0 %2102
      %2104 = vrot.lane.b32.xlu0 %v2079, 118
      %v2105 = vpop.permute.xlu0 %2104
      %2106 = vrot.lane.b32.xlu0 %v2080, 118
      %v2107 = vpop.permute.xlu0 %2106
      %2108 = vrot.lane.b32.xlu0 %v2081, 118
      %v2109 = vpop.permute.xlu0 %2108
      %2110 = vrot.lane.b32.xlu0 %v2082, 118
      %v2111 = vpop.permute.xlu0 %2110
      %2112 = vrot.lane.b32.xlu0 %v2083, 118
      %v2113 = vpop.permute.xlu0 %2112
      %2114 = vrot.lane.b32.xlu0 %v2084, 118
      %v2115 = vpop.permute.xlu0 %2114
      %2116 = vrot.lane.b32.xlu0 %v2085, 118
      %v2117 = vpop.permute.xlu0 %2116
      %2118 = vrot.lane.b32.xlu0 %v2086, 118
      %v2119 = vpop.permute.xlu0 %2118
      %v2120 = vrot.slane %v2099, 4
      %v2121 = vrot.slane %v2101, 4
      %v2122 = vrot.slane %v2103, 4
      %v2123 = vrot.slane %v2105, 4
      %v2124 = vrot.slane %v2107, 4
      %v2125 = vrot.slane %v2109, 4
      %v2126 = vrot.slane %v2111, 4
      %v2127 = vrot.slane %v2113, 4
      %v2128 = vrot.slane %v2115, 4
      %v2129 = vrot.slane %v2117, 4
      %v2130 = vrot.slane %v2119, 4
      %v2131 = vsel %vm249, %v2120, %v2121
      %vm2132 = vcmask 965632
      %v2133 = vsel %vm2132, %v2099, %v2131
      %v2134 = vsel %vm249, %v2121, %v2122
      %v2135 = vsel %vm2132, %v2101, %v2134
      %v2136 = vsel %vm249, %v2122, %v2123
      %v2137 = vsel %vm2132, %v2103, %v2136
      %v2138 = vsel %vm249, %v2123, %v2124
      %v2139 = vsel %vm2132, %v2105, %v2138
      %v2140 = vsel %vm249, %v2124, %v2125
      %v2141 = vsel %vm2132, %v2107, %v2140
      %v2142 = vsel %vm249, %v2125, %v2126
      %v2143 = vsel %vm2132, %v2109, %v2142
      %v2144 = vsel %vm249, %v2126, %v2127
      %v2145 = vsel %vm2132, %v2111, %v2144
      %v2146 = vsel %vm249, %v2127, %v2128
      %v2147 = vsel %vm2132, %v2113, %v2146
      %v2148 = vsel %vm249, %v2128, %v2129
      %v2149 = vsel %vm2132, %v2115, %v2148
      %v2150 = vsel %vm249, %v2129, %v2130
      %v2151 = vsel %vm2132, %v2117, %v2150
      %v2152 = vsel %vm2132, %v2119, %v2130
      %2164 = vst [vmem:[#allocation2 + $0x690] sm:$0xff] %v2133
      %2165 = vst [vmem:[#allocation2 + $0x698] sm:$0xff] %v2135
      %2166 = vst [vmem:[#allocation2 + $0x6a0] sm:$0xff] %v2137
      %2167 = vst [vmem:[#allocation2 + $0x6a8] sm:$0xff] %v2139
      %2168 = vst [vmem:[#allocation2 + $0x6b0] sm:$0xff] %v2141
      %2169 = vst [vmem:[#allocation2 + $0x6b8] sm:$0xff] %v2143
      %2170 = vst [vmem:[#allocation2 + $0x6c0] sm:$0xff] %v2145
      %2171 = vst [vmem:[#allocation2 + $0x6c8] sm:$0xff] %v2147
      %2172 = vst [vmem:[#allocation2 + $0x6d0] sm:$0xff] %v2149
      %2173 = vst [vmem:[#allocation2 + $0x6d8] sm:$0xff] %v2151
      %2174 = vst [vmem:[#allocation2 + $0x6e0] sm:$0xf] %v2152
      %v2175 = vld [vmem:[%s165 + $0x14] sm:$0xff]
      %v2176 = vld [vmem:[%s165 + $0x1c] sm:$0xff]
      %v2177 = vld [vmem:[%s165 + $0x24] sm:$0xff]
      %v2178 = vld [vmem:[%s165 + $0x2c] sm:$0xff]
      %v2179 = vld [vmem:[%s165 + $0x34] sm:$0xff]
      %v2180 = vld [vmem:[%s165 + $0x3c] sm:$0xff]
      %v2181 = vld [vmem:[%s165 + $0x44] sm:$0xff]
      %v2182 = vld [vmem:[%s165 + $0x4c] sm:$0xff]
      %v2183 = vld [vmem:[%s165 + $0x54] sm:$0xff]
      %v2184 = vld [vmem:[%s165 + $0x5c] sm:$0xff]
      %v2185 = vld [vmem:[%s165 + $0x64] sm:$0xff]
      %2197 = vrot.lane.b32.xlu0 %v2175, 102
      %v2198 = vpop.permute.xlu0 %2197
      %2199 = vrot.lane.b32.xlu0 %v2176, 102
      %v2200 = vpop.permute.xlu0 %2199
      %2201 = vrot.lane.b32.xlu0 %v2177, 102
      %v2202 = vpop.permute.xlu0 %2201
      %2203 = vrot.lane.b32.xlu0 %v2178, 102
      %v2204 = vpop.permute.xlu0 %2203
      %2205 = vrot.lane.b32.xlu0 %v2179, 102
      %v2206 = vpop.permute.xlu0 %2205
      %2207 = vrot.lane.b32.xlu0 %v2180, 102
      %v2208 = vpop.permute.xlu0 %2207
      %2209 = vrot.lane.b32.xlu0 %v2181, 102
      %v2210 = vpop.permute.xlu0 %2209
      %2211 = vrot.lane.b32.xlu0 %v2182, 102
      %v2212 = vpop.permute.xlu0 %2211
      %2213 = vrot.lane.b32.xlu0 %v2183, 102
      %v2214 = vpop.permute.xlu0 %2213
      %2215 = vrot.lane.b32.xlu0 %v2184, 102
      %v2216 = vpop.permute.xlu0 %2215
      %2217 = vrot.lane.b32.xlu0 %v2185, 102
      %v2218 = vpop.permute.xlu0 %2217
      %v2219 = vrot.slane %v2198, 4
      %v2220 = vrot.slane %v2200, 4
      %v2221 = vrot.slane %v2202, 4
      %v2222 = vrot.slane %v2204, 4
      %v2223 = vrot.slane %v2206, 4
      %v2224 = vrot.slane %v2208, 4
      %v2225 = vrot.slane %v2210, 4
      %v2226 = vrot.slane %v2212, 4
      %v2227 = vrot.slane %v2214, 4
      %v2228 = vrot.slane %v2216, 4
      %v2229 = vrot.slane %v2218, 4
      %v2230 = vsel %vm249, %v2219, %v2220
      %vm2231 = vcmask 834560
      %v2232 = vsel %vm2231, %v2198, %v2230
      %v2233 = vsel %vm249, %v2220, %v2221
      %v2234 = vsel %vm2231, %v2200, %v2233
      %v2235 = vsel %vm249, %v2221, %v2222
      %v2236 = vsel %vm2231, %v2202, %v2235
      %v2237 = vsel %vm249, %v2222, %v2223
      %v2238 = vsel %vm2231, %v2204, %v2237
      %v2239 = vsel %vm249, %v2223, %v2224
      %v2240 = vsel %vm2231, %v2206, %v2239
      %v2241 = vsel %vm249, %v2224, %v2225
      %v2242 = vsel %vm2231, %v2208, %v2241
      %v2243 = vsel %vm249, %v2225, %v2226
      %v2244 = vsel %vm2231, %v2210, %v2243
      %v2245 = vsel %vm249, %v2226, %v2227
      %v2246 = vsel %vm2231, %v2212, %v2245
      %v2247 = vsel %vm249, %v2227, %v2228
      %v2248 = vsel %vm2231, %v2214, %v2247
      %v2249 = vsel %vm249, %v2228, %v2229
      %v2250 = vsel %vm2231, %v2216, %v2249
      %v2251 = vsel %vm2231, %v2218, %v2229
      %2263 = vst [vmem:[#allocation2 + $0x6e4] sm:$0xff] %v2232
      %2264 = vst [vmem:[#allocation2 + $0x6ec] sm:$0xff] %v2234
      %2265 = vst [vmem:[#allocation2 + $0x6f4] sm:$0xff] %v2236
      %2266 = vst [vmem:[#allocation2 + $0x6fc] sm:$0xff] %v2238
      %2267 = vst [vmem:[#allocation2 + $0x704] sm:$0xff] %v2240
      %2268 = vst [vmem:[#allocation2 + $0x70c] sm:$0xff] %v2242
      %2269 = vst [vmem:[#allocation2 + $0x714] sm:$0xff] %v2244
      %2270 = vst [vmem:[#allocation2 + $0x71c] sm:$0xff] %v2246
      %2271 = vst [vmem:[#allocation2 + $0x724] sm:$0xff] %v2248
      %2272 = vst [vmem:[#allocation2 + $0x72c] sm:$0xff] %v2250
      %2273 = vst [vmem:[#allocation2 + $0x734] sm:$0xf] %v2251
      %v2274 = vld [vmem:[%s165 + $0x14] sm:$0xff]
      %v2275 = vld [vmem:[%s165 + $0x1c] sm:$0xff]
      %v2276 = vld [vmem:[%s165 + $0x24] sm:$0xff]
      %v2277 = vld [vmem:[%s165 + $0x2c] sm:$0xff]
      %v2278 = vld [vmem:[%s165 + $0x34] sm:$0xff]
      %v2279 = vld [vmem:[%s165 + $0x3c] sm:$0xff]
      %v2280 = vld [vmem:[%s165 + $0x44] sm:$0xff]
      %v2281 = vld [vmem:[%s165 + $0x4c] sm:$0xff]
      %v2282 = vld [vmem:[%s165 + $0x54] sm:$0xff]
      %v2283 = vld [vmem:[%s165 + $0x5c] sm:$0xff]
      %v2284 = vld [vmem:[%s165 + $0x64] sm:$0xff]
      %2296 = vrot.lane.b32.xlu0 %v2274, 101
      %v2297 = vpop.permute.xlu0 %2296
      %2298 = vrot.lane.b32.xlu0 %v2275, 101
      %v2299 = vpop.permute.xlu0 %2298
      %2300 = vrot.lane.b32.xlu0 %v2276, 101
      %v2301 = vpop.permute.xlu0 %2300
      %2302 = vrot.lane.b32.xlu0 %v2277, 101
      %v2303 = vpop.permute.xlu0 %2302
      %2304 = vrot.lane.b32.xlu0 %v2278, 101
      %v2305 = vpop.permute.xlu0 %2304
      %2306 = vrot.lane.b32.xlu0 %v2279, 101
      %v2307 = vpop.permute.xlu0 %2306
      %2308 = vrot.lane.b32.xlu0 %v2280, 101
      %v2309 = vpop.permute.xlu0 %2308
      %2310 = vrot.lane.b32.xlu0 %v2281, 101
      %v2311 = vpop.permute.xlu0 %2310
      %2312 = vrot.lane.b32.xlu0 %v2282, 101
      %v2313 = vpop.permute.xlu0 %2312
      %2314 = vrot.lane.b32.xlu0 %v2283, 101
      %v2315 = vpop.permute.xlu0 %2314
      %2316 = vrot.lane.b32.xlu0 %v2284, 101
      %v2317 = vpop.permute.xlu0 %2316
      %v2318 = vrot.slane %v2297, 4
      %v2319 = vrot.slane %v2299, 4
      %v2320 = vrot.slane %v2301, 4
      %v2321 = vrot.slane %v2303, 4
      %v2322 = vrot.slane %v2305, 4
      %v2323 = vrot.slane %v2307, 4
      %v2324 = vrot.slane %v2309, 4
      %v2325 = vrot.slane %v2311, 4
      %v2326 = vrot.slane %v2313, 4
      %v2327 = vrot.slane %v2315, 4
      %v2328 = vrot.slane %v2317, 4
      %v2329 = vsel %vm249, %v2318, %v2319
      %vm2330 = vcmask 826368
      %v2331 = vsel %vm2330, %v2297, %v2329
      %v2332 = vsel %vm249, %v2319, %v2320
      %v2333 = vsel %vm2330, %v2299, %v2332
      %v2334 = vsel %vm249, %v2320, %v2321
      %v2335 = vsel %vm2330, %v2301, %v2334
      %v2336 = vsel %vm249, %v2321, %v2322
      %v2337 = vsel %vm2330, %v2303, %v2336
      %v2338 = vsel %vm249, %v2322, %v2323
      %v2339 = vsel %vm2330, %v2305, %v2338
      %v2340 = vsel %vm249, %v2323, %v2324
      %v2341 = vsel %vm2330, %v2307, %v2340
      %v2342 = vsel %vm249, %v2324, %v2325
      %v2343 = vsel %vm2330, %v2309, %v2342
      %v2344 = vsel %vm249, %v2325, %v2326
      %v2345 = vsel %vm2330, %v2311, %v2344
      %v2346 = vsel %vm249, %v2326, %v2327
      %v2347 = vsel %vm2330, %v2313, %v2346
      %v2348 = vsel %vm249, %v2327, %v2328
      %v2349 = vsel %vm2330, %v2315, %v2348
      %v2350 = vsel %vm2330, %v2317, %v2328
      %2362 = vst [vmem:[#allocation2 + $0x738] sm:$0xff] %v2331
      %2363 = vst [vmem:[#allocation2 + $0x740] sm:$0xff] %v2333
      %2364 = vst [vmem:[#allocation2 + $0x748] sm:$0xff] %v2335
      %2365 = vst [vmem:[#allocation2 + $0x750] sm:$0xff] %v2337
      %2366 = vst [vmem:[#allocation2 + $0x758] sm:$0xff] %v2339
      %2367 = vst [vmem:[#allocation2 + $0x760] sm:$0xff] %v2341
      %2368 = vst [vmem:[#allocation2 + $0x768] sm:$0xff] %v2343
      %2369 = vst [vmem:[#allocation2 + $0x770] sm:$0xff] %v2345
      %2370 = vst [vmem:[#allocation2 + $0x778] sm:$0xff] %v2347
      %2371 = vst [vmem:[#allocation2 + $0x780] sm:$0xff] %v2349
      %2372 = vst [vmem:[#allocation2 + $0x788] sm:$0xf] %v2350
      %v2373 = vld [vmem:[%s165 + $0x14] sm:$0xff]
      %v2374 = vld [vmem:[%s165 + $0x1c] sm:$0xff]
      %v2375 = vld [vmem:[%s165 + $0x24] sm:$0xff]
      %v2376 = vld [vmem:[%s165 + $0x2c] sm:$0xff]
      %v2377 = vld [vmem:[%s165 + $0x34] sm:$0xff]
      %v2378 = vld [vmem:[%s165 + $0x3c] sm:$0xff]
      %v2379 = vld [vmem:[%s165 + $0x44] sm:$0xff]
      %v2380 = vld [vmem:[%s165 + $0x4c] sm:$0xff]
      %v2381 = vld [vmem:[%s165 + $0x54] sm:$0xff]
      %v2382 = vld [vmem:[%s165 + $0x5c] sm:$0xff]
      %v2383 = vld [vmem:[%s165 + $0x64] sm:$0xff]
      %2395 = vrot.lane.b32.xlu0 %v2373, 100
      %v2396 = vpop.permute.xlu0 %2395
      %2397 = vrot.lane.b32.xlu0 %v2374, 100
      %v2398 = vpop.permute.xlu0 %2397
      %2399 = vrot.lane.b32.xlu0 %v2375, 100
      %v2400 = vpop.permute.xlu0 %2399
      %2401 = vrot.lane.b32.xlu0 %v2376, 100
      %v2402 = vpop.permute.xlu0 %2401
      %2403 = vrot.lane.b32.xlu0 %v2377, 100
      %v2404 = vpop.permute.xlu0 %2403
      %2405 = vrot.lane.b32.xlu0 %v2378, 100
      %v2406 = vpop.permute.xlu0 %2405
      %2407 = vrot.lane.b32.xlu0 %v2379, 100
      %v2408 = vpop.permute.xlu0 %2407
      %2409 = vrot.lane.b32.xlu0 %v2380, 100
      %v2410 = vpop.permute.xlu0 %2409
      %2411 = vrot.lane.b32.xlu0 %v2381, 100
      %v2412 = vpop.permute.xlu0 %2411
      %2413 = vrot.lane.b32.xlu0 %v2382, 100
      %v2414 = vpop.permute.xlu0 %2413
      %2415 = vrot.lane.b32.xlu0 %v2383, 100
      %v2416 = vpop.permute.xlu0 %2415
      %v2417 = vrot.slane %v2396, 4
      %v2418 = vrot.slane %v2398, 4
      %v2419 = vrot.slane %v2400, 4
      %v2420 = vrot.slane %v2402, 4
      %v2421 = vrot.slane %v2404, 4
      %v2422 = vrot.slane %v2406, 4
      %v2423 = vrot.slane %v2408, 4
      %v2424 = vrot.slane %v2410, 4
      %v2425 = vrot.slane %v2412, 4
      %v2426 = vrot.slane %v2414, 4
      %v2427 = vrot.slane %v2416, 4
      %v2428 = vsel %vm249, %v2417, %v2418
      %vm2429 = vcmask 818176
      %v2430 = vsel %vm2429, %v2396, %v2428
      %v2431 = vsel %vm249, %v2418, %v2419
      %v2432 = vsel %vm2429, %v2398, %v2431
      %v2433 = vsel %vm249, %v2419, %v2420
      %v2434 = vsel %vm2429, %v2400, %v2433
      %v2435 = vsel %vm249, %v2420, %v2421
      %v2436 = vsel %vm2429, %v2402, %v2435
      %v2437 = vsel %vm249, %v2421, %v2422
      %v2438 = vsel %vm2429, %v2404, %v2437
      %v2439 = vsel %vm249, %v2422, %v2423
      %v2440 = vsel %vm2429, %v2406, %v2439
      %v2441 = vsel %vm249, %v2423, %v2424
      %v2442 = vsel %vm2429, %v2408, %v2441
      %v2443 = vsel %vm249, %v2424, %v2425
      %v2444 = vsel %vm2429, %v2410, %v2443
      %v2445 = vsel %vm249, %v2425, %v2426
      %v2446 = vsel %vm2429, %v2412, %v2445
      %v2447 = vsel %vm249, %v2426, %v2427
      %v2448 = vsel %vm2429, %v2414, %v2447
      %v2449 = vsel %vm2429, %v2416, %v2427
      %2461 = vst [vmem:[#allocation2 + $0x78c] sm:$0xff] %v2430
      %2462 = vst [vmem:[#allocation2 + $0x794] sm:$0xff] %v2432
      %2463 = vst [vmem:[#allocation2 + $0x79c] sm:$0xff] %v2434
      %2464 = vst [vmem:[#allocation2 + $0x7a4] sm:$0xff] %v2436
      %2465 = vst [vmem:[#allocation2 + $0x7ac] sm:$0xff] %v2438
      %2466 = vst [vmem:[#allocation2 + $0x7b4] sm:$0xff] %v2440
      %2467 = vst [vmem:[#allocation2 + $0x7bc] sm:$0xff] %v2442
      %2468 = vst [vmem:[#allocation2 + $0x7c4] sm:$0xff] %v2444
      %2469 = vst [vmem:[#allocation2 + $0x7cc] sm:$0xff] %v2446
      %2470 = vst [vmem:[#allocation2 + $0x7d4] sm:$0xff] %v2448
      %2471 = vst [vmem:[#allocation2 + $0x7dc] sm:$0xf] %v2449
      %v2472 = vld [vmem:[%s165 + $0x14] sm:$0xff]
      %v2473 = vld [vmem:[%s165 + $0x1c] sm:$0xff]
      %v2474 = vld [vmem:[%s165 + $0x24] sm:$0xff]
      %v2475 = vld [vmem:[%s165 + $0x2c] sm:$0xff]
      %v2476 = vld [vmem:[%s165 + $0x34] sm:$0xff]
      %v2477 = vld [vmem:[%s165 + $0x3c] sm:$0xff]
      %v2478 = vld [vmem:[%s165 + $0x44] sm:$0xff]
      %v2479 = vld [vmem:[%s165 + $0x4c] sm:$0xff]
      %v2480 = vld [vmem:[%s165 + $0x54] sm:$0xff]
      %v2481 = vld [vmem:[%s165 + $0x5c] sm:$0xff]
      %v2482 = vld [vmem:[%s165 + $0x64] sm:$0xff]
      %2494 = vrot.lane.b32.xlu0 %v2472, 84
      %v2495 = vpop.permute.xlu0 %2494
      %2496 = vrot.lane.b32.xlu0 %v2473, 84
      %v2497 = vpop.permute.xlu0 %2496
      %2498 = vrot.lane.b32.xlu0 %v2474, 84
      %v2499 = vpop.permute.xlu0 %2498
      %2500 = vrot.lane.b32.xlu0 %v2475, 84
      %v2501 = vpop.permute.xlu0 %2500
      %2502 = vrot.lane.b32.xlu0 %v2476, 84
      %v2503 = vpop.permute.xlu0 %2502
      %2504 = vrot.lane.b32.xlu0 %v2477, 84
      %v2505 = vpop.permute.xlu0 %2504
      %2506 = vrot.lane.b32.xlu0 %v2478, 84
      %v2507 = vpop.permute.xlu0 %2506
      %2508 = vrot.lane.b32.xlu0 %v2479, 84
      %v2509 = vpop.permute.xlu0 %2508
      %2510 = vrot.lane.b32.xlu0 %v2480, 84
      %v2511 = vpop.permute.xlu0 %2510
      %2512 = vrot.lane.b32.xlu0 %v2481, 84
      %v2513 = vpop.permute.xlu0 %2512
      %2514 = vrot.lane.b32.xlu0 %v2482, 84
      %v2515 = vpop.permute.xlu0 %2514
      %v2516 = vrot.slane %v2495, 4
      %v2517 = vrot.slane %v2497, 4
      %v2518 = vrot.slane %v2499, 4
      %v2519 = vrot.slane %v2501, 4
      %v2520 = vrot.slane %v2503, 4
      %v2521 = vrot.slane %v2505, 4
      %v2522 = vrot.slane %v2507, 4
      %v2523 = vrot.slane %v2509, 4
      %v2524 = vrot.slane %v2511, 4
      %v2525 = vrot.slane %v2513, 4
      %v2526 = vrot.slane %v2515, 4
      %v2527 = vsel %vm249, %v2516, %v2517
      %vm2528 = vcmask 687104
      %v2529 = vsel %vm2528, %v2495, %v2527
      %v2530 = vsel %vm249, %v2517, %v2518
      %v2531 = vsel %vm2528, %v2497, %v2530
      %v2532 = vsel %vm249, %v2518, %v2519
      %v2533 = vsel %vm2528, %v2499, %v2532
      %v2534 = vsel %vm249, %v2519, %v2520
      %v2535 = vsel %vm2528, %v2501, %v2534
      %v2536 = vsel %vm249, %v2520, %v2521
      %v2537 = vsel %vm2528, %v2503, %v2536
      %v2538 = vsel %vm249, %v2521, %v2522
      %v2539 = vsel %vm2528, %v2505, %v2538
      %v2540 = vsel %vm249, %v2522, %v2523
      %v2541 = vsel %vm2528, %v2507, %v2540
      %v2542 = vsel %vm249, %v2523, %v2524
      %v2543 = vsel %vm2528, %v2509, %v2542
      %v2544 = vsel %vm249, %v2524, %v2525
      %v2545 = vsel %vm2528, %v2511, %v2544
      %v2546 = vsel %vm249, %v2525, %v2526
      %v2547 = vsel %vm2528, %v2513, %v2546
      %v2548 = vsel %vm2528, %v2515, %v2526
      %2560 = vst [vmem:[#allocation2 + $0x7e0] sm:$0xff] %v2529
      %2561 = vst [vmem:[#allocation2 + $0x7e8] sm:$0xff] %v2531
      %2562 = vst [vmem:[#allocation2 + $0x7f0] sm:$0xff] %v2533
      %2563 = vst [vmem:[#allocation2 + $0x7f8] sm:$0xff] %v2535
      %2564 = vst [vmem:[#allocation2 + $0x800] sm:$0xff] %v2537
      %2565 = vst [vmem:[#allocation2 + $0x808] sm:$0xff] %v2539
      %2566 = vst [vmem:[#allocation2 + $0x810] sm:$0xff] %v2541
      %2567 = vst [vmem:[#allocation2 + $0x818] sm:$0xff] %v2543
      %2568 = vst [vmem:[#allocation2 + $0x820] sm:$0xff] %v2545
      %2569 = vst [vmem:[#allocation2 + $0x828] sm:$0xff] %v2547
      %2570 = vst [vmem:[#allocation2 + $0x830] sm:$0xf] %v2548
      %v2571 = vld [vmem:[%s165 + $0x14] sm:$0xff]
      %v2572 = vld [vmem:[%s165 + $0x1c] sm:$0xff]
      %v2573 = vld [vmem:[%s165 + $0x24] sm:$0xff]
      %v2574 = vld [vmem:[%s165 + $0x2c] sm:$0xff]
      %v2575 = vld [vmem:[%s165 + $0x34] sm:$0xff]
      %v2576 = vld [vmem:[%s165 + $0x3c] sm:$0xff]
      %v2577 = vld [vmem:[%s165 + $0x44] sm:$0xff]
      %v2578 = vld [vmem:[%s165 + $0x4c] sm:$0xff]
      %v2579 = vld [vmem:[%s165 + $0x54] sm:$0xff]
      %v2580 = vld [vmem:[%s165 + $0x5c] sm:$0xff]
      %v2581 = vld [vmem:[%s165 + $0x64] sm:$0xff]
      %2593 = vrot.lane.b32.xlu0 %v2571, 83
      %v2594 = vpop.permute.xlu0 %2593
      %2595 = vrot.lane.b32.xlu0 %v2572, 83
      %v2596 = vpop.permute.xlu0 %2595
      %2597 = vrot.lane.b32.xlu0 %v2573, 83
      %v2598 = vpop.permute.xlu0 %2597
      %2599 = vrot.lane.b32.xlu0 %v2574, 83
      %v2600 = vpop.permute.xlu0 %2599
      %2601 = vrot.lane.b32.xlu0 %v2575, 83
      %v2602 = vpop.permute.xlu0 %2601
      %2603 = vrot.lane.b32.xlu0 %v2576, 83
      %v2604 = vpop.permute.xlu0 %2603
      %2605 = vrot.lane.b32.xlu0 %v2577, 83
      %v2606 = vpop.permute.xlu0 %2605
      %2607 = vrot.lane.b32.xlu0 %v2578, 83
      %v2608 = vpop.permute.xlu0 %2607
      %2609 = vrot.lane.b32.xlu0 %v2579, 83
      %v2610 = vpop.permute.xlu0 %2609
      %2611 = vrot.lane.b32.xlu0 %v2580, 83
      %v2612 = vpop.permute.xlu0 %2611
      %2613 = vrot.lane.b32.xlu0 %v2581, 83
      %v2614 = vpop.permute.xlu0 %2613
      %v2615 = vrot.slane %v2594, 4
      %v2616 = vrot.slane %v2596, 4
      %v2617 = vrot.slane %v2598, 4
      %v2618 = vrot.slane %v2600, 4
      %v2619 = vrot.slane %v2602, 4
      %v2620 = vrot.slane %v2604, 4
      %v2621 = vrot.slane %v2606, 4
      %v2622 = vrot.slane %v2608, 4
      %v2623 = vrot.slane %v2610, 4
      %v2624 = vrot.slane %v2612, 4
      %v2625 = vrot.slane %v2614, 4
      %v2626 = vsel %vm249, %v2615, %v2616
      %vm2627 = vcmask 678912
      %v2628 = vsel %vm2627, %v2594, %v2626
      %v2629 = vsel %vm249, %v2616, %v2617
      %v2630 = vsel %vm2627, %v2596, %v2629
      %v2631 = vsel %vm249, %v2617, %v2618
      %v2632 = vsel %vm2627, %v2598, %v2631
      %v2633 = vsel %vm249, %v2618, %v2619
      %v2634 = vsel %vm2627, %v2600, %v2633
      %v2635 = vsel %vm249, %v2619, %v2620
      %v2636 = vsel %vm2627, %v2602, %v2635
      %v2637 = vsel %vm249, %v2620, %v2621
      %v2638 = vsel %vm2627, %v2604, %v2637
      %v2639 = vsel %vm249, %v2621, %v2622
      %v2640 = vsel %vm2627, %v2606, %v2639
      %v2641 = vsel %vm249, %v2622, %v2623
      %v2642 = vsel %vm2627, %v2608, %v2641
      %v2643 = vsel %vm249, %v2623, %v2624
      %v2644 = vsel %vm2627, %v2610, %v2643
      %v2645 = vsel %vm249, %v2624, %v2625
      %v2646 = vsel %vm2627, %v2612, %v2645
      %v2647 = vsel %vm2627, %v2614, %v2625
      %2659 = vst [vmem:[#allocation2 + $0x834] sm:$0xff] %v2628
      %2660 = vst [vmem:[#allocation2 + $0x83c] sm:$0xff] %v2630
      %2661 = vst [vmem:[#allocation2 + $0x844] sm:$0xff] %v2632
      %2662 = vst [vmem:[#allocation2 + $0x84c] sm:$0xff] %v2634
      %2663 = vst [vmem:[#allocation2 + $0x854] sm:$0xff] %v2636
      %2664 = vst [vmem:[#allocation2 + $0x85c] sm:$0xff] %v2638
      %2665 = vst [vmem:[#allocation2 + $0x864] sm:$0xff] %v2640
      %2666 = vst [vmem:[#allocation2 + $0x86c] sm:$0xff] %v2642
      %2667 = vst [vmem:[#allocation2 + $0x874] sm:$0xff] %v2644
      %2668 = vst [vmem:[#allocation2 + $0x87c] sm:$0xff] %v2646
      %2669 = vst [vmem:[#allocation2 + $0x884] sm:$0xf] %v2647
      %v2670 = vld [vmem:[%s165 + $0x14] sm:$0xff]
      %v2671 = vld [vmem:[%s165 + $0x1c] sm:$0xff]
      %v2672 = vld [vmem:[%s165 + $0x24] sm:$0xff]
      %v2673 = vld [vmem:[%s165 + $0x2c] sm:$0xff]
      %v2674 = vld [vmem:[%s165 + $0x34] sm:$0xff]
      %v2675 = vld [vmem:[%s165 + $0x3c] sm:$0xff]
      %v2676 = vld [vmem:[%s165 + $0x44] sm:$0xff]
      %v2677 = vld [vmem:[%s165 + $0x4c] sm:$0xff]
      %v2678 = vld [vmem:[%s165 + $0x54] sm:$0xff]
      %v2679 = vld [vmem:[%s165 + $0x5c] sm:$0xff]
      %v2680 = vld [vmem:[%s165 + $0x64] sm:$0xff]
      %2692 = vrot.lane.b32.xlu0 %v2670, 82
      %v2693 = vpop.permute.xlu0 %2692
      %2694 = vrot.lane.b32.xlu0 %v2671, 82
      %v2695 = vpop.permute.xlu0 %2694
      %2696 = vrot.lane.b32.xlu0 %v2672, 82
      %v2697 = vpop.permute.xlu0 %2696
      %2698 = vrot.lane.b32.xlu0 %v2673, 82
      %v2699 = vpop.permute.xlu0 %2698
      %2700 = vrot.lane.b32.xlu0 %v2674, 82
      %v2701 = vpop.permute.xlu0 %2700
      %2702 = vrot.lane.b32.xlu0 %v2675, 82
      %v2703 = vpop.permute.xlu0 %2702
      %2704 = vrot.lane.b32.xlu0 %v2676, 82
      %v2705 = vpop.permute.xlu0 %2704
      %2706 = vrot.lane.b32.xlu0 %v2677, 82
      %v2707 = vpop.permute.xlu0 %2706
      %2708 = vrot.lane.b32.xlu0 %v2678, 82
      %v2709 = vpop.permute.xlu0 %2708
      %2710 = vrot.lane.b32.xlu0 %v2679, 82
      %v2711 = vpop.permute.xlu0 %2710
      %2712 = vrot.lane.b32.xlu0 %v2680, 82
      %v2713 = vpop.permute.xlu0 %2712
      %v2714 = vrot.slane %v2693, 4
      %v2715 = vrot.slane %v2695, 4
      %v2716 = vrot.slane %v2697, 4
      %v2717 = vrot.slane %v2699, 4
      %v2718 = vrot.slane %v2701, 4
      %v2719 = vrot.slane %v2703, 4
      %v2720 = vrot.slane %v2705, 4
      %v2721 = vrot.slane %v2707, 4
      %v2722 = vrot.slane %v2709, 4
      %v2723 = vrot.slane %v2711, 4
      %v2724 = vrot.slane %v2713, 4
      %v2725 = vsel %vm249, %v2714, %v2715
      %vm2726 = vcmask 670720
      %v2727 = vsel %vm2726, %v2693, %v2725
      %v2728 = vsel %vm249, %v2715, %v2716
      %v2729 = vsel %vm2726, %v2695, %v2728
      %v2730 = vsel %vm249, %v2716, %v2717
      %v2731 = vsel %vm2726, %v2697, %v2730
      %v2732 = vsel %vm249, %v2717, %v2718
      %v2733 = vsel %vm2726, %v2699, %v2732
      %v2734 = vsel %vm249, %v2718, %v2719
      %v2735 = vsel %vm2726, %v2701, %v2734
      %v2736 = vsel %vm249, %v2719, %v2720
      %v2737 = vsel %vm2726, %v2703, %v2736
      %v2738 = vsel %vm249, %v2720, %v2721
      %v2739 = vsel %vm2726, %v2705, %v2738
      %v2740 = vsel %vm249, %v2721, %v2722
      %v2741 = vsel %vm2726, %v2707, %v2740
      %v2742 = vsel %vm249, %v2722, %v2723
      %v2743 = vsel %vm2726, %v2709, %v2742
      %v2744 = vsel %vm249, %v2723, %v2724
      %v2745 = vsel %vm2726, %v2711, %v2744
      %v2746 = vsel %vm2726, %v2713, %v2724
      %2758 = vst [vmem:[#allocation2 + $0x888] sm:$0xff] %v2727
      %2759 = vst [vmem:[#allocation2 + $0x890] sm:$0xff] %v2729
      %2760 = vst [vmem:[#allocation2 + $0x898] sm:$0xff] %v2731
      %2761 = vst [vmem:[#allocation2 + $0x8a0] sm:$0xff] %v2733
      %2762 = vst [vmem:[#allocation2 + $0x8a8] sm:$0xff] %v2735
      %2763 = vst [vmem:[#allocation2 + $0x8b0] sm:$0xff] %v2737
      %2764 = vst [vmem:[#allocation2 + $0x8b8] sm:$0xff] %v2739
      %2765 = vst [vmem:[#allocation2 + $0x8c0] sm:$0xff] %v2741
      %2766 = vst [vmem:[#allocation2 + $0x8c8] sm:$0xff] %v2743
      %2767 = vst [vmem:[#allocation2 + $0x8d0] sm:$0xff] %v2745
      %2768 = vst [vmem:[#allocation2 + $0x8d8] sm:$0xf] %v2746
      %v2769 = vld [vmem:[%s1] sm:$0x77]
      %v2770 = vld [vmem:[#allocation2] sm:$0xff]
      %v2771 = vld [vmem:[#allocation2 + $0x8] sm:$0xff]
      %v2772 = vld [vmem:[#allocation2 + $0x10] sm:$0xff]
      %v2773 = vld [vmem:[#allocation2 + $0x18] sm:$0xff]
      %v2774 = vld [vmem:[#allocation2 + $0x20] sm:$0xff]
      %v2775 = vld [vmem:[#allocation2 + $0x28] sm:$0xff]
      %v2776 = vld [vmem:[#allocation2 + $0x30] sm:$0xff]
      %v2777 = vld [vmem:[#allocation2 + $0x38] sm:$0xff]
      %v2778 = vld [vmem:[#allocation2 + $0x40] sm:$0xff]
      %v2779 = vld [vmem:[#allocation2 + $0x48] sm:$0xff]
      %v2780 = vld [vmem:[#allocation2 + $0x50] sm:$0xf]
      %v2781 = vld [vmem:[#allocation2 + $0x54] sm:$0xff]
      %v2782 = vld [vmem:[#allocation2 + $0x5c] sm:$0xff]
      %v2783 = vld [vmem:[#allocation2 + $0x64] sm:$0xff]
      %v2784 = vld [vmem:[#allocation2 + $0x6c] sm:$0xff]
      %v2785 = vld [vmem:[#allocation2 + $0x74] sm:$0xff]
      %v2786 = vld [vmem:[#allocation2 + $0x7c] sm:$0xff]
      %v2787 = vld [vmem:[#allocation2 + $0x84] sm:$0xff]
      %v2788 = vld [vmem:[#allocation2 + $0x8c] sm:$0xff]
      %v2789 = vld [vmem:[#allocation2 + $0x94] sm:$0xff]
      %v2790 = vld [vmem:[#allocation2 + $0x9c] sm:$0xff]
      %v2791 = vld [vmem:[#allocation2 + $0xa4] sm:$0xf]
      %v2792 = vld [vmem:[#allocation2 + $0xa8] sm:$0xff]
      %v2793 = vld [vmem:[#allocation2 + $0xb0] sm:$0xff]
      %v2794 = vld [vmem:[#allocation2 + $0xb8] sm:$0xff]
      %v2795 = vld [vmem:[#allocation2 + $0xc0] sm:$0xff]
      %v2796 = vld [vmem:[#allocation2 + $0xc8] sm:$0xff]
      %v2797 = vld [vmem:[#allocation2 + $0xd0] sm:$0xff]
      %v2798 = vld [vmem:[#allocation2 + $0xd8] sm:$0xff]
      %v2799 = vld [vmem:[#allocation2 + $0xe0] sm:$0xff]
      %v2800 = vld [vmem:[#allocation2 + $0xe8] sm:$0xff]
      %v2801 = vld [vmem:[#allocation2 + $0xf0] sm:$0xff]
      %v2802 = vld [vmem:[#allocation2 + $0xf8] sm:$0xf]
      %v2803 = vld [vmem:[#allocation2 + $0xfc] sm:$0xff]
      %v2804 = vld [vmem:[#allocation2 + $0x104] sm:$0xff]
      %v2805 = vld [vmem:[#allocation2 + $0x10c] sm:$0xff]
      %v2806 = vld [vmem:[#allocation2 + $0x114] sm:$0xff]
      %v2807 = vld [vmem:[#allocation2 + $0x11c] sm:$0xff]
      %v2808 = vld [vmem:[#allocation2 + $0x124] sm:$0xff]
      %v2809 = vld [vmem:[#allocation2 + $0x12c] sm:$0xff]
      %v2810 = vld [vmem:[#allocation2 + $0x134] sm:$0xff]
      %v2811 = vld [vmem:[#allocation2 + $0x13c] sm:$0xff]
      %v2812 = vld [vmem:[#allocation2 + $0x144] sm:$0xff]
      %v2813 = vld [vmem:[#allocation2 + $0x14c] sm:$0xf]
      %v2814 = vld [vmem:[#allocation2 + $0x150] sm:$0xff]
      %v2815 = vld [vmem:[#allocation2 + $0x158] sm:$0xff]
      %v2816 = vld [vmem:[#allocation2 + $0x160] sm:$0xff]
      %v2817 = vld [vmem:[#allocation2 + $0x168] sm:$0xff]
      %v2818 = vld [vmem:[#allocation2 + $0x170] sm:$0xff]
      %v2819 = vld [vmem:[#allocation2 + $0x178] sm:$0xff]
      %v2820 = vld [vmem:[#allocation2 + $0x180] sm:$0xff]
      %v2821 = vld [vmem:[#allocation2 + $0x188] sm:$0xff]
      %v2822 = vld [vmem:[#allocation2 + $0x190] sm:$0xff]
      %v2823 = vld [vmem:[#allocation2 + $0x198] sm:$0xff]
      %v2824 = vld [vmem:[#allocation2 + $0x1a0] sm:$0xf]
      %v2825 = vld [vmem:[#allocation2 + $0x1a4] sm:$0xff]
      %v2826 = vld [vmem:[#allocation2 + $0x1ac] sm:$0xff]
      %v2827 = vld [vmem:[#allocation2 + $0x1b4] sm:$0xff]
      %v2828 = vld [vmem:[#allocation2 + $0x1bc] sm:$0xff]
      %v2829 = vld [vmem:[#allocation2 + $0x1c4] sm:$0xff]
      %v2830 = vld [vmem:[#allocation2 + $0x1cc] sm:$0xff]
      %v2831 = vld [vmem:[#allocation2 + $0x1d4] sm:$0xff]
      %v2832 = vld [vmem:[#allocation2 + $0x1dc] sm:$0xff]
      %v2833 = vld [vmem:[#allocation2 + $0x1e4] sm:$0xff]
      %v2834 = vld [vmem:[#allocation2 + $0x1ec] sm:$0xff]
      %v2835 = vld [vmem:[#allocation2 + $0x1f4] sm:$0xf]
      %v2836 = vld [vmem:[#allocation2 + $0x1f8] sm:$0xff]
      %v2837 = vld [vmem:[#allocation2 + $0x200] sm:$0xff]
      %v2838 = vld [vmem:[#allocation2 + $0x208] sm:$0xff]
      %v2839 = vld [vmem:[#allocation2 + $0x210] sm:$0xff]
      %v2840 = vld [vmem:[#allocation2 + $0x218] sm:$0xff]
      %v2841 = vld [vmem:[#allocation2 + $0x220] sm:$0xff]
      %v2842 = vld [vmem:[#allocation2 + $0x228] sm:$0xff]
      %v2843 = vld [vmem:[#allocation2 + $0x230] sm:$0xff]
      %v2844 = vld [vmem:[#allocation2 + $0x238] sm:$0xff]
      %v2845 = vld [vmem:[#allocation2 + $0x240] sm:$0xff]
      %v2846 = vld [vmem:[#allocation2 + $0x248] sm:$0xf]
      %v2847 = vld [vmem:[#allocation2 + $0x24c] sm:$0xff]
      %v2848 = vld [vmem:[#allocation2 + $0x254] sm:$0xff]
      %v2849 = vld [vmem:[#allocation2 + $0x25c] sm:$0xff]
      %v2850 = vld [vmem:[#allocation2 + $0x264] sm:$0xff]
      %v2851 = vld [vmem:[#allocation2 + $0x26c] sm:$0xff]
      %v2852 = vld [vmem:[#allocation2 + $0x274] sm:$0xff]
      %v2853 = vld [vmem:[#allocation2 + $0x27c] sm:$0xff]
      %v2854 = vld [vmem:[#allocation2 + $0x284] sm:$0xff]
      %v2855 = vld [vmem:[#allocation2 + $0x28c] sm:$0xff]
      %v2856 = vld [vmem:[#allocation2 + $0x294] sm:$0xff]
      %v2857 = vld [vmem:[#allocation2 + $0x29c] sm:$0xf]
      %v2858 = vld [vmem:[#allocation2 + $0x2a0] sm:$0xff]
      %v2859 = vld [vmem:[#allocation2 + $0x2a8] sm:$0xff]
      %v2860 = vld [vmem:[#allocation2 + $0x2b0] sm:$0xff]
      %v2861 = vld [vmem:[#allocation2 + $0x2b8] sm:$0xff]
      %v2862 = vld [vmem:[#allocation2 + $0x2c0] sm:$0xff]
      %v2863 = vld [vmem:[#allocation2 + $0x2c8] sm:$0xff]
      %v2864 = vld [vmem:[#allocation2 + $0x2d0] sm:$0xff]
      %v2865 = vld [vmem:[#allocation2 + $0x2d8] sm:$0xff]
      %v2866 = vld [vmem:[#allocation2 + $0x2e0] sm:$0xff]
      %v2867 = vld [vmem:[#allocation2 + $0x2e8] sm:$0xff]
      %v2868 = vld [vmem:[#allocation2 + $0x2f0] sm:$0xf]
      %v2869 = vld [vmem:[#allocation2 + $0x2f4] sm:$0xff]
      %v2870 = vld [vmem:[#allocation2 + $0x2fc] sm:$0xff]
      %v2871 = vld [vmem:[#allocation2 + $0x304] sm:$0xff]
      %v2872 = vld [vmem:[#allocation2 + $0x30c] sm:$0xff]
      %v2873 = vld [vmem:[#allocation2 + $0x314] sm:$0xff]
      %v2874 = vld [vmem:[#allocation2 + $0x31c] sm:$0xff]
      %v2875 = vld [vmem:[#allocation2 + $0x324] sm:$0xff]
      %v2876 = vld [vmem:[#allocation2 + $0x32c] sm:$0xff]
      %v2877 = vld [vmem:[#allocation2 + $0x334] sm:$0xff]
      %v2878 = vld [vmem:[#allocation2 + $0x33c] sm:$0xff]
      %v2879 = vld [vmem:[#allocation2 + $0x344] sm:$0xf]
      %v2880 = vld [vmem:[#allocation2 + $0x348] sm:$0xff]
      %v2881 = vld [vmem:[#allocation2 + $0x350] sm:$0xff]
      %v2882 = vld [vmem:[#allocation2 + $0x358] sm:$0xff]
      %v2883 = vld [vmem:[#allocation2 + $0x360] sm:$0xff]
      %v2884 = vld [vmem:[#allocation2 + $0x368] sm:$0xff]
      %v2885 = vld [vmem:[#allocation2 + $0x370] sm:$0xff]
      %v2886 = vld [vmem:[#allocation2 + $0x378] sm:$0xff]
      %v2887 = vld [vmem:[#allocation2 + $0x380] sm:$0xff]
      %v2888 = vld [vmem:[#allocation2 + $0x388] sm:$0xff]
      %v2889 = vld [vmem:[#allocation2 + $0x390] sm:$0xff]
      %v2890 = vld [vmem:[#allocation2 + $0x398] sm:$0xf]
      %v2891 = vld [vmem:[#allocation2 + $0x39c] sm:$0xff]
      %v2892 = vld [vmem:[#allocation2 + $0x3a4] sm:$0xff]
      %v2893 = vld [vmem:[#allocation2 + $0x3ac] sm:$0xff]
      %v2894 = vld [vmem:[#allocation2 + $0x3b4] sm:$0xff]
      %v2895 = vld [vmem:[#allocation2 + $0x3bc] sm:$0xff]
      %v2896 = vld [vmem:[#allocation2 + $0x3c4] sm:$0xff]
      %v2897 = vld [vmem:[#allocation2 + $0x3cc] sm:$0xff]
      %v2898 = vld [vmem:[#allocation2 + $0x3d4] sm:$0xff]
      %v2899 = vld [vmem:[#allocation2 + $0x3dc] sm:$0xff]
      %v2900 = vld [vmem:[#allocation2 + $0x3e4] sm:$0xff]
      %v2901 = vld [vmem:[#allocation2 + $0x3ec] sm:$0xf]
      %v2902 = vld [vmem:[#allocation2 + $0x3f0] sm:$0xff]
      %v2903 = vld [vmem:[#allocation2 + $0x3f8] sm:$0xff]
      %v2904 = vld [vmem:[#allocation2 + $0x400] sm:$0xff]
      %v2905 = vld [vmem:[#allocation2 + $0x408] sm:$0xff]
      %v2906 = vld [vmem:[#allocation2 + $0x410] sm:$0xff]
      %v2907 = vld [vmem:[#allocation2 + $0x418] sm:$0xff]
      %v2908 = vld [vmem:[#allocation2 + $0x420] sm:$0xff]
      %v2909 = vld [vmem:[#allocation2 + $0x428] sm:$0xff]
      %v2910 = vld [vmem:[#allocation2 + $0x430] sm:$0xff]
      %v2911 = vld [vmem:[#allocation2 + $0x438] sm:$0xff]
      %v2912 = vld [vmem:[#allocation2 + $0x440] sm:$0xf]
      %v2913 = vld [vmem:[#allocation2 + $0x444] sm:$0xff]
      %v2914 = vld [vmem:[#allocation2 + $0x44c] sm:$0xff]
      %v2915 = vld [vmem:[#allocation2 + $0x454] sm:$0xff]
      %v2916 = vld [vmem:[#allocation2 + $0x45c] sm:$0xff]
      %v2917 = vld [vmem:[#allocation2 + $0x464] sm:$0xff]
      %v2918 = vld [vmem:[#allocation2 + $0x46c] sm:$0xff]
      %v2919 = vld [vmem:[#allocation2 + $0x474] sm:$0xff]
      %v2920 = vld [vmem:[#allocation2 + $0x47c] sm:$0xff]
      %v2921 = vld [vmem:[#allocation2 + $0x484] sm:$0xff]
      %v2922 = vld [vmem:[#allocation2 + $0x48c] sm:$0xff]
      %v2923 = vld [vmem:[#allocation2 + $0x494] sm:$0xf]
      %v2924 = vld [vmem:[#allocation2 + $0x498] sm:$0xff]
      %v2925 = vld [vmem:[#allocation2 + $0x4a0] sm:$0xff]
      %v2926 = vld [vmem:[#allocation2 + $0x4a8] sm:$0xff]
      %v2927 = vld [vmem:[#allocation2 + $0x4b0] sm:$0xff]
      %v2928 = vld [vmem:[#allocation2 + $0x4b8] sm:$0xff]
      %v2929 = vld [vmem:[#allocation2 + $0x4c0] sm:$0xff]
      %v2930 = vld [vmem:[#allocation2 + $0x4c8] sm:$0xff]
      %v2931 = vld [vmem:[#allocation2 + $0x4d0] sm:$0xff]
      %v2932 = vld [vmem:[#allocation2 + $0x4d8] sm:$0xff]
      %v2933 = vld [vmem:[#allocation2 + $0x4e0] sm:$0xff]
      %v2934 = vld [vmem:[#allocation2 + $0x4e8] sm:$0xf]
      %v2935 = vld [vmem:[#allocation2 + $0x4ec] sm:$0xff]
      %v2936 = vld [vmem:[#allocation2 + $0x4f4] sm:$0xff]
      %v2937 = vld [vmem:[#allocation2 + $0x4fc] sm:$0xff]
      %v2938 = vld [vmem:[#allocation2 + $0x504] sm:$0xff]
      %v2939 = vld [vmem:[#allocation2 + $0x50c] sm:$0xff]
      %v2940 = vld [vmem:[#allocation2 + $0x514] sm:$0xff]
      %v2941 = vld [vmem:[#allocation2 + $0x51c] sm:$0xff]
      %v2942 = vld [vmem:[#allocation2 + $0x524] sm:$0xff]
      %v2943 = vld [vmem:[#allocation2 + $0x52c] sm:$0xff]
      %v2944 = vld [vmem:[#allocation2 + $0x534] sm:$0xff]
      %v2945 = vld [vmem:[#allocation2 + $0x53c] sm:$0xf]
      %v2946 = vld [vmem:[#allocation2 + $0x540] sm:$0xff]
      %v2947 = vld [vmem:[#allocation2 + $0x548] sm:$0xff]
      %v2948 = vld [vmem:[#allocation2 + $0x550] sm:$0xff]
      %v2949 = vld [vmem:[#allocation2 + $0x558] sm:$0xff]
      %v2950 = vld [vmem:[#allocation2 + $0x560] sm:$0xff]
      %v2951 = vld [vmem:[#allocation2 + $0x568] sm:$0xff]
      %v2952 = vld [vmem:[#allocation2 + $0x570] sm:$0xff]
      %v2953 = vld [vmem:[#allocation2 + $0x578] sm:$0xff]
      %v2954 = vld [vmem:[#allocation2 + $0x580] sm:$0xff]
      %v2955 = vld [vmem:[#allocation2 + $0x588] sm:$0xff]
      %v2956 = vld [vmem:[#allocation2 + $0x590] sm:$0xf]
      %v2957 = vld [vmem:[#allocation2 + $0x594] sm:$0xff]
      %v2958 = vld [vmem:[#allocation2 + $0x59c] sm:$0xff]
      %v2959 = vld [vmem:[#allocation2 + $0x5a4] sm:$0xff]
      %v2960 = vld [vmem:[#allocation2 + $0x5ac] sm:$0xff]
      %v2961 = vld [vmem:[#allocation2 + $0x5b4] sm:$0xff]
      %v2962 = vld [vmem:[#allocation2 + $0x5bc] sm:$0xff]
      %v2963 = vld [vmem:[#allocation2 + $0x5c4] sm:$0xff]
      %v2964 = vld [vmem:[#allocation2 + $0x5cc] sm:$0xff]
      %v2965 = vld [vmem:[#allocation2 + $0x5d4] sm:$0xff]
      %v2966 = vld [vmem:[#allocation2 + $0x5dc] sm:$0xff]
      %v2967 = vld [vmem:[#allocation2 + $0x5e4] sm:$0xf]
      %v2968 = vld [vmem:[#allocation2 + $0x5e8] sm:$0xff]
      %v2969 = vld [vmem:[#allocation2 + $0x5f0] sm:$0xff]
      %v2970 = vld [vmem:[#allocation2 + $0x5f8] sm:$0xff]
      %v2971 = vld [vmem:[#allocation2 + $0x600] sm:$0xff]
      %v2972 = vld [vmem:[#allocation2 + $0x608] sm:$0xff]
      %v2973 = vld [vmem:[#allocation2 + $0x610] sm:$0xff]
      %v2974 = vld [vmem:[#allocation2 + $0x618] sm:$0xff]
      %v2975 = vld [vmem:[#allocation2 + $0x620] sm:$0xff]
      %v2976 = vld [vmem:[#allocation2 + $0x628] sm:$0xff]
      %v2977 = vld [vmem:[#allocation2 + $0x630] sm:$0xff]
      %v2978 = vld [vmem:[#allocation2 + $0x638] sm:$0xf]
      %v2979 = vld [vmem:[#allocation2 + $0x63c] sm:$0xff]
      %v2980 = vld [vmem:[#allocation2 + $0x644] sm:$0xff]
      %v2981 = vld [vmem:[#allocation2 + $0x64c] sm:$0xff]
      %v2982 = vld [vmem:[#allocation2 + $0x654] sm:$0xff]
      %v2983 = vld [vmem:[#allocation2 + $0x65c] sm:$0xff]
      %v2984 = vld [vmem:[#allocation2 + $0x664] sm:$0xff]
      %v2985 = vld [vmem:[#allocation2 + $0x66c] sm:$0xff]
      %v2986 = vld [vmem:[#allocation2 + $0x674] sm:$0xff]
      %v2987 = vld [vmem:[#allocation2 + $0x67c] sm:$0xff]
      %v2988 = vld [vmem:[#allocation2 + $0x684] sm:$0xff]
      %v2989 = vld [vmem:[#allocation2 + $0x68c] sm:$0xf]
      %v2990 = vld [vmem:[#allocation2 + $0x690] sm:$0xff]
      %v2991 = vld [vmem:[#allocation2 + $0x698] sm:$0xff]
      %v2992 = vld [vmem:[#allocation2 + $0x6a0] sm:$0xff]
      %v2993 = vld [vmem:[#allocation2 + $0x6a8] sm:$0xff]
      %v2994 = vld [vmem:[#allocation2 + $0x6b0] sm:$0xff]
      %v2995 = vld [vmem:[#allocation2 + $0x6b8] sm:$0xff]
      %v2996 = vld [vmem:[#allocation2 + $0x6c0] sm:$0xff]
      %v2997 = vld [vmem:[#allocation2 + $0x6c8] sm:$0xff]
      %v2998 = vld [vmem:[#allocation2 + $0x6d0] sm:$0xff]
      %v2999 = vld [vmem:[#allocation2 + $0x6d8] sm:$0xff]
      %v3000 = vld [vmem:[#allocation2 + $0x6e0] sm:$0xf]
      %v3001 = vld [vmem:[#allocation2 + $0x6e4] sm:$0xff]
      %v3002 = vld [vmem:[#allocation2 + $0x6ec] sm:$0xff]
      %v3003 = vld [vmem:[#allocation2 + $0x6f4] sm:$0xff]
      %v3004 = vld [vmem:[#allocation2 + $0x6fc] sm:$0xff]
      %v3005 = vld [vmem:[#allocation2 + $0x704] sm:$0xff]
      %v3006 = vld [vmem:[#allocation2 + $0x70c] sm:$0xff]
      %v3007 = vld [vmem:[#allocation2 + $0x714] sm:$0xff]
      %v3008 = vld [vmem:[#allocation2 + $0x71c] sm:$0xff]
      %v3009 = vld [vmem:[#allocation2 + $0x724] sm:$0xff]
      %v3010 = vld [vmem:[#allocation2 + $0x72c] sm:$0xff]
      %v3011 = vld [vmem:[#allocation2 + $0x734] sm:$0xf]
      %v3012 = vld [vmem:[#allocation2 + $0x738] sm:$0xff]
      %v3013 = vld [vmem:[#allocation2 + $0x740] sm:$0xff]
      %v3014 = vld [vmem:[#allocation2 + $0x748] sm:$0xff]
      %v3015 = vld [vmem:[#allocation2 + $0x750] sm:$0xff]
      %v3016 = vld [vmem:[#allocation2 + $0x758] sm:$0xff]
      %v3017 = vld [vmem:[#allocation2 + $0x760] sm:$0xff]
      %v3018 = vld [vmem:[#allocation2 + $0x768] sm:$0xff]
      %v3019 = vld [vmem:[#allocation2 + $0x770] sm:$0xff]
      %v3020 = vld [vmem:[#allocation2 + $0x778] sm:$0xff]
      %v3021 = vld [vmem:[#allocation2 + $0x780] sm:$0xff]
      %v3022 = vld [vmem:[#allocation2 + $0x788] sm:$0xf]
      %v3023 = vld [vmem:[#allocation2 + $0x78c] sm:$0xff]
      %v3024 = vld [vmem:[#allocation2 + $0x794] sm:$0xff]
      %v3025 = vld [vmem:[#allocation2 + $0x79c] sm:$0xff]
      %v3026 = vld [vmem:[#allocation2 + $0x7a4] sm:$0xff]
      %v3027 = vld [vmem:[#allocation2 + $0x7ac] sm:$0xff]
      %v3028 = vld [vmem:[#allocation2 + $0x7b4] sm:$0xff]
      %v3029 = vld [vmem:[#allocation2 + $0x7bc] sm:$0xff]
      %v3030 = vld [vmem:[#allocation2 + $0x7c4] sm:$0xff]
      %v3031 = vld [vmem:[#allocation2 + $0x7cc] sm:$0xff]
      %v3032 = vld [vmem:[#allocation2 + $0x7d4] sm:$0xff]
      %v3033 = vld [vmem:[#allocation2 + $0x7dc] sm:$0xf]
      %v3034 = vld [vmem:[#allocation2 + $0x7e0] sm:$0xff]
      %v3035 = vld [vmem:[#allocation2 + $0x7e8] sm:$0xff]
      %v3036 = vld [vmem:[#allocation2 + $0x7f0] sm:$0xff]
      %v3037 = vld [vmem:[#allocation2 + $0x7f8] sm:$0xff]
      %v3038 = vld [vmem:[#allocation2 + $0x800] sm:$0xff]
      %v3039 = vld [vmem:[#allocation2 + $0x808] sm:$0xff]
      %v3040 = vld [vmem:[#allocation2 + $0x810] sm:$0xff]
      %v3041 = vld [vmem:[#allocation2 + $0x818] sm:$0xff]
      %v3042 = vld [vmem:[#allocation2 + $0x820] sm:$0xff]
      %v3043 = vld [vmem:[#allocation2 + $0x828] sm:$0xff]
      %v3044 = vld [vmem:[#allocation2 + $0x830] sm:$0xf]
      %v3045 = vld [vmem:[#allocation2 + $0x834] sm:$0xff]
      %v3046 = vld [vmem:[#allocation2 + $0x83c] sm:$0xff]
      %v3047 = vld [vmem:[#allocation2 + $0x844] sm:$0xff]
      %v3048 = vld [vmem:[#allocation2 + $0x84c] sm:$0xff]
      %v3049 = vld [vmem:[#allocation2 + $0x854] sm:$0xff]
      %v3050 = vld [vmem:[#allocation2 + $0x85c] sm:$0xff]
      %v3051 = vld [vmem:[#allocation2 + $0x864] sm:$0xff]
      %v3052 = vld [vmem:[#allocation2 + $0x86c] sm:$0xff]
      %v3053 = vld [vmem:[#allocation2 + $0x874] sm:$0xff]
      %v3054 = vld [vmem:[#allocation2 + $0x87c] sm:$0xff]
      %v3055 = vld [vmem:[#allocation2 + $0x884] sm:$0xf]
      %v3056 = vld [vmem:[#allocation2 + $0x888] sm:$0xff]
      %v3057 = vld [vmem:[#allocation2 + $0x890] sm:$0xff]
      %v3058 = vld [vmem:[#allocation2 + $0x898] sm:$0xff]
      %v3059 = vld [vmem:[#allocation2 + $0x8a0] sm:$0xff]
      %v3060 = vld [vmem:[#allocation2 + $0x8a8] sm:$0xff]
      %v3061 = vld [vmem:[#allocation2 + $0x8b0] sm:$0xff]
      %v3062 = vld [vmem:[#allocation2 + $0x8b8] sm:$0xff]
      %v3063 = vld [vmem:[#allocation2 + $0x8c0] sm:$0xff]
      %v3064 = vld [vmem:[#allocation2 + $0x8c8] sm:$0xff]
      %v3065 = vld [vmem:[#allocation2 + $0x8d0] sm:$0xff]
      %v3066 = vld [vmem:[#allocation2 + $0x8d8] sm:$0xf]
      %v3067 = vld [vmem:[%s2] sm:$0x3f]
      %3069 = vset.pattern.permute.xlu0 0
      %3070 = vperm.xlu0 %3069, %v3067
      %v3071 = vpop.permute.xlu0 %3070
      %v3074 = vunpack.c.l.b16 %v2769
      %v3075 = vunpack.c.h.b16 %v2769
      %v3076 = vpack.c.b16 %v3074, %v3074
      %v3077 = vpack.c.b16 %v3075, %v3075
      %v3376 = vunpack.c.l.b16 %v2770
      %v3377 = vunpack.c.h.b16 %v2770
      %v3378 = vunpack.c.l.b16 %v2771
      %v3379 = vunpack.c.h.b16 %v2771
      %v3380 = vunpack.c.l.b16 %v2772
      %v3381 = vunpack.c.h.b16 %v2772
      %v3382 = vunpack.c.l.b16 %v2773
      %v3383 = vunpack.c.h.b16 %v2773
      %v3384 = vunpack.c.l.b16 %v2774
      %v3385 = vunpack.c.h.b16 %v2774
      %v3386 = vunpack.c.l.b16 %v2775
      %v3387 = vunpack.c.h.b16 %v2775
      %v3388 = vunpack.c.l.b16 %v2776
      %v3389 = vunpack.c.h.b16 %v2776
      %v3390 = vunpack.c.l.b16 %v2777
      %v3391 = vunpack.c.h.b16 %v2777
      %v3392 = vunpack.c.l.b16 %v2778
      %v3393 = vunpack.c.h.b16 %v2778
      %v3394 = vunpack.c.l.b16 %v2779
      %v3395 = vunpack.c.h.b16 %v2779
      %v3396 = vunpack.c.l.b16 %v2780
      %v3397 = vunpack.c.l.b16 %v2781
      %v3398 = vunpack.c.h.b16 %v2781
      %v3399 = vunpack.c.l.b16 %v2782
      %v3400 = vunpack.c.h.b16 %v2782
      %v3401 = vunpack.c.l.b16 %v2783
      %v3402 = vunpack.c.h.b16 %v2783
      %v3403 = vunpack.c.l.b16 %v2784
      %v3404 = vunpack.c.h.b16 %v2784
      %v3405 = vunpack.c.l.b16 %v2785
      %v3406 = vunpack.c.h.b16 %v2785
      %v3407 = vunpack.c.l.b16 %v2786
      %v3408 = vunpack.c.h.b16 %v2786
      %v3409 = vunpack.c.l.b16 %v2787
      %v3410 = vunpack.c.h.b16 %v2787
      %v3411 = vunpack.c.l.b16 %v2788
      %v3412 = vunpack.c.h.b16 %v2788
      %v3413 = vunpack.c.l.b16 %v2789
      %v3414 = vunpack.c.h.b16 %v2789
      %v3415 = vunpack.c.l.b16 %v2790
      %v3416 = vunpack.c.h.b16 %v2790
      %v3417 = vunpack.c.l.b16 %v2791
      %v3418 = vunpack.c.l.b16 %v2792
      %v3419 = vunpack.c.h.b16 %v2792
      %v3420 = vunpack.c.l.b16 %v2793
      %v3421 = vunpack.c.h.b16 %v2793
      %v3422 = vunpack.c.l.b16 %v2794
      %v3423 = vunpack.c.h.b16 %v2794
      %v3424 = vunpack.c.l.b16 %v2795
      %v3425 = vunpack.c.h.b16 %v2795
      %v3426 = vunpack.c.l.b16 %v2796
      %v3427 = vunpack.c.h.b16 %v2796
      %v3428 = vunpack.c.l.b16 %v2797
      %v3429 = vunpack.c.h.b16 %v2797
      %v3430 = vunpack.c.l.b16 %v2798
      %v3431 = vunpack.c.h.b16 %v2798
      %v3432 = vunpack.c.l.b16 %v2799
      %v3433 = vunpack.c.h.b16 %v2799
      %v3434 = vunpack.c.l.b16 %v2800
      %v3435 = vunpack.c.h.b16 %v2800
      %v3436 = vunpack.c.l.b16 %v2801
      %v3437 = vunpack.c.h.b16 %v2801
      %v3438 = vunpack.c.l.b16 %v2802
      %v3439 = vunpack.c.l.b16 %v2803
      %v3440 = vunpack.c.h.b16 %v2803
      %v3441 = vunpack.c.l.b16 %v2804
      %v3442 = vunpack.c.h.b16 %v2804
      %v3443 = vunpack.c.l.b16 %v2805
      %v3444 = vunpack.c.h.b16 %v2805
      %v3445 = vunpack.c.l.b16 %v2806
      %v3446 = vunpack.c.h.b16 %v2806
      %v3447 = vunpack.c.l.b16 %v2807
      %v3448 = vunpack.c.h.b16 %v2807
      %v3449 = vunpack.c.l.b16 %v2808
      %v3450 = vunpack.c.h.b16 %v2808
      %v3451 = vunpack.c.l.b16 %v2809
      %v3452 = vunpack.c.h.b16 %v2809
      %v3453 = vunpack.c.l.b16 %v2810
      %v3454 = vunpack.c.h.b16 %v2810
      %v3455 = vunpack.c.l.b16 %v2811
      %v3456 = vunpack.c.h.b16 %v2811
      %v3457 = vunpack.c.l.b16 %v2812
      %v3458 = vunpack.c.h.b16 %v2812
      %v3459 = vunpack.c.l.b16 %v2813
      %v3460 = vunpack.c.l.b16 %v2814
      %v3461 = vunpack.c.h.b16 %v2814
      %v3462 = vunpack.c.l.b16 %v2815
      %v3463 = vunpack.c.h.b16 %v2815
      %v3464 = vunpack.c.l.b16 %v2816
      %v3465 = vunpack.c.h.b16 %v2816
      %v3466 = vunpack.c.l.b16 %v2817
      %v3467 = vunpack.c.h.b16 %v2817
      %v3468 = vunpack.c.l.b16 %v2818
      %v3469 = vunpack.c.h.b16 %v2818
      %v3470 = vunpack.c.l.b16 %v2819
      %v3471 = vunpack.c.h.b16 %v2819
      %v3472 = vunpack.c.l.b16 %v2820
      %v3473 = vunpack.c.h.b16 %v2820
      %v3474 = vunpack.c.l.b16 %v2821
      %v3475 = vunpack.c.h.b16 %v2821
      %v3476 = vunpack.c.l.b16 %v2822
      %v3477 = vunpack.c.h.b16 %v2822
      %v3478 = vunpack.c.l.b16 %v2823
      %v3479 = vunpack.c.h.b16 %v2823
      %v3480 = vunpack.c.l.b16 %v2824
      %v3481 = vunpack.c.l.b16 %v2825
      %v3482 = vunpack.c.h.b16 %v2825
      %v3483 = vunpack.c.l.b16 %v2826
      %v3484 = vunpack.c.h.b16 %v2826
      %v3485 = vunpack.c.l.b16 %v2827
      %v3486 = vunpack.c.h.b16 %v2827
      %v3487 = vunpack.c.l.b16 %v2828
      %v3488 = vunpack.c.h.b16 %v2828
      %v3489 = vunpack.c.l.b16 %v2829
      %v3490 = vunpack.c.h.b16 %v2829
      %v3491 = vunpack.c.l.b16 %v2830
      %v3492 = vunpack.c.h.b16 %v2830
      %v3493 = vunpack.c.l.b16 %v2831
      %v3494 = vunpack.c.h.b16 %v2831
      %v3495 = vunpack.c.l.b16 %v2832
      %v3496 = vunpack.c.h.b16 %v2832
      %v3497 = vunpack.c.l.b16 %v2833
      %v3498 = vunpack.c.h.b16 %v2833
      %v3499 = vunpack.c.l.b16 %v2834
      %v3500 = vunpack.c.h.b16 %v2834
      %v3501 = vunpack.c.l.b16 %v2835
      %v3502 = vunpack.c.l.b16 %v2836
      %v3503 = vunpack.c.h.b16 %v2836
      %v3504 = vunpack.c.l.b16 %v2837
      %v3505 = vunpack.c.h.b16 %v2837
      %v3506 = vunpack.c.l.b16 %v2838
      %v3507 = vunpack.c.h.b16 %v2838
      %v3508 = vunpack.c.l.b16 %v2839
      %v3509 = vunpack.c.h.b16 %v2839
      %v3510 = vunpack.c.l.b16 %v2840
      %v3511 = vunpack.c.h.b16 %v2840
      %v3512 = vunpack.c.l.b16 %v2841
      %v3513 = vunpack.c.h.b16 %v2841
      %v3514 = vunpack.c.l.b16 %v2842
      %v3515 = vunpack.c.h.b16 %v2842
      %v3516 = vunpack.c.l.b16 %v2843
      %v3517 = vunpack.c.h.b16 %v2843
      %v3518 = vunpack.c.l.b16 %v2844
      %v3519 = vunpack.c.h.b16 %v2844
      %v3520 = vunpack.c.l.b16 %v2845
      %v3521 = vunpack.c.h.b16 %v2845
      %v3522 = vunpack.c.l.b16 %v2846
      %v3523 = vunpack.c.l.b16 %v2847
      %v3524 = vunpack.c.h.b16 %v2847
      %v3525 = vunpack.c.l.b16 %v2848
      %v3526 = vunpack.c.h.b16 %v2848
      %v3527 = vunpack.c.l.b16 %v2849
      %v3528 = vunpack.c.h.b16 %v2849
      %v3529 = vunpack.c.l.b16 %v2850
      %v3530 = vunpack.c.h.b16 %v2850
      %v3531 = vunpack.c.l.b16 %v2851
      %v3532 = vunpack.c.h.b16 %v2851
      %v3533 = vunpack.c.l.b16 %v2852
      %v3534 = vunpack.c.h.b16 %v2852
      %v3535 = vunpack.c.l.b16 %v2853
      %v3536 = vunpack.c.h.b16 %v2853
      %v3537 = vunpack.c.l.b16 %v2854
      %v3538 = vunpack.c.h.b16 %v2854
      %v3539 = vunpack.c.l.b16 %v2855
      %v3540 = vunpack.c.h.b16 %v2855
      %v3541 = vunpack.c.l.b16 %v2856
      %v3542 = vunpack.c.h.b16 %v2856
      %v3543 = vunpack.c.l.b16 %v2857
      %v3544 = vunpack.c.l.b16 %v2858
      %v3545 = vunpack.c.h.b16 %v2858
      %v3546 = vunpack.c.l.b16 %v2859
      %v3547 = vunpack.c.h.b16 %v2859
      %v3548 = vunpack.c.l.b16 %v2860
      %v3549 = vunpack.c.h.b16 %v2860
      %v3550 = vunpack.c.l.b16 %v2861
      %v3551 = vunpack.c.h.b16 %v2861
      %v3552 = vunpack.c.l.b16 %v2862
      %v3553 = vunpack.c.h.b16 %v2862
      %v3554 = vunpack.c.l.b16 %v2863
      %v3555 = vunpack.c.h.b16 %v2863
      %v3556 = vunpack.c.l.b16 %v2864
      %v3557 = vunpack.c.h.b16 %v2864
      %v3558 = vunpack.c.l.b16 %v2865
      %v3559 = vunpack.c.h.b16 %v2865
      %v3560 = vunpack.c.l.b16 %v2866
      %v3561 = vunpack.c.h.b16 %v2866
      %v3562 = vunpack.c.l.b16 %v2867
      %v3563 = vunpack.c.h.b16 %v2867
      %v3564 = vunpack.c.l.b16 %v2868
      %v3565 = vunpack.c.l.b16 %v2869
      %v3566 = vunpack.c.h.b16 %v2869
      %v3567 = vunpack.c.l.b16 %v2870
      %v3568 = vunpack.c.h.b16 %v2870
      %v3569 = vunpack.c.l.b16 %v2871
      %v3570 = vunpack.c.h.b16 %v2871
      %v3571 = vunpack.c.l.b16 %v2872
      %v3572 = vunpack.c.h.b16 %v2872
      %v3573 = vunpack.c.l.b16 %v2873
      %v3574 = vunpack.c.h.b16 %v2873
      %v3575 = vunpack.c.l.b16 %v2874
      %v3576 = vunpack.c.h.b16 %v2874
      %v3577 = vunpack.c.l.b16 %v2875
      %v3578 = vunpack.c.h.b16 %v2875
      %v3579 = vunpack.c.l.b16 %v2876
      %v3580 = vunpack.c.h.b16 %v2876
      %v3581 = vunpack.c.l.b16 %v2877
      %v3582 = vunpack.c.h.b16 %v2877
      %v3583 = vunpack.c.l.b16 %v2878
      %v3584 = vunpack.c.h.b16 %v2878
      %v3585 = vunpack.c.l.b16 %v2879
      %v3586 = vunpack.c.l.b16 %v2880
      %v3587 = vunpack.c.h.b16 %v2880
      %v3588 = vunpack.c.l.b16 %v2881
      %v3589 = vunpack.c.h.b16 %v2881
      %v3590 = vunpack.c.l.b16 %v2882
      %v3591 = vunpack.c.h.b16 %v2882
      %v3592 = vunpack.c.l.b16 %v2883
      %v3593 = vunpack.c.h.b16 %v2883
      %v3594 = vunpack.c.l.b16 %v2884
      %v3595 = vunpack.c.h.b16 %v2884
      %v3596 = vunpack.c.l.b16 %v2885
      %v3597 = vunpack.c.h.b16 %v2885
      %v3598 = vunpack.c.l.b16 %v2886
      %v3599 = vunpack.c.h.b16 %v2886
      %v3600 = vunpack.c.l.b16 %v2887
      %v3601 = vunpack.c.h.b16 %v2887
      %v3602 = vunpack.c.l.b16 %v2888
      %v3603 = vunpack.c.h.b16 %v2888
      %v3604 = vunpack.c.l.b16 %v2889
      %v3605 = vunpack.c.h.b16 %v2889
      %v3606 = vunpack.c.l.b16 %v2890
      %v3607 = vunpack.c.l.b16 %v2891
      %v3608 = vunpack.c.h.b16 %v2891
      %v3609 = vunpack.c.l.b16 %v2892
      %v3610 = vunpack.c.h.b16 %v2892
      %v3611 = vunpack.c.l.b16 %v2893
      %v3612 = vunpack.c.h.b16 %v2893
      %v3613 = vunpack.c.l.b16 %v2894
      %v3614 = vunpack.c.h.b16 %v2894
      %v3615 = vunpack.c.l.b16 %v2895
      %v3616 = vunpack.c.h.b16 %v2895
      %v3617 = vunpack.c.l.b16 %v2896
      %v3618 = vunpack.c.h.b16 %v2896
      %v3619 = vunpack.c.l.b16 %v2897
      %v3620 = vunpack.c.h.b16 %v2897
      %v3621 = vunpack.c.l.b16 %v2898
      %v3622 = vunpack.c.h.b16 %v2898
      %v3623 = vunpack.c.l.b16 %v2899
      %v3624 = vunpack.c.h.b16 %v2899
      %v3625 = vunpack.c.l.b16 %v2900
      %v3626 = vunpack.c.h.b16 %v2900
      %v3627 = vunpack.c.l.b16 %v2901
      %v3628 = vunpack.c.l.b16 %v2902
      %v3629 = vunpack.c.h.b16 %v2902
      %v3630 = vunpack.c.l.b16 %v2903
      %v3631 = vunpack.c.h.b16 %v2903
      %v3632 = vunpack.c.l.b16 %v2904
      %v3633 = vunpack.c.h.b16 %v2904
      %v3634 = vunpack.c.l.b16 %v2905
      %v3635 = vunpack.c.h.b16 %v2905
      %v3636 = vunpack.c.l.b16 %v2906
      %v3637 = vunpack.c.h.b16 %v2906
      %v3638 = vunpack.c.l.b16 %v2907
      %v3639 = vunpack.c.h.b16 %v2907
      %v3640 = vunpack.c.l.b16 %v2908
      %v3641 = vunpack.c.h.b16 %v2908
      %v3642 = vunpack.c.l.b16 %v2909
      %v3643 = vunpack.c.h.b16 %v2909
      %v3644 = vunpack.c.l.b16 %v2910
      %v3645 = vunpack.c.h.b16 %v2910
      %v3646 = vunpack.c.l.b16 %v2911
      %v3647 = vunpack.c.h.b16 %v2911
      %v3648 = vunpack.c.l.b16 %v2912
      %v3649 = vunpack.c.l.b16 %v2913
      %v3650 = vunpack.c.h.b16 %v2913
      %v3651 = vunpack.c.l.b16 %v2914
      %v3652 = vunpack.c.h.b16 %v2914
      %v3653 = vunpack.c.l.b16 %v2915
      %v3654 = vunpack.c.h.b16 %v2915
      %v3655 = vunpack.c.l.b16 %v2916
      %v3656 = vunpack.c.h.b16 %v2916
      %v3657 = vunpack.c.l.b16 %v2917
      %v3658 = vunpack.c.h.b16 %v2917
      %v3659 = vunpack.c.l.b16 %v2918
      %v3660 = vunpack.c.h.b16 %v2918
      %v3661 = vunpack.c.l.b16 %v2919
      %v3662 = vunpack.c.h.b16 %v2919
      %v3663 = vunpack.c.l.b16 %v2920
      %v3664 = vunpack.c.h.b16 %v2920
      %v3665 = vunpack.c.l.b16 %v2921
      %v3666 = vunpack.c.h.b16 %v2921
      %v3667 = vunpack.c.l.b16 %v2922
      %v3668 = vunpack.c.h.b16 %v2922
      %v3669 = vunpack.c.l.b16 %v2923
      %v3670 = vunpack.c.l.b16 %v2924
      %v3671 = vunpack.c.h.b16 %v2924
      %v3672 = vunpack.c.l.b16 %v2925
      %v3673 = vunpack.c.h.b16 %v2925
      %v3674 = vunpack.c.l.b16 %v2926
      %v3675 = vunpack.c.h.b16 %v2926
      %v3676 = vunpack.c.l.b16 %v2927
      %v3677 = vunpack.c.h.b16 %v2927
      %v3678 = vunpack.c.l.b16 %v2928
      %v3679 = vunpack.c.h.b16 %v2928
      %v3680 = vunpack.c.l.b16 %v2929
      %v3681 = vunpack.c.h.b16 %v2929
      %v3682 = vunpack.c.l.b16 %v2930
      %v3683 = vunpack.c.h.b16 %v2930
      %v3684 = vunpack.c.l.b16 %v2931
      %v3685 = vunpack.c.h.b16 %v2931
      %v3686 = vunpack.c.l.b16 %v2932
      %v3687 = vunpack.c.h.b16 %v2932
      %v3688 = vunpack.c.l.b16 %v2933
      %v3689 = vunpack.c.h.b16 %v2933
      %v3690 = vunpack.c.l.b16 %v2934
      %v3691 = vunpack.c.l.b16 %v2935
      %v3692 = vunpack.c.h.b16 %v2935
      %v3693 = vunpack.c.l.b16 %v2936
      %v3694 = vunpack.c.h.b16 %v2936
      %v3695 = vunpack.c.l.b16 %v2937
      %v3696 = vunpack.c.h.b16 %v2937
      %v3697 = vunpack.c.l.b16 %v2938
      %v3698 = vunpack.c.h.b16 %v2938
      %v3699 = vunpack.c.l.b16 %v2939
      %v3700 = vunpack.c.h.b16 %v2939
      %v3701 = vunpack.c.l.b16 %v2940
      %v3702 = vunpack.c.h.b16 %v2940
      %v3703 = vunpack.c.l.b16 %v2941
      %v3704 = vunpack.c.h.b16 %v2941
      %v3705 = vunpack.c.l.b16 %v2942
      %v3706 = vunpack.c.h.b16 %v2942
      %v3707 = vunpack.c.l.b16 %v2943
      %v3708 = vunpack.c.h.b16 %v2943
      %v3709 = vunpack.c.l.b16 %v2944
      %v3710 = vunpack.c.h.b16 %v2944
      %v3711 = vunpack.c.l.b16 %v2945
      %v3712 = vunpack.c.l.b16 %v2946
      %v3713 = vunpack.c.h.b16 %v2946
      %v3714 = vunpack.c.l.b16 %v2947
      %v3715 = vunpack.c.h.b16 %v2947
      %v3716 = vunpack.c.l.b16 %v2948
      %v3717 = vunpack.c.h.b16 %v2948
      %v3718 = vunpack.c.l.b16 %v2949
      %v3719 = vunpack.c.h.b16 %v2949
      %v3720 = vunpack.c.l.b16 %v2950
      %v3721 = vunpack.c.h.b16 %v2950
      %v3722 = vunpack.c.l.b16 %v2951
      %v3723 = vunpack.c.h.b16 %v2951
      %v3724 = vunpack.c.l.b16 %v2952
      %v3725 = vunpack.c.h.b16 %v2952
      %v3726 = vunpack.c.l.b16 %v2953
      %v3727 = vunpack.c.h.b16 %v2953
      %v3728 = vunpack.c.l.b16 %v2954
      %v3729 = vunpack.c.h.b16 %v2954
      %v3730 = vunpack.c.l.b16 %v2955
      %v3731 = vunpack.c.h.b16 %v2955
      %v3732 = vunpack.c.l.b16 %v2956
      %v3733 = vunpack.c.l.b16 %v2957
      %v3734 = vunpack.c.h.b16 %v2957
      %v3735 = vunpack.c.l.b16 %v2958
      %v3736 = vunpack.c.h.b16 %v2958
      %v3737 = vunpack.c.l.b16 %v2959
      %v3738 = vunpack.c.h.b16 %v2959
      %v3739 = vunpack.c.l.b16 %v2960
      %v3740 = vunpack.c.h.b16 %v2960
      %v3741 = vunpack.c.l.b16 %v2961
      %v3742 = vunpack.c.h.b16 %v2961
      %v3743 = vunpack.c.l.b16 %v2962
      %v3744 = vunpack.c.h.b16 %v2962
      %v3745 = vunpack.c.l.b16 %v2963
      %v3746 = vunpack.c.h.b16 %v2963
      %v3747 = vunpack.c.l.b16 %v2964
      %v3748 = vunpack.c.h.b16 %v2964
      %v3749 = vunpack.c.l.b16 %v2965
      %v3750 = vunpack.c.h.b16 %v2965
      %v3751 = vunpack.c.l.b16 %v2966
      %v3752 = vunpack.c.h.b16 %v2966
      %v3753 = vunpack.c.l.b16 %v2967
      %v3754 = vunpack.c.l.b16 %v2968
      %v3755 = vunpack.c.h.b16 %v2968
      %v3756 = vunpack.c.l.b16 %v2969
      %v3757 = vunpack.c.h.b16 %v2969
      %v3758 = vunpack.c.l.b16 %v2970
      %v3759 = vunpack.c.h.b16 %v2970
      %v3760 = vunpack.c.l.b16 %v2971
      %v3761 = vunpack.c.h.b16 %v2971
      %v3762 = vunpack.c.l.b16 %v2972
      %v3763 = vunpack.c.h.b16 %v2972
      %v3764 = vunpack.c.l.b16 %v2973
      %v3765 = vunpack.c.h.b16 %v2973
      %v3766 = vunpack.c.l.b16 %v2974
      %v3767 = vunpack.c.h.b16 %v2974
      %v3768 = vunpack.c.l.b16 %v2975
      %v3769 = vunpack.c.h.b16 %v2975
      %v3770 = vunpack.c.l.b16 %v2976
      %v3771 = vunpack.c.h.b16 %v2976
      %v3772 = vunpack.c.l.b16 %v2977
      %v3773 = vunpack.c.h.b16 %v2977
      %v3774 = vunpack.c.l.b16 %v2978
      %v3775 = vunpack.c.l.b16 %v2979
      %v3776 = vunpack.c.h.b16 %v2979
      %v3777 = vunpack.c.l.b16 %v2980
      %v3778 = vunpack.c.h.b16 %v2980
      %v3779 = vunpack.c.l.b16 %v2981
      %v3780 = vunpack.c.h.b16 %v2981
      %v3781 = vunpack.c.l.b16 %v2982
      %v3782 = vunpack.c.h.b16 %v2982
      %v3783 = vunpack.c.l.b16 %v2983
      %v3784 = vunpack.c.h.b16 %v2983
      %v3785 = vunpack.c.l.b16 %v2984
      %v3786 = vunpack.c.h.b16 %v2984
      %v3787 = vunpack.c.l.b16 %v2985
      %v3788 = vunpack.c.h.b16 %v2985
      %v3789 = vunpack.c.l.b16 %v2986
      %v3790 = vunpack.c.h.b16 %v2986
      %v3791 = vunpack.c.l.b16 %v2987
      %v3792 = vunpack.c.h.b16 %v2987
      %v3793 = vunpack.c.l.b16 %v2988
      %v3794 = vunpack.c.h.b16 %v2988
      %v3795 = vunpack.c.l.b16 %v2989
      %v3796 = vunpack.c.l.b16 %v2990
      %v3797 = vunpack.c.h.b16 %v2990
      %v3798 = vunpack.c.l.b16 %v2991
      %v3799 = vunpack.c.h.b16 %v2991
      %v3800 = vunpack.c.l.b16 %v2992
      %v3801 = vunpack.c.h.b16 %v2992
      %v3802 = vunpack.c.l.b16 %v2993
      %v3803 = vunpack.c.h.b16 %v2993
      %v3804 = vunpack.c.l.b16 %v2994
      %v3805 = vunpack.c.h.b16 %v2994
      %v3806 = vunpack.c.l.b16 %v2995
      %v3807 = vunpack.c.h.b16 %v2995
      %v3808 = vunpack.c.l.b16 %v2996
      %v3809 = vunpack.c.h.b16 %v2996
      %v3810 = vunpack.c.l.b16 %v2997
      %v3811 = vunpack.c.h.b16 %v2997
      %v3812 = vunpack.c.l.b16 %v2998
      %v3813 = vunpack.c.h.b16 %v2998
      %v3814 = vunpack.c.l.b16 %v2999
      %v3815 = vunpack.c.h.b16 %v2999
      %v3816 = vunpack.c.l.b16 %v3000
      %v3817 = vunpack.c.l.b16 %v3001
      %v3818 = vunpack.c.h.b16 %v3001
      %v3819 = vunpack.c.l.b16 %v3002
      %v3820 = vunpack.c.h.b16 %v3002
      %v3821 = vunpack.c.l.b16 %v3003
      %v3822 = vunpack.c.h.b16 %v3003
      %v3823 = vunpack.c.l.b16 %v3004
      %v3824 = vunpack.c.h.b16 %v3004
      %v3825 = vunpack.c.l.b16 %v3005
      %v3826 = vunpack.c.h.b16 %v3005
      %v3827 = vunpack.c.l.b16 %v3006
      %v3828 = vunpack.c.h.b16 %v3006
      %v3829 = vunpack.c.l.b16 %v3007
      %v3830 = vunpack.c.h.b16 %v3007
      %v3831 = vunpack.c.l.b16 %v3008
      %v3832 = vunpack.c.h.b16 %v3008
      %v3833 = vunpack.c.l.b16 %v3009
      %v3834 = vunpack.c.h.b16 %v3009
      %v3835 = vunpack.c.l.b16 %v3010
      %v3836 = vunpack.c.h.b16 %v3010
      %v3837 = vunpack.c.l.b16 %v3011
      %v3838 = vunpack.c.l.b16 %v3012
      %v3839 = vunpack.c.h.b16 %v3012
      %v3840 = vunpack.c.l.b16 %v3013
      %v3841 = vunpack.c.h.b16 %v3013
      %v3842 = vunpack.c.l.b16 %v3014
      %v3843 = vunpack.c.h.b16 %v3014
      %v3844 = vunpack.c.l.b16 %v3015
      %v3845 = vunpack.c.h.b16 %v3015
      %v3846 = vunpack.c.l.b16 %v3016
      %v3847 = vunpack.c.h.b16 %v3016
      %v3848 = vunpack.c.l.b16 %v3017
      %v3849 = vunpack.c.h.b16 %v3017
      %v3850 = vunpack.c.l.b16 %v3018
      %v3851 = vunpack.c.h.b16 %v3018
      %v3852 = vunpack.c.l.b16 %v3019
      %v3853 = vunpack.c.h.b16 %v3019
      %v3854 = vunpack.c.l.b16 %v3020
      %v3855 = vunpack.c.h.b16 %v3020
      %v3856 = vunpack.c.l.b16 %v3021
      %v3857 = vunpack.c.h.b16 %v3021
      %v3858 = vunpack.c.l.b16 %v3022
      %v3859 = vunpack.c.l.b16 %v3023
      %v3860 = vunpack.c.h.b16 %v3023
      %v3861 = vunpack.c.l.b16 %v3024
      %v3862 = vunpack.c.h.b16 %v3024
      %v3863 = vunpack.c.l.b16 %v3025
      %v3864 = vunpack.c.h.b16 %v3025
      %v3865 = vunpack.c.l.b16 %v3026
      %v3866 = vunpack.c.h.b16 %v3026
      %v3867 = vunpack.c.l.b16 %v3027
      %v3868 = vunpack.c.h.b16 %v3027
      %v3869 = vunpack.c.l.b16 %v3028
      %v3870 = vunpack.c.h.b16 %v3028
      %v3871 = vunpack.c.l.b16 %v3029
      %v3872 = vunpack.c.h.b16 %v3029
      %v3873 = vunpack.c.l.b16 %v3030
      %v3874 = vunpack.c.h.b16 %v3030
      %v3875 = vunpack.c.l.b16 %v3031
      %v3876 = vunpack.c.h.b16 %v3031
      %v3877 = vunpack.c.l.b16 %v3032
      %v3878 = vunpack.c.h.b16 %v3032
      %v3879 = vunpack.c.l.b16 %v3033
      %v3880 = vunpack.c.l.b16 %v3034
      %v3881 = vunpack.c.h.b16 %v3034
      %v3882 = vunpack.c.l.b16 %v3035
      %v3883 = vunpack.c.h.b16 %v3035
      %v3884 = vunpack.c.l.b16 %v3036
      %v3885 = vunpack.c.h.b16 %v3036
      %v3886 = vunpack.c.l.b16 %v3037
      %v3887 = vunpack.c.h.b16 %v3037
      %v3888 = vunpack.c.l.b16 %v3038
      %v3889 = vunpack.c.h.b16 %v3038
      %v3890 = vunpack.c.l.b16 %v3039
      %v3891 = vunpack.c.h.b16 %v3039
      %v3892 = vunpack.c.l.b16 %v3040
      %v3893 = vunpack.c.h.b16 %v3040
      %v3894 = vunpack.c.l.b16 %v3041
      %v3895 = vunpack.c.h.b16 %v3041
      %v3896 = vunpack.c.l.b16 %v3042
      %v3897 = vunpack.c.h.b16 %v3042
      %v3898 = vunpack.c.l.b16 %v3043
      %v3899 = vunpack.c.h.b16 %v3043
      %v3900 = vunpack.c.l.b16 %v3044
      %v3901 = vunpack.c.l.b16 %v3045
      %v3902 = vunpack.c.h.b16 %v3045
      %v3903 = vunpack.c.l.b16 %v3046
      %v3904 = vunpack.c.h.b16 %v3046
      %v3905 = vunpack.c.l.b16 %v3047
      %v3906 = vunpack.c.h.b16 %v3047
      %v3907 = vunpack.c.l.b16 %v3048
      %v3908 = vunpack.c.h.b16 %v3048
      %v3909 = vunpack.c.l.b16 %v3049
      %v3910 = vunpack.c.h.b16 %v3049
      %v3911 = vunpack.c.l.b16 %v3050
      %v3912 = vunpack.c.h.b16 %v3050
      %v3913 = vunpack.c.l.b16 %v3051
      %v3914 = vunpack.c.h.b16 %v3051
      %v3915 = vunpack.c.l.b16 %v3052
      %v3916 = vunpack.c.h.b16 %v3052
      %v3917 = vunpack.c.l.b16 %v3053
      %v3918 = vunpack.c.h.b16 %v3053
      %v3919 = vunpack.c.l.b16 %v3054
      %v3920 = vunpack.c.h.b16 %v3054
      %v3921 = vunpack.c.l.b16 %v3055
      %v3922 = vunpack.c.l.b16 %v3056
      %v3923 = vunpack.c.h.b16 %v3056
      %v3924 = vunpack.c.l.b16 %v3057
      %v3925 = vunpack.c.h.b16 %v3057
      %v3926 = vunpack.c.l.b16 %v3058
      %v3927 = vunpack.c.h.b16 %v3058
      %v3928 = vunpack.c.l.b16 %v3059
      %v3929 = vunpack.c.h.b16 %v3059
      %v3930 = vunpack.c.l.b16 %v3060
      %v3931 = vunpack.c.h.b16 %v3060
      %v3932 = vunpack.c.l.b16 %v3061
      %v3933 = vunpack.c.h.b16 %v3061
      %v3934 = vunpack.c.l.b16 %v3062
      %v3935 = vunpack.c.h.b16 %v3062
      %v3936 = vunpack.c.l.b16 %v3063
      %v3937 = vunpack.c.h.b16 %v3063
      %v3938 = vunpack.c.l.b16 %v3064
      %v3939 = vunpack.c.h.b16 %v3064
      %v3940 = vunpack.c.l.b16 %v3065
      %v3941 = vunpack.c.h.b16 %v3065
      %v3942 = vunpack.c.l.b16 %v3066
      %v3943 = vpack.c.b16 %v3397, %v3376
      %v3944 = vpack.c.b16 %v3398, %v3377
      %v3945 = vpack.c.b16 %v3399, %v3378
      %v3946 = vpack.c.b16 %v3400, %v3379
      %v3947 = vpack.c.b16 %v3401, %v3380
      %v3948 = vpack.c.b16 %v3402, %v3381
      %v3949 = vpack.c.b16 %v3403, %v3382
      %v3950 = vpack.c.b16 %v3404, %v3383
      %v3951 = vpack.c.b16 %v3405, %v3384
      %v3952 = vpack.c.b16 %v3406, %v3385
      %v3953 = vpack.c.b16 %v3407, %v3386
      %v3954 = vpack.c.b16 %v3408, %v3387
      %v3955 = vpack.c.b16 %v3409, %v3388
      %v3956 = vpack.c.b16 %v3410, %v3389
      %v3957 = vpack.c.b16 %v3411, %v3390
      %v3958 = vpack.c.b16 %v3412, %v3391
      %v3959 = vpack.c.b16 %v3413, %v3392
      %v3960 = vpack.c.b16 %v3414, %v3393
      %v3961 = vpack.c.b16 %v3415, %v3394
      %v3962 = vpack.c.b16 %v3416, %v3395
      %v3963 = vpack.c.b16 %v3417, %v3396
      %v3964 = vpack.c.b16 %v3439, %v3418
      %v3965 = vpack.c.b16 %v3440, %v3419
      %v3966 = vpack.c.b16 %v3441, %v3420
      %v3967 = vpack.c.b16 %v3442, %v3421
      %v3968 = vpack.c.b16 %v3443, %v3422
      %v3969 = vpack.c.b16 %v3444, %v3423
      %v3970 = vpack.c.b16 %v3445, %v3424
      %v3971 = vpack.c.b16 %v3446, %v3425
      %v3972 = vpack.c.b16 %v3447, %v3426
      %v3973 = vpack.c.b16 %v3448, %v3427
      %v3974 = vpack.c.b16 %v3449, %v3428
      %v3975 = vpack.c.b16 %v3450, %v3429
      %v3976 = vpack.c.b16 %v3451, %v3430
      %v3977 = vpack.c.b16 %v3452, %v3431
      %v3978 = vpack.c.b16 %v3453, %v3432
      %v3979 = vpack.c.b16 %v3454, %v3433
      %v3980 = vpack.c.b16 %v3455, %v3434
      %v3981 = vpack.c.b16 %v3456, %v3435
      %v3982 = vpack.c.b16 %v3457, %v3436
      %v3983 = vpack.c.b16 %v3458, %v3437
      %v3984 = vpack.c.b16 %v3459, %v3438
      %v3985 = vpack.c.b16 %v3481, %v3460
      %v3986 = vpack.c.b16 %v3482, %v3461
      %v3987 = vpack.c.b16 %v3483, %v3462
      %v3988 = vpack.c.b16 %v3484, %v3463
      %v3989 = vpack.c.b16 %v3485, %v3464
      %v3990 = vpack.c.b16 %v3486, %v3465
      %v3991 = vpack.c.b16 %v3487, %v3466
      %v3992 = vpack.c.b16 %v3488, %v3467
      %v3993 = vpack.c.b16 %v3489, %v3468
      %v3994 = vpack.c.b16 %v3490, %v3469
      %v3995 = vpack.c.b16 %v3491, %v3470
      %v3996 = vpack.c.b16 %v3492, %v3471
      %v3997 = vpack.c.b16 %v3493, %v3472
      %v3998 = vpack.c.b16 %v3494, %v3473
      %v3999 = vpack.c.b16 %v3495, %v3474
      %v4000 = vpack.c.b16 %v3496, %v3475
      %v4001 = vpack.c.b16 %v3497, %v3476
      %v4002 = vpack.c.b16 %v3498, %v3477
      %v4003 = vpack.c.b16 %v3499, %v3478
      %v4004 = vpack.c.b16 %v3500, %v3479
      %v4005 = vpack.c.b16 %v3501, %v3480
      %v4006 = vpack.c.b16 %v3523, %v3502
      %v4007 = vpack.c.b16 %v3524, %v3503
      %v4008 = vpack.c.b16 %v3525, %v3504
      %v4009 = vpack.c.b16 %v3526, %v3505
      %v4010 = vpack.c.b16 %v3527, %v3506
      %v4011 = vpack.c.b16 %v3528, %v3507
      %v4012 = vpack.c.b16 %v3529, %v3508
      %v4013 = vpack.c.b16 %v3530, %v3509
      %v4014 = vpack.c.b16 %v3531, %v3510
      %v4015 = vpack.c.b16 %v3532, %v3511
      %v4016 = vpack.c.b16 %v3533, %v3512
      %v4017 = vpack.c.b16 %v3534, %v3513
      %v4018 = vpack.c.b16 %v3535, %v3514
      %v4019 = vpack.c.b16 %v3536, %v3515
      %v4020 = vpack.c.b16 %v3537, %v3516
      %v4021 = vpack.c.b16 %v3538, %v3517
      %v4022 = vpack.c.b16 %v3539, %v3518
      %v4023 = vpack.c.b16 %v3540, %v3519
      %v4024 = vpack.c.b16 %v3541, %v3520
      %v4025 = vpack.c.b16 %v3542, %v3521
      %v4026 = vpack.c.b16 %v3543, %v3522
      %v4027 = vpack.c.b16 %v3565, %v3544
      %v4028 = vpack.c.b16 %v3566, %v3545
      %v4029 = vpack.c.b16 %v3567, %v3546
      %v4030 = vpack.c.b16 %v3568, %v3547
      %v4031 = vpack.c.b16 %v3569, %v3548
      %v4032 = vpack.c.b16 %v3570, %v3549
      %v4033 = vpack.c.b16 %v3571, %v3550
      %v4034 = vpack.c.b16 %v3572, %v3551
      %v4035 = vpack.c.b16 %v3573, %v3552
      %v4036 = vpack.c.b16 %v3574, %v3553
      %v4037 = vpack.c.b16 %v3575, %v3554
      %v4038 = vpack.c.b16 %v3576, %v3555
      %v4039 = vpack.c.b16 %v3577, %v3556
      %v4040 = vpack.c.b16 %v3578, %v3557
      %v4041 = vpack.c.b16 %v3579, %v3558
      %v4042 = vpack.c.b16 %v3580, %v3559
      %v4043 = vpack.c.b16 %v3581, %v3560
      %v4044 = vpack.c.b16 %v3582, %v3561
      %v4045 = vpack.c.b16 %v3583, %v3562
      %v4046 = vpack.c.b16 %v3584, %v3563
      %v4047 = vpack.c.b16 %v3585, %v3564
      %v4048 = vpack.c.b16 %v3607, %v3586
      %v4049 = vpack.c.b16 %v3608, %v3587
      %v4050 = vpack.c.b16 %v3609, %v3588
      %v4051 = vpack.c.b16 %v3610, %v3589
      %v4052 = vpack.c.b16 %v3611, %v3590
      %v4053 = vpack.c.b16 %v3612, %v3591
      %v4054 = vpack.c.b16 %v3613, %v3592
      %v4055 = vpack.c.b16 %v3614, %v3593
      %v4056 = vpack.c.b16 %v3615, %v3594
      %v4057 = vpack.c.b16 %v3616, %v3595
      %v4058 = vpack.c.b16 %v3617, %v3596
      %v4059 = vpack.c.b16 %v3618, %v3597
      %v4060 = vpack.c.b16 %v3619, %v3598
      %v4061 = vpack.c.b16 %v3620, %v3599
      %v4062 = vpack.c.b16 %v3621, %v3600
      %v4063 = vpack.c.b16 %v3622, %v3601
      %v4064 = vpack.c.b16 %v3623, %v3602
      %v4065 = vpack.c.b16 %v3624, %v3603
      %v4066 = vpack.c.b16 %v3625, %v3604
      %v4067 = vpack.c.b16 %v3626, %v3605
      %v4068 = vpack.c.b16 %v3627, %v3606
      %v4069 = vpack.c.b16 %v3649, %v3628
      %v4070 = vpack.c.b16 %v3650, %v3629
      %v4071 = vpack.c.b16 %v3651, %v3630
      %v4072 = vpack.c.b16 %v3652, %v3631
      %v4073 = vpack.c.b16 %v3653, %v3632
      %v4074 = vpack.c.b16 %v3654, %v3633
      %v4075 = vpack.c.b16 %v3655, %v3634
      %v4076 = vpack.c.b16 %v3656, %v3635
      %v4077 = vpack.c.b16 %v3657, %v3636
      %v4078 = vpack.c.b16 %v3658, %v3637
      %v4079 = vpack.c.b16 %v3659, %v3638
      %v4080 = vpack.c.b16 %v3660, %v3639
      %v4081 = vpack.c.b16 %v3661, %v3640
      %v4082 = vpack.c.b16 %v3662, %v3641
      %v4083 = vpack.c.b16 %v3663, %v3642
      %v4084 = vpack.c.b16 %v3664, %v3643
      %v4085 = vpack.c.b16 %v3665, %v3644
      %v4086 = vpack.c.b16 %v3666, %v3645
      %v4087 = vpack.c.b16 %v3667, %v3646
      %v4088 = vpack.c.b16 %v3668, %v3647
      %v4089 = vpack.c.b16 %v3669, %v3648
      %v4090 = vpack.c.b16 %v3691, %v3670
      %v4091 = vpack.c.b16 %v3692, %v3671
      %v4092 = vpack.c.b16 %v3693, %v3672
      %v4093 = vpack.c.b16 %v3694, %v3673
      %v4094 = vpack.c.b16 %v3695, %v3674
      %v4095 = vpack.c.b16 %v3696, %v3675
      %v4096 = vpack.c.b16 %v3697, %v3676
      %v4097 = vpack.c.b16 %v3698, %v3677
      %v4098 = vpack.c.b16 %v3699, %v3678
      %v4099 = vpack.c.b16 %v3700, %v3679
      %v4100 = vpack.c.b16 %v3701, %v3680
      %v4101 = vpack.c.b16 %v3702, %v3681
      %v4102 = vpack.c.b16 %v3703, %v3682
      %v4103 = vpack.c.b16 %v3704, %v3683
      %v4104 = vpack.c.b16 %v3705, %v3684
      %v4105 = vpack.c.b16 %v3706, %v3685
      %v4106 = vpack.c.b16 %v3707, %v3686
      %v4107 = vpack.c.b16 %v3708, %v3687
      %v4108 = vpack.c.b16 %v3709, %v3688
      %v4109 = vpack.c.b16 %v3710, %v3689
      %v4110 = vpack.c.b16 %v3711, %v3690
      %v4111 = vpack.c.b16 %v3733, %v3712
      %v4112 = vpack.c.b16 %v3734, %v3713
      %v4113 = vpack.c.b16 %v3735, %v3714
      %v4114 = vpack.c.b16 %v3736, %v3715
      %v4115 = vpack.c.b16 %v3737, %v3716
      %v4116 = vpack.c.b16 %v3738, %v3717
      %v4117 = vpack.c.b16 %v3739, %v3718
      %v4118 = vpack.c.b16 %v3740, %v3719
      %v4119 = vpack.c.b16 %v3741, %v3720
      %v4120 = vpack.c.b16 %v3742, %v3721
      %v4121 = vpack.c.b16 %v3743, %v3722
      %v4122 = vpack.c.b16 %v3744, %v3723
      %v4123 = vpack.c.b16 %v3745, %v3724
      %v4124 = vpack.c.b16 %v3746, %v3725
      %v4125 = vpack.c.b16 %v3747, %v3726
      %v4126 = vpack.c.b16 %v3748, %v3727
      %v4127 = vpack.c.b16 %v3749, %v3728
      %v4128 = vpack.c.b16 %v3750, %v3729
      %v4129 = vpack.c.b16 %v3751, %v3730
      %v4130 = vpack.c.b16 %v3752, %v3731
      %v4131 = vpack.c.b16 %v3753, %v3732
      %v4132 = vpack.c.b16 %v3775, %v3754
      %v4133 = vpack.c.b16 %v3776, %v3755
      %v4134 = vpack.c.b16 %v3777, %v3756
      %v4135 = vpack.c.b16 %v3778, %v3757
      %v4136 = vpack.c.b16 %v3779, %v3758
      %v4137 = vpack.c.b16 %v3780, %v3759
      %v4138 = vpack.c.b16 %v3781, %v3760
      %v4139 = vpack.c.b16 %v3782, %v3761
      %v4140 = vpack.c.b16 %v3783, %v3762
      %v4141 = vpack.c.b16 %v3784, %v3763
      %v4142 = vpack.c.b16 %v3785, %v3764
      %v4143 = vpack.c.b16 %v3786, %v3765
      %v4144 = vpack.c.b16 %v3787, %v3766
      %v4145 = vpack.c.b16 %v3788, %v3767
      %v4146 = vpack.c.b16 %v3789, %v3768
      %v4147 = vpack.c.b16 %v3790, %v3769
      %v4148 = vpack.c.b16 %v3791, %v3770
      %v4149 = vpack.c.b16 %v3792, %v3771
      %v4150 = vpack.c.b16 %v3793, %v3772
      %v4151 = vpack.c.b16 %v3794, %v3773
      %v4152 = vpack.c.b16 %v3795, %v3774
      %v4153 = vpack.c.b16 %v3817, %v3796
      %v4154 = vpack.c.b16 %v3818, %v3797
      %v4155 = vpack.c.b16 %v3819, %v3798
      %v4156 = vpack.c.b16 %v3820, %v3799
      %v4157 = vpack.c.b16 %v3821, %v3800
      %v4158 = vpack.c.b16 %v3822, %v3801
      %v4159 = vpack.c.b16 %v3823, %v3802
      %v4160 = vpack.c.b16 %v3824, %v3803
      %v4161 = vpack.c.b16 %v3825, %v3804
      %v4162 = vpack.c.b16 %v3826, %v3805
      %v4163 = vpack.c.b16 %v3827, %v3806
      %v4164 = vpack.c.b16 %v3828, %v3807
      %v4165 = vpack.c.b16 %v3829, %v3808
      %v4166 = vpack.c.b16 %v3830, %v3809
      %v4167 = vpack.c.b16 %v3831, %v3810
      %v4168 = vpack.c.b16 %v3832, %v3811
      %v4169 = vpack.c.b16 %v3833, %v3812
      %v4170 = vpack.c.b16 %v3834, %v3813
      %v4171 = vpack.c.b16 %v3835, %v3814
      %v4172 = vpack.c.b16 %v3836, %v3815
      %v4173 = vpack.c.b16 %v3837, %v3816
      %v4174 = vpack.c.b16 %v3859, %v3838
      %v4175 = vpack.c.b16 %v3860, %v3839
      %v4176 = vpack.c.b16 %v3861, %v3840
      %v4177 = vpack.c.b16 %v3862, %v3841
      %v4178 = vpack.c.b16 %v3863, %v3842
      %v4179 = vpack.c.b16 %v3864, %v3843
      %v4180 = vpack.c.b16 %v3865, %v3844
      %v4181 = vpack.c.b16 %v3866, %v3845
      %v4182 = vpack.c.b16 %v3867, %v3846
      %v4183 = vpack.c.b16 %v3868, %v3847
      %v4184 = vpack.c.b16 %v3869, %v3848
      %v4185 = vpack.c.b16 %v3870, %v3849
      %v4186 = vpack.c.b16 %v3871, %v3850
      %v4187 = vpack.c.b16 %v3872, %v3851
      %v4188 = vpack.c.b16 %v3873, %v3852
      %v4189 = vpack.c.b16 %v3874, %v3853
      %v4190 = vpack.c.b16 %v3875, %v3854
      %v4191 = vpack.c.b16 %v3876, %v3855
      %v4192 = vpack.c.b16 %v3877, %v3856
      %v4193 = vpack.c.b16 %v3878, %v3857
      %v4194 = vpack.c.b16 %v3879, %v3858
      %v4195 = vpack.c.b16 %v3901, %v3880
      %v4196 = vpack.c.b16 %v3902, %v3881
      %v4197 = vpack.c.b16 %v3903, %v3882
      %v4198 = vpack.c.b16 %v3904, %v3883
      %v4199 = vpack.c.b16 %v3905, %v3884
      %v4200 = vpack.c.b16 %v3906, %v3885
      %v4201 = vpack.c.b16 %v3907, %v3886
      %v4202 = vpack.c.b16 %v3908, %v3887
      %v4203 = vpack.c.b16 %v3909, %v3888
      %v4204 = vpack.c.b16 %v3910, %v3889
      %v4205 = vpack.c.b16 %v3911, %v3890
      %v4206 = vpack.c.b16 %v3912, %v3891
      %v4207 = vpack.c.b16 %v3913, %v3892
      %v4208 = vpack.c.b16 %v3914, %v3893
      %v4209 = vpack.c.b16 %v3915, %v3894
      %v4210 = vpack.c.b16 %v3916, %v3895
      %v4211 = vpack.c.b16 %v3917, %v3896
      %v4212 = vpack.c.b16 %v3918, %v3897
      %v4213 = vpack.c.b16 %v3919, %v3898
      %v4214 = vpack.c.b16 %v3920, %v3899
      %v4215 = vpack.c.b16 %v3921, %v3900
      %v4216 = vpack.c.b16 %v3922, %v3922
      %v4217 = vpack.c.b16 %v3923, %v3923
      %v4218 = vpack.c.b16 %v3924, %v3924
      %v4219 = vpack.c.b16 %v3925, %v3925
      %v4220 = vpack.c.b16 %v3926, %v3926
      %v4221 = vpack.c.b16 %v3927, %v3927
      %v4222 = vpack.c.b16 %v3928, %v3928
      %v4223 = vpack.c.b16 %v3929, %v3929
      %v4224 = vpack.c.b16 %v3930, %v3930
      %v4225 = vpack.c.b16 %v3931, %v3931
      %v4226 = vpack.c.b16 %v3932, %v3932
      %v4227 = vpack.c.b16 %v3933, %v3933
      %v4228 = vpack.c.b16 %v3934, %v3934
      %v4229 = vpack.c.b16 %v3935, %v3935
      %v4230 = vpack.c.b16 %v3936, %v3936
      %v4231 = vpack.c.b16 %v3937, %v3937
      %v4232 = vpack.c.b16 %v3938, %v3938
      %v4233 = vpack.c.b16 %v3939, %v3939
      %v4234 = vpack.c.b16 %v3940, %v3940
      %v4235 = vpack.c.b16 %v3941, %v3941
      %v4236 = vpack.c.b16 %v3942, %v3942
      %vm4510 = vcmask 719872
      %v4512 = vsel %vm4510, %v3077, 0
      %vm4514 = vcmask 1043456
      %v4516 = vsel %vm4514, %v4216, 0
      %v4519 = vsel %vm4514, %v4217, 0
      %v4522 = vsel %vm4514, %v4218, 0
      %v4525 = vsel %vm4514, %v4219, 0
      %v4528 = vsel %vm4514, %v4220, 0
      %v4531 = vsel %vm4514, %v4221, 0
      %v4534 = vsel %vm4514, %v4222, 0
      %v4537 = vsel %vm4514, %v4223, 0
      %v4540 = vsel %vm4514, %v4224, 0
      %v4543 = vsel %vm4514, %v4225, 0
      %v4546 = vsel %vm4514, %v4226, 0
      %v4549 = vsel %vm4514, %v4227, 0
      %v4552 = vsel %vm4514, %v4228, 0
      %v4555 = vsel %vm4514, %v4229, 0
      %v4558 = vsel %vm4514, %v4230, 0
      %v4561 = vsel %vm4514, %v4231, 0
      %v4564 = vsel %vm4514, %v4232, 0
      %v4567 = vsel %vm4514, %v4233, 0
      %v4570 = vsel %vm4514, %v4234, 0
      %v4573 = vsel %vm4514, %v4235, 0
      %v4576 = vsel %vm4514, %v4236, 0
      %4578 = vmatprep.subr.bf16.mxu0 %v3944
      %4579 = vmatpush1.bf16.msra.mxu0 %v3943
      %4580 = vmatprep.subr.bf16.mxu0 %v3965
      %4581 = vmatpush1.bf16.msra.mxu0 %v3964
      %4582 = vmatprep.subr.bf16.mxu0 %v3986
      %4583 = vmatpush1.bf16.msra.mxu0 %v3985
      %4584 = vmatprep.subr.bf16.mxu0 %v4007
      %4585 = vmatpush1.bf16.msra.mxu0 %v4006
      %4586 = vmatprep.subr.bf16.mxu0 %v4028
      %4587 = vmatpush1.bf16.msra.mxu0 %v4027
      %4588 = vmatprep.subr.bf16.mxu0 %v4049
      %4589 = vmatpush1.bf16.msra.mxu0 %v4048
      %4590 = vmatprep.subr.bf16.mxu0 %v4070
      %4591 = vmatpush1.bf16.msra.mxu0 %v4069
      %4592 = vmatprep.subr.bf16.mxu0 %v4091
      %4593 = vmatpush1.bf16.msra.mxu0 %v4090
      %4594 = vmatprep.subr.bf16.mxu0 %v4112
      %4595 = vmatpush1.bf16.msra.mxu0 %v4111
      %4596 = vmatprep.subr.bf16.mxu0 %v4133
      %4597 = vmatpush1.bf16.msra.mxu0 %v4132
      %4598 = vmatprep.subr.bf16.mxu0 %v4154
      %4599 = vmatpush1.bf16.msra.mxu0 %v4153
      %4600 = vmatprep.subr.bf16.mxu0 %v4175
      %4601 = vmatpush1.bf16.msra.mxu0 %v4174
      %4602 = vmatprep.subr.bf16.mxu0 %v4196
      %4603 = vmatpush1.bf16.msra.mxu0 %v4195
      %4604 = vmatprep.subr.bf16.mxu0 %v4519
      %4605 = vmatpush1.bf16.msra.mxu0 %v4516
      %4606 = vmatprep.subr.bf16.mxu0 0
      %4607 = vmatpush1.bf16.msra.mxu0 0
      %4608 = vmatprep.subr.bf16.mxu0 0
      %4609 = vmatpush1.bf16.msra.mxu0 0
      %4610 = vmatprep.mubr.bf16.mxu0 %v4512
      %4611 = vmatmul.mubr.bf16.gmra.mrb[0].mxu0 %v3076
      %v4612 = vpop.f32.mrb[0].mxu0
      %v4613 = vadd.f32 %v3071, %v4612
      %v4614 = vpop.f32.mrb[0].mxu0
      %v4615 = vadd.f32 %v3071, %v4614
      %v4616 = vpop.f32.mrb[0].mxu0
      %v4617 = vpop.f32.mrb[0].mxu0
      %4618 = vdwg.mxu0
      %4619 = vmatprep.subr.bf16.mxu0 %v3946
      %4620 = vmatpush1.bf16.msra.mxu0 %v3945
      %4621 = vmatprep.subr.bf16.mxu0 %v3967
      %4622 = vmatpush1.bf16.msra.mxu0 %v3966
      %4623 = vmatprep.subr.bf16.mxu0 %v3988
      %4624 = vmatpush1.bf16.msra.mxu0 %v3987
      %4625 = vmatprep.subr.bf16.mxu0 %v4009
      %4626 = vmatpush1.bf16.msra.mxu0 %v4008
      %4627 = vmatprep.subr.bf16.mxu0 %v4030
      %4628 = vmatpush1.bf16.msra.mxu0 %v4029
      %4629 = vmatprep.subr.bf16.mxu0 %v4051
      %4630 = vmatpush1.bf16.msra.mxu0 %v4050
      %4631 = vmatprep.subr.bf16.mxu0 %v4072
      %4632 = vmatpush1.bf16.msra.mxu0 %v4071
      %4633 = vmatprep.subr.bf16.mxu0 %v4093
      %4634 = vmatpush1.bf16.msra.mxu0 %v4092
      %4635 = vmatprep.subr.bf16.mxu0 %v4114
      %4636 = vmatpush1.bf16.msra.mxu0 %v4113
      %4637 = vmatprep.subr.bf16.mxu0 %v4135
      %4638 = vmatpush1.bf16.msra.mxu0 %v4134
      %4639 = vmatprep.subr.bf16.mxu0 %v4156
      %4640 = vmatpush1.bf16.msra.mxu0 %v4155
      %4641 = vmatprep.subr.bf16.mxu0 %v4177
      %4642 = vmatpush1.bf16.msra.mxu0 %v4176
      %4643 = vmatprep.subr.bf16.mxu0 %v4198
      %4644 = vmatpush1.bf16.msra.mxu0 %v4197
      %4645 = vmatprep.subr.bf16.mxu0 %v4525
      %4646 = vmatpush1.bf16.msra.mxu0 %v4522
      %4647 = vmatprep.subr.bf16.mxu0 0
      %4648 = vmatpush1.bf16.msra.mxu0 0
      %4649 = vmatprep.subr.bf16.mxu0 0
      %4650 = vmatpush1.bf16.msra.mxu0 0
      %4651 = vmatprep.mubr.bf16.mxu0 %v4512
      %4652 = vmatmul.mubr.bf16.gmra.mrb[0].mxu0 %v3076
      %v4653 = vpop.f32.mrb[0].mxu0
      %v4654 = vadd.f32 %v3071, %v4653
      %v4655 = vpop.f32.mrb[0].mxu0
      %v4656 = vadd.f32 %v3071, %v4655
      %v4657 = vpop.f32.mrb[0].mxu0
      %v4658 = vpop.f32.mrb[0].mxu0
      %4659 = vdwg.mxu0
      %4660 = vmatprep.subr.bf16.mxu0 %v3948
      %4661 = vmatpush1.bf16.msra.mxu0 %v3947
      %4662 = vmatprep.subr.bf16.mxu0 %v3969
      %4663 = vmatpush1.bf16.msra.mxu0 %v3968
      %4664 = vmatprep.subr.bf16.mxu0 %v3990
      %4665 = vmatpush1.bf16.msra.mxu0 %v3989
      %4666 = vmatprep.subr.bf16.mxu0 %v4011
      %4667 = vmatpush1.bf16.msra.mxu0 %v4010
      %4668 = vmatprep.subr.bf16.mxu0 %v4032
      %4669 = vmatpush1.bf16.msra.mxu0 %v4031
      %4670 = vmatprep.subr.bf16.mxu0 %v4053
      %4671 = vmatpush1.bf16.msra.mxu0 %v4052
      %4672 = vmatprep.subr.bf16.mxu0 %v4074
      %4673 = vmatpush1.bf16.msra.mxu0 %v4073
      %4674 = vmatprep.subr.bf16.mxu0 %v4095
      %4675 = vmatpush1.bf16.msra.mxu0 %v4094
      %4676 = vmatprep.subr.bf16.mxu0 %v4116
      %4677 = vmatpush1.bf16.msra.mxu0 %v4115
      %4678 = vmatprep.subr.bf16.mxu0 %v4137
      %4679 = vmatpush1.bf16.msra.mxu0 %v4136
      %4680 = vmatprep.subr.bf16.mxu0 %v4158
      %4681 = vmatpush1.bf16.msra.mxu0 %v4157
      %4682 = vmatprep.subr.bf16.mxu0 %v4179
      %4683 = vmatpush1.bf16.msra.mxu0 %v4178
      %4684 = vmatprep.subr.bf16.mxu0 %v4200
      %4685 = vmatpush1.bf16.msra.mxu0 %v4199
      %4686 = vmatprep.subr.bf16.mxu0 %v4531
      %4687 = vmatpush1.bf16.msra.mxu0 %v4528
      %4688 = vmatprep.subr.bf16.mxu0 0
      %4689 = vmatpush1.bf16.msra.mxu0 0
      %4690 = vmatprep.subr.bf16.mxu0 0
      %4691 = vmatpush1.bf16.msra.mxu0 0
      %4692 = vmatprep.mubr.bf16.mxu0 %v4512
      %4693 = vmatmul.mubr.bf16.gmra.mrb[0].mxu0 %v3076
      %v4694 = vpop.f32.mrb[0].mxu0
      %v4695 = vadd.f32 %v3071, %v4694
      %v4696 = vpop.f32.mrb[0].mxu0
      %v4697 = vadd.f32 %v3071, %v4696
      %v4698 = vpop.f32.mrb[0].mxu0
      %v4699 = vpop.f32.mrb[0].mxu0
      %4700 = vdwg.mxu0
      %4701 = vmatprep.subr.bf16.mxu0 %v3950
      %4702 = vmatpush1.bf16.msra.mxu0 %v3949
      %4703 = vmatprep.subr.bf16.mxu0 %v3971
      %4704 = vmatpush1.bf16.msra.mxu0 %v3970
      %4705 = vmatprep.subr.bf16.mxu0 %v3992
      %4706 = vmatpush1.bf16.msra.mxu0 %v3991
      %4707 = vmatprep.subr.bf16.mxu0 %v4013
      %4708 = vmatpush1.bf16.msra.mxu0 %v4012
      %4709 = vmatprep.subr.bf16.mxu0 %v4034
      %4710 = vmatpush1.bf16.msra.mxu0 %v4033
      %4711 = vmatprep.subr.bf16.mxu0 %v4055
      %4712 = vmatpush1.bf16.msra.mxu0 %v4054
      %4713 = vmatprep.subr.bf16.mxu0 %v4076
      %4714 = vmatpush1.bf16.msra.mxu0 %v4075
      %4715 = vmatprep.subr.bf16.mxu0 %v4097
      %4716 = vmatpush1.bf16.msra.mxu0 %v4096
      %4717 = vmatprep.subr.bf16.mxu0 %v4118
      %4718 = vmatpush1.bf16.msra.mxu0 %v4117
      %4719 = vmatprep.subr.bf16.mxu0 %v4139
      %4720 = vmatpush1.bf16.msra.mxu0 %v4138
      %4721 = vmatprep.subr.bf16.mxu0 %v4160
      %4722 = vmatpush1.bf16.msra.mxu0 %v4159
      %4723 = vmatprep.subr.bf16.mxu0 %v4181
      %4724 = vmatpush1.bf16.msra.mxu0 %v4180
      %4725 = vmatprep.subr.bf16.mxu0 %v4202
      %4726 = vmatpush1.bf16.msra.mxu0 %v4201
      %4727 = vmatprep.subr.bf16.mxu0 %v4537
      %4728 = vmatpush1.bf16.msra.mxu0 %v4534
      %4729 = vmatprep.subr.bf16.mxu0 0
      %4730 = vmatpush1.bf16.msra.mxu0 0
      %4731 = vmatprep.subr.bf16.mxu0 0
      %4732 = vmatpush1.bf16.msra.mxu0 0
      %4733 = vmatprep.mubr.bf16.mxu0 %v4512
      %4734 = vmatmul.mubr.bf16.gmra.mrb[0].mxu0 %v3076
      %v4735 = vpop.f32.mrb[0].mxu0
      %v4736 = vadd.f32 %v3071, %v4735
      %v4737 = vpop.f32.mrb[0].mxu0
      %v4738 = vadd.f32 %v3071, %v4737
      %v4739 = vpop.f32.mrb[0].mxu0
      %v4740 = vpop.f32.mrb[0].mxu0
      %4741 = vdwg.mxu0
      %4742 = vmatprep.subr.bf16.mxu0 %v3952
      %4743 = vmatpush1.bf16.msra.mxu0 %v3951
      %4744 = vmatprep.subr.bf16.mxu0 %v3973
      %4745 = vmatpush1.bf16.msra.mxu0 %v3972
      %4746 = vmatprep.subr.bf16.mxu0 %v3994
      %4747 = vmatpush1.bf16.msra.mxu0 %v3993
      %4748 = vmatprep.subr.bf16.mxu0 %v4015
      %4749 = vmatpush1.bf16.msra.mxu0 %v4014
      %4750 = vmatprep.subr.bf16.mxu0 %v4036
      %4751 = vmatpush1.bf16.msra.mxu0 %v4035
      %4752 = vmatprep.subr.bf16.mxu0 %v4057
      %4753 = vmatpush1.bf16.msra.mxu0 %v4056
      %4754 = vmatprep.subr.bf16.mxu0 %v4078
      %4755 = vmatpush1.bf16.msra.mxu0 %v4077
      %4756 = vmatprep.subr.bf16.mxu0 %v4099
      %4757 = vmatpush1.bf16.msra.mxu0 %v4098
      %4758 = vmatprep.subr.bf16.mxu0 %v4120
      %4759 = vmatpush1.bf16.msra.mxu0 %v4119
      %4760 = vmatprep.subr.bf16.mxu0 %v4141
      %4761 = vmatpush1.bf16.msra.mxu0 %v4140
      %4762 = vmatprep.subr.bf16.mxu0 %v4162
      %4763 = vmatpush1.bf16.msra.mxu0 %v4161
      %4764 = vmatprep.subr.bf16.mxu0 %v4183
      %4765 = vmatpush1.bf16.msra.mxu0 %v4182
      %4766 = vmatprep.subr.bf16.mxu0 %v4204
      %4767 = vmatpush1.bf16.msra.mxu0 %v4203
      %4768 = vmatprep.subr.bf16.mxu0 %v4543
      %4769 = vmatpush1.bf16.msra.mxu0 %v4540
      %4770 = vmatprep.subr.bf16.mxu0 0
      %4771 = vmatpush1.bf16.msra.mxu0 0
      %4772 = vmatprep.subr.bf16.mxu0 0
      %4773 = vmatpush1.bf16.msra.mxu0 0
      %4774 = vmatprep.mubr.bf16.mxu0 %v4512
      %4775 = vmatmul.mubr.bf16.gmra.mrb[0].mxu0 %v3076
      %v4776 = vpop.f32.mrb[0].mxu0
      %v4777 = vadd.f32 %v3071, %v4776
      %v4778 = vpop.f32.mrb[0].mxu0
      %v4779 = vadd.f32 %v3071, %v4778
      %v4780 = vpop.f32.mrb[0].mxu0
      %v4781 = vpop.f32.mrb[0].mxu0
      %4782 = vdwg.mxu0
      %4783 = vmatprep.subr.bf16.mxu0 %v3954
      %4784 = vmatpush1.bf16.msra.mxu0 %v3953
      %4785 = vmatprep.subr.bf16.mxu0 %v3975
      %4786 = vmatpush1.bf16.msra.mxu0 %v3974
      %4787 = vmatprep.subr.bf16.mxu0 %v3996
      %4788 = vmatpush1.bf16.msra.mxu0 %v3995
      %4789 = vmatprep.subr.bf16.mxu0 %v4017
      %4790 = vmatpush1.bf16.msra.mxu0 %v4016
      %4791 = vmatprep.subr.bf16.mxu0 %v4038
      %4792 = vmatpush1.bf16.msra.mxu0 %v4037
      %4793 = vmatprep.subr.bf16.mxu0 %v4059
      %4794 = vmatpush1.bf16.msra.mxu0 %v4058
      %4795 = vmatprep.subr.bf16.mxu0 %v4080
      %4796 = vmatpush1.bf16.msra.mxu0 %v4079
      %4797 = vmatprep.subr.bf16.mxu0 %v4101
      %4798 = vmatpush1.bf16.msra.mxu0 %v4100
      %4799 = vmatprep.subr.bf16.mxu0 %v4122
      %4800 = vmatpush1.bf16.msra.mxu0 %v4121
      %4801 = vmatprep.subr.bf16.mxu0 %v4143
      %4802 = vmatpush1.bf16.msra.mxu0 %v4142
      %4803 = vmatprep.subr.bf16.mxu0 %v4164
      %4804 = vmatpush1.bf16.msra.mxu0 %v4163
      %4805 = vmatprep.subr.bf16.mxu0 %v4185
      %4806 = vmatpush1.bf16.msra.mxu0 %v4184
      %4807 = vmatprep.subr.bf16.mxu0 %v4206
      %4808 = vmatpush1.bf16.msra.mxu0 %v4205
      %4809 = vmatprep.subr.bf16.mxu0 %v4549
      %4810 = vmatpush1.bf16.msra.mxu0 %v4546
      %4811 = vmatprep.subr.bf16.mxu0 0
      %4812 = vmatpush1.bf16.msra.mxu0 0
      %4813 = vmatprep.subr.bf16.mxu0 0
      %4814 = vmatpush1.bf16.msra.mxu0 0
      %4815 = vmatprep.mubr.bf16.mxu0 %v4512
      %4816 = vmatmul.mubr.bf16.gmra.mrb[0].mxu0 %v3076
      %v4817 = vpop.f32.mrb[0].mxu0
      %v4818 = vadd.f32 %v3071, %v4817
      %v4819 = vpop.f32.mrb[0].mxu0
      %v4820 = vadd.f32 %v3071, %v4819
      %v4821 = vpop.f32.mrb[0].mxu0
      %v4822 = vpop.f32.mrb[0].mxu0
      %4823 = vdwg.mxu0
      %4824 = vmatprep.subr.bf16.mxu0 %v3956
      %4825 = vmatpush1.bf16.msra.mxu0 %v3955
      %4826 = vmatprep.subr.bf16.mxu0 %v3977
      %4827 = vmatpush1.bf16.msra.mxu0 %v3976
      %4828 = vmatprep.subr.bf16.mxu0 %v3998
      %4829 = vmatpush1.bf16.msra.mxu0 %v3997
      %4830 = vmatprep.subr.bf16.mxu0 %v4019
      %4831 = vmatpush1.bf16.msra.mxu0 %v4018
      %4832 = vmatprep.subr.bf16.mxu0 %v4040
      %4833 = vmatpush1.bf16.msra.mxu0 %v4039
      %4834 = vmatprep.subr.bf16.mxu0 %v4061
      %4835 = vmatpush1.bf16.msra.mxu0 %v4060
      %4836 = vmatprep.subr.bf16.mxu0 %v4082
      %4837 = vmatpush1.bf16.msra.mxu0 %v4081
      %4838 = vmatprep.subr.bf16.mxu0 %v4103
      %4839 = vmatpush1.bf16.msra.mxu0 %v4102
      %4840 = vmatprep.subr.bf16.mxu0 %v4124
      %4841 = vmatpush1.bf16.msra.mxu0 %v4123
      %4842 = vmatprep.subr.bf16.mxu0 %v4145
      %4843 = vmatpush1.bf16.msra.mxu0 %v4144
      %4844 = vmatprep.subr.bf16.mxu0 %v4166
      %4845 = vmatpush1.bf16.msra.mxu0 %v4165
      %4846 = vmatprep.subr.bf16.mxu0 %v4187
      %4847 = vmatpush1.bf16.msra.mxu0 %v4186
      %4848 = vmatprep.subr.bf16.mxu0 %v4208
      %4849 = vmatpush1.bf16.msra.mxu0 %v4207
      %4850 = vmatprep.subr.bf16.mxu0 %v4555
      %4851 = vmatpush1.bf16.msra.mxu0 %v4552
      %4852 = vmatprep.subr.bf16.mxu0 0
      %4853 = vmatpush1.bf16.msra.mxu0 0
      %4854 = vmatprep.subr.bf16.mxu0 0
      %4855 = vmatpush1.bf16.msra.mxu0 0
      %4856 = vmatprep.mubr.bf16.mxu0 %v4512
      %4857 = vmatmul.mubr.bf16.gmra.mrb[0].mxu0 %v3076
      %v4858 = vpop.f32.mrb[0].mxu0
      %v4859 = vadd.f32 %v3071, %v4858
      %v4860 = vpop.f32.mrb[0].mxu0
      %v4861 = vadd.f32 %v3071, %v4860
      %v4862 = vpop.f32.mrb[0].mxu0
      %v4863 = vpop.f32.mrb[0].mxu0
      %4864 = vdwg.mxu0
      %4865 = vmatprep.subr.bf16.mxu0 %v3958
      %4866 = vmatpush1.bf16.msra.mxu0 %v3957
      %4867 = vmatprep.subr.bf16.mxu0 %v3979
      %4868 = vmatpush1.bf16.msra.mxu0 %v3978
      %4869 = vmatprep.subr.bf16.mxu0 %v4000
      %4870 = vmatpush1.bf16.msra.mxu0 %v3999
      %4871 = vmatprep.subr.bf16.mxu0 %v4021
      %4872 = vmatpush1.bf16.msra.mxu0 %v4020
      %4873 = vmatprep.subr.bf16.mxu0 %v4042
      %4874 = vmatpush1.bf16.msra.mxu0 %v4041
      %4875 = vmatprep.subr.bf16.mxu0 %v4063
      %4876 = vmatpush1.bf16.msra.mxu0 %v4062
      %4877 = vmatprep.subr.bf16.mxu0 %v4084
      %4878 = vmatpush1.bf16.msra.mxu0 %v4083
      %4879 = vmatprep.subr.bf16.mxu0 %v4105
      %4880 = vmatpush1.bf16.msra.mxu0 %v4104
      %4881 = vmatprep.subr.bf16.mxu0 %v4126
      %4882 = vmatpush1.bf16.msra.mxu0 %v4125
      %4883 = vmatprep.subr.bf16.mxu0 %v4147
      %4884 = vmatpush1.bf16.msra.mxu0 %v4146
      %4885 = vmatprep.subr.bf16.mxu0 %v4168
      %4886 = vmatpush1.bf16.msra.mxu0 %v4167
      %4887 = vmatprep.subr.bf16.mxu0 %v4189
      %4888 = vmatpush1.bf16.msra.mxu0 %v4188
      %4889 = vmatprep.subr.bf16.mxu0 %v4210
      %4890 = vmatpush1.bf16.msra.mxu0 %v4209
      %4891 = vmatprep.subr.bf16.mxu0 %v4561
      %4892 = vmatpush1.bf16.msra.mxu0 %v4558
      %4893 = vmatprep.subr.bf16.mxu0 0
      %4894 = vmatpush1.bf16.msra.mxu0 0
      %4895 = vmatprep.subr.bf16.mxu0 0
      %4896 = vmatpush1.bf16.msra.mxu0 0
      %4897 = vmatprep.mubr.bf16.mxu0 %v4512
      %4898 = vmatmul.mubr.bf16.gmra.mrb[0].mxu0 %v3076
      %v4899 = vpop.f32.mrb[0].mxu0
      %v4900 = vadd.f32 %v3071, %v4899
      %v4901 = vpop.f32.mrb[0].mxu0
      %v4902 = vadd.f32 %v3071, %v4901
      %v4903 = vpop.f32.mrb[0].mxu0
      %v4904 = vpop.f32.mrb[0].mxu0
      %4905 = vdwg.mxu0
      %4906 = vmatprep.subr.bf16.mxu0 %v3960
      %4907 = vmatpush1.bf16.msra.mxu0 %v3959
      %4908 = vmatprep.subr.bf16.mxu0 %v3981
      %4909 = vmatpush1.bf16.msra.mxu0 %v3980
      %4910 = vmatprep.subr.bf16.mxu0 %v4002
      %4911 = vmatpush1.bf16.msra.mxu0 %v4001
      %4912 = vmatprep.subr.bf16.mxu0 %v4023
      %4913 = vmatpush1.bf16.msra.mxu0 %v4022
      %4914 = vmatprep.subr.bf16.mxu0 %v4044
      %4915 = vmatpush1.bf16.msra.mxu0 %v4043
      %4916 = vmatprep.subr.bf16.mxu0 %v4065
      %4917 = vmatpush1.bf16.msra.mxu0 %v4064
      %4918 = vmatprep.subr.bf16.mxu0 %v4086
      %4919 = vmatpush1.bf16.msra.mxu0 %v4085
      %4920 = vmatprep.subr.bf16.mxu0 %v4107
      %4921 = vmatpush1.bf16.msra.mxu0 %v4106
      %4922 = vmatprep.subr.bf16.mxu0 %v4128
      %4923 = vmatpush1.bf16.msra.mxu0 %v4127
      %4924 = vmatprep.subr.bf16.mxu0 %v4149
      %4925 = vmatpush1.bf16.msra.mxu0 %v4148
      %4926 = vmatprep.subr.bf16.mxu0 %v4170
      %4927 = vmatpush1.bf16.msra.mxu0 %v4169
      %4928 = vmatprep.subr.bf16.mxu0 %v4191
      %4929 = vmatpush1.bf16.msra.mxu0 %v4190
      %4930 = vmatprep.subr.bf16.mxu0 %v4212
      %4931 = vmatpush1.bf16.msra.mxu0 %v4211
      %4932 = vmatprep.subr.bf16.mxu0 %v4567
      %4933 = vmatpush1.bf16.msra.mxu0 %v4564
      %4934 = vmatprep.subr.bf16.mxu0 0
      %4935 = vmatpush1.bf16.msra.mxu0 0
      %4936 = vmatprep.subr.bf16.mxu0 0
      %4937 = vmatpush1.bf16.msra.mxu0 0
      %4938 = vmatprep.mubr.bf16.mxu0 %v4512
      %4939 = vmatmul.mubr.bf16.gmra.mrb[0].mxu0 %v3076
      %v4940 = vpop.f32.mrb[0].mxu0
      %v4941 = vadd.f32 %v3071, %v4940
      %v4942 = vpop.f32.mrb[0].mxu0
      %v4943 = vadd.f32 %v3071, %v4942
      %v4944 = vpop.f32.mrb[0].mxu0
      %v4945 = vpop.f32.mrb[0].mxu0
      %4946 = vdwg.mxu0
      %4947 = vmatprep.subr.bf16.mxu0 %v3962
      %4948 = vmatpush1.bf16.msra.mxu0 %v3961
      %4949 = vmatprep.subr.bf16.mxu0 %v3983
      %4950 = vmatpush1.bf16.msra.mxu0 %v3982
      %4951 = vmatprep.subr.bf16.mxu0 %v4004
      %4952 = vmatpush1.bf16.msra.mxu0 %v4003
      %4953 = vmatprep.subr.bf16.mxu0 %v4025
      %4954 = vmatpush1.bf16.msra.mxu0 %v4024
      %4955 = vmatprep.subr.bf16.mxu0 %v4046
      %4956 = vmatpush1.bf16.msra.mxu0 %v4045
      %4957 = vmatprep.subr.bf16.mxu0 %v4067
      %4958 = vmatpush1.bf16.msra.mxu0 %v4066
      %4959 = vmatprep.subr.bf16.mxu0 %v4088
      %4960 = vmatpush1.bf16.msra.mxu0 %v4087
      %4961 = vmatprep.subr.bf16.mxu0 %v4109
      %4962 = vmatpush1.bf16.msra.mxu0 %v4108
      %4963 = vmatprep.subr.bf16.mxu0 %v4130
      %4964 = vmatpush1.bf16.msra.mxu0 %v4129
      %4965 = vmatprep.subr.bf16.mxu0 %v4151
      %4966 = vmatpush1.bf16.msra.mxu0 %v4150
      %4967 = vmatprep.subr.bf16.mxu0 %v4172
      %4968 = vmatpush1.bf16.msra.mxu0 %v4171
      %4969 = vmatprep.subr.bf16.mxu0 %v4193
      %4970 = vmatpush1.bf16.msra.mxu0 %v4192
      %4971 = vmatprep.subr.bf16.mxu0 %v4214
      %4972 = vmatpush1.bf16.msra.mxu0 %v4213
      %4973 = vmatprep.subr.bf16.mxu0 %v4573
      %4974 = vmatpush1.bf16.msra.mxu0 %v4570
      %4975 = vmatprep.subr.bf16.mxu0 0
      %4976 = vmatpush1.bf16.msra.mxu0 0
      %4977 = vmatprep.subr.bf16.mxu0 0
      %4978 = vmatpush1.bf16.msra.mxu0 0
      %4979 = vmatprep.mubr.bf16.mxu0 %v4512
      %4980 = vmatmul.mubr.bf16.gmra.mrb[0].mxu0 %v3076
      %v4981 = vpop.f32.mrb[0].mxu0
      %v4982 = vadd.f32 %v3071, %v4981
      %v4983 = vpop.f32.mrb[0].mxu0
      %v4984 = vadd.f32 %v3071, %v4983
      %v4985 = vpop.f32.mrb[0].mxu0
      %v4986 = vpop.f32.mrb[0].mxu0
      %4987 = vdwg.mxu0
      %4988 = vmatprep.subr.bf16.mxu0 0
      %4989 = vmatpush1.bf16.msra.mxu0 %v3963
      %4990 = vmatprep.subr.bf16.mxu0 0
      %4991 = vmatpush1.bf16.msra.mxu0 %v3984
      %4992 = vmatprep.subr.bf16.mxu0 0
      %4993 = vmatpush1.bf16.msra.mxu0 %v4005
      %4994 = vmatprep.subr.bf16.mxu0 0
      %4995 = vmatpush1.bf16.msra.mxu0 %v4026
      %4996 = vmatprep.subr.bf16.mxu0 0
      %4997 = vmatpush1.bf16.msra.mxu0 %v4047
      %4998 = vmatprep.subr.bf16.mxu0 0
      %4999 = vmatpush1.bf16.msra.mxu0 %v4068
      %5000 = vmatprep.subr.bf16.mxu0 0
      %5001 = vmatpush1.bf16.msra.mxu0 %v4089
      %5002 = vmatprep.subr.bf16.mxu0 0
      %5003 = vmatpush1.bf16.msra.mxu0 %v4110
      %5004 = vmatprep.subr.bf16.mxu0 0
      %5005 = vmatpush1.bf16.msra.mxu0 %v4131
      %5006 = vmatprep.subr.bf16.mxu0 0
      %5007 = vmatpush1.bf16.msra.mxu0 %v4152
      %5008 = vmatprep.subr.bf16.mxu0 0
      %5009 = vmatpush1.bf16.msra.mxu0 %v4173
      %5010 = vmatprep.subr.bf16.mxu0 0
      %5011 = vmatpush1.bf16.msra.mxu0 %v4194
      %5012 = vmatprep.subr.bf16.mxu0 0
      %5013 = vmatpush1.bf16.msra.mxu0 %v4215
      %5014 = vmatprep.subr.bf16.mxu0 0
      %5015 = vmatpush1.bf16.msra.mxu0 %v4576
      %5016 = vmatprep.subr.bf16.mxu0 0
      %5017 = vmatpush1.bf16.msra.mxu0 0
      %5018 = vmatprep.subr.bf16.mxu0 0
      %5019 = vmatpush1.bf16.msra.mxu0 0
      %5020 = vmatprep.mubr.bf16.mxu0 %v4512
      %5021 = vmatmul.mubr.bf16.gmra.mrb[0].mxu0 %v3076
      %v5022 = vpop.f32.mrb[0].mxu0
      %v5023 = vadd.f32 %v3071, %v5022
      %v5024 = vpop.f32.mrb[0].mxu0
      %v5025 = vpop.f32.mrb[0].mxu0
      %v5026 = vpop.f32.mrb[0].mxu0
      %5027 = vdwg.mxu0
      %5028 = vst [vmem:[%s170] sm:$0x3f] %v4613
      %5029 = vst [vmem:[%s170 + $0x8] sm:$0x3f] %v4615
      %5030 = vst [vmem:[%s170 + $0x10] sm:$0x3f] %v4654
      %5031 = vst [vmem:[%s170 + $0x18] sm:$0x3f] %v4656
      %5032 = vst [vmem:[%s170 + $0x20] sm:$0x3f] %v4695
      %5033 = vst [vmem:[%s170 + $0x28] sm:$0x3f] %v4697
      %5034 = vst [vmem:[%s170 + $0x30] sm:$0x3f] %v4736
      %5035 = vst [vmem:[%s170 + $0x38] sm:$0x3f] %v4738
      %5036 = vst [vmem:[%s170 + $0x40] sm:$0x3f] %v4777
      %5037 = vst [vmem:[%s170 + $0x48] sm:$0x3f] %v4779
      %5038 = vst [vmem:[%s170 + $0x50] sm:$0x3f] %v4818
      %5039 = vst [vmem:[%s170 + $0x58] sm:$0x3f] %v4820
      %5040 = vst [vmem:[%s170 + $0x60] sm:$0x3f] %v4859
      %5041 = vst [vmem:[%s170 + $0x68] sm:$0x3f] %v4861
      %5042 = vst [vmem:[%s170 + $0x70] sm:$0x3f] %v4900
      %5043 = vst [vmem:[%s170 + $0x78] sm:$0x3f] %v4902
      %5044 = vst [vmem:[%s170 + $0x80] sm:$0x3f] %v4941
      %5045 = vst [vmem:[%s170 + $0x88] sm:$0x3f] %v4943
      %5046 = vst [vmem:[%s170 + $0x90] sm:$0x3f] %v4982
      %5047 = vst [vmem:[%s170 + $0x98] sm:$0x3f] %v4984
      %5048 = vst [vmem:[%s170 + $0xa0] sm:$0x3f] %v5023
      %p5049 = scmp.lt.s32.totalorder %s14, 1
      %s5050 = scalar_select %p5049, %s14, 1
      %s5051 = smul.addr %s5050, 21
      %s5052 = smul.addr %s5051, 8
      %s5053 = scalar_lea.vmem %s3, %s5052
      // Predicated region
      $region33: #{_quantile_regression_impl.1} parent=31 // pred_check
        %p5054 = pneg %p100
      $region34: #{_quantile_regression_impl.1} parent=31 // pred_check_branch
        %5056 = sbr.rel (%p5054) target = $region36
      $region35: #{_quantile_regression_impl.1} parent=31 // pred_region
        _
      $region36: #{_quantile_regression_impl.1} parent=31 // pred_fallthru
        _
    $region32: #{_quantile_regression_impl.1} parent=5 // pred_fallthru
      _
    %p5057 = scmp.le.s32.totalorder 2, %s9
    // Predicated region
    $region37: #{_quantile_regression_impl.1} parent=5 // pred_check
      %p5058 = pneg %p5057
    $region38: #{_quantile_regression_impl.1} parent=5 // pred_check_branch
      %5060 = sbr.rel (%p5058) target = $region40
    $region39: #{_quantile_regression_impl.1} parent=5 // pred_region
      %s5061 = ssub.s32 %s9, 2
      // Predicated region
      $region41: #{_quantile_regression_impl.1} parent=39 // pred_check
        %p5062 = pneg %p106
      $region42: #{_quantile_regression_impl.1} parent=39 // pred_check_branch
        %5064 = sbr.rel (%p5062) target = $region44
      $region43: #{_quantile_regression_impl.1} parent=39 // pred_region
        %p5065 = scmp.lt.s32.totalorder %s15, 1
        %s5066 = scalar_select %p5065, %s15, 1
        %s5067 = smul.addr %s5066, 21
        %s5068 = smul.addr %s5067, 8
        %s5069 = scalar_lea.vmem %s3, %s5068
      $region44: #{_quantile_regression_impl.1} parent=39 // pred_fallthru
        _
    $region40: #{_quantile_regression_impl.1} parent=5 // pred_fallthru
      _
  $region6: #{_quantile_regression_impl.1} parent=0 // loop_footer
    %s13 = sadd.s32 1, %s9
  $region7: #{_quantile_regression_impl.1} parent=0 // loop_footer_branch
    %8 = sbr.rel target = $region3
  $region8: #{_quantile_regression_impl.1} parent=0 // loop_exit
    _

</llo_original>
